<compile_context>
chip_gen: v5e
topology: v5e:2x2
jax: 0.10.0
libtpu: 0.0.40
codegen_flags: <defaults>
</compile_context>

<pallas_src>
import math

import jax
import jax.numpy as jnp
from jax.experimental import pallas as pl
from jax.experimental.pallas import tpu as pltpu


# ----------------------------------------------------------------------------
# Kernels
# ----------------------------------------------------------------------------
def _encoder_kernel(x_ref,
                    w1_ref, s1_ref, b1_ref, w2_ref, s2_ref, b2_ref,
                    w3_ref, s3_ref, b3_ref, w4_ref, s4_ref, b4_ref,
                    o_ref, pad_buf, taps_buf):
    # Per-sample fused encoder1 + pool1 + encoder2.
    # x_ref: (1, L, Cin)      o_ref: (1, L//2, 2f)
    # conv weights: (K*Cin, Cout) bf16   bn scale/bias: (1, Cout) f32
    # pad_buf:  (L + 6, C_max)      f32 VMEM scratch (zero-padded activation)
    # taps_buf: (L, max(K*Cin))     f32 VMEM scratch (im2col slab)

    def conv_bn_relu(h, w_ref, s_ref, b_ref, k):
        # Conv1d(kernel=k, padding=(k-1)//2, bias=False) + folded BN + ReLU as ONE
        # im2col matmul: taps[l, t*Cin+ci] = x_padded[l+t, ci].
        length, cin = h.shape
        pad = (k - 1) // 2
        pad_buf[...] = jnp.zeros_like(pad_buf)            # zero borders & unused lanes
        pad_buf[pad:pad + length, 0:cin] = h
        for t in range(k):                                # static unroll: k slice copies
            taps_buf[0:length, t * cin:(t + 1) * cin] = pad_buf[t:t + length, 0:cin]
        taps = taps_buf[0:length, 0:k * cin].astype(jnp.bfloat16)
        acc = jnp.dot(taps, w_ref[...], preferred_element_type=jnp.float32)
        return jnp.maximum(acc * s_ref[...] + b_ref[...], 0.0)       # (L, Cout) f32

    def maxpool2(h):
        # MaxPool1d(2, 2) along the row (length) axis via even/odd selection matmuls.
        length, _ = h.shape
        half = length // 2
        rows = jax.lax.broadcasted_iota(jnp.int32, (half, length), 0)
        cols = jax.lax.broadcasted_iota(jnp.int32, (half, length), 1)
        sel_e = (cols == 2 * rows).astype(jnp.float32)
        sel_o = (cols == 2 * rows + 1).astype(jnp.float32)
        he = jnp.dot(sel_e, h, preferred_element_type=jnp.float32)
        ho = jnp.dot(sel_o, h, preferred_element_type=jnp.float32)
        return jnp.maximum(he, ho)                                   # (L//2, C)

    x = x_ref[0].astype(jnp.float32)                                 # (L, Cin)
    h = conv_bn_relu(x, w1_ref, s1_ref, b1_ref, 7)                   # (L, f)
    h = conv_bn_relu(h, w2_ref, s2_ref, b2_ref, 5)                   # (L, f)
    h = maxpool2(h)                                                  # (L/2, f)
    h = conv_bn_relu(h, w3_ref, s3_ref, b3_ref, 7)                   # (L/2, 2f)
    h = conv_bn_relu(h, w4_ref, s4_ref, b4_ref, 5)                   # (L/2, 2f)
    o_ref[0] = h.astype(o_ref.dtype)


def _head_kernel(x_ref, w1_ref, b1_ref, w2_ref, b2_ref, w3_ref, b3_ref, o_ref):
    # Flatten done in the wrapper; batch folded into the matmul M dimension.
    # x_ref: (N, 2f*L2) f32   w*: (fin, fout) bf16   b*: (1, fout) f32   o_ref: (N, cls)
    h = jnp.dot(x_ref[...].astype(jnp.bfloat16), w1_ref[...],
                preferred_element_type=jnp.float32) + b1_ref[...]
    h = jnp.maximum(h, 0.0)
    h = jnp.dot(h.astype(jnp.bfloat16), w2_ref[...],
                preferred_element_type=jnp.float32) + b2_ref[...]
    h = jnp.maximum(h, 0.0)
    logits = jnp.dot(h.astype(jnp.bfloat16), w3_ref[...],
                     preferred_element_type=jnp.float32) + b3_ref[...]
    m = jnp.max(logits, axis=-1, keepdims=True)                      # stable softmax
    e = jnp.exp(logits - m)
    o_ref[...] = (e / jnp.sum(e, axis=-1, keepdims=True)).astype(o_ref.dtype)


# ----------------------------------------------------------------------------
# Wrappers
# ----------------------------------------------------------------------------
def conv_encoder(x_nlc, p):
    # x_nlc: (N, L, Cin) channels-last.  Returns (N, L//2, 2f) f32.
    n, length, cin = x_nlc.shape
    c2 = p["s4"].shape[-1]
    half = length // 2
    c_max = max(cin, p["s1"].shape[-1], p["s2"].shape[-1], p["s3"].shape[-1], c2)
    kcin_max = max(p["w1"].shape[0], p["w2"].shape[0], p["w3"].shape[0], p["w4"].shape[0])

    def _full(arr):
        shape = arr.shape
        return pl.BlockSpec(shape, lambda i: (0,) * len(shape))

    weights = [p["w1"], p["s1"], p["b1"], p["w2"], p["s2"], p["b2"],
               p["w3"], p["s3"], p["b3"], p["w4"], p["s4"], p["b4"]]
    return pl.pallas_call(
        _encoder_kernel,
        out_shape=jax.ShapeDtypeStruct((n, half, c2), jnp.float32),
        grid=(n,),
        in_specs=[pl.BlockSpec((1, length, cin), lambda i: (i, 0, 0))]
                 + [_full(w) for w in weights],
        out_specs=pl.BlockSpec((1, half, c2), lambda i: (i, 0, 0)),
        scratch_shapes=[pltpu.VMEM((length + 6, c_max), jnp.float32),
                        pltpu.VMEM((length, kcin_max), jnp.float32)],
        compiler_params=pltpu.CompilerParams(
            dimension_semantics=("parallel",)),   # v7x: one sample per TensorCore
    )(x_nlc, *weights)


def mlp_head(flat, p):
    n = flat.shape[0]
    ncls = p["fc3_b"].shape[-1]
    return pl.pallas_call(
        _head_kernel,
        out_shape=jax.ShapeDtypeStruct((n, ncls), jnp.float32),
    )(flat, p["fc1_w"], p["fc1_b"], p["fc2_w"], p["fc2_b"], p["fc3_w"], p["fc3_b"])


def onedconv_encoder_forward(params, x_ncl):
    """PyTorch-convention (N, Cin, L) input -> (N, out_classes) softmax probabilities."""
    x = jnp.transpose(x_ncl, (0, 2, 1)).astype(jnp.float32)          # -> (N, L, Cin)
    enc2 = conv_encoder(x, params)                                   # (N, L//2, 2f)
    n, half, c2 = enc2.shape
    flat = enc2.reshape(n, half * c2)      # (l, c) row-major; fc1_w pre-permuted to match
    return mlp_head(flat, params)


# ----------------------------------------------------------------------------
# Deterministic synthetic parameters (shapes from OneDconvEncoder.__init__)
# ----------------------------------------------------------------------------
def _normal(key, shape, scale=0.05):
    return scale * jax.random.normal(key, shape, dtype=jnp.float32)


def _prep_conv_w(key, cin, cout, k):
    # PyTorch Conv1d weight layout (Cout, Cin, K) -> matmul layout (K*Cin, Cout),
    # row index = tap*Cin + ci, stored bf16 for the MXU.
    w_pt = _normal(key, (cout, cin, k), scale=0.2)
    return jnp.transpose(w_pt, (2, 1, 0)).reshape(k * cin, cout).astype(jnp.bfloat16)


def _make_bn(key, c, eps=1e-5):
    # Eval-mode BatchNorm folded to y = x*scale + bias using synthetic running stats.
    k1, k2, k3, k4 = jax.random.split(key, 4)
    gamma = 1.0 + 0.1 * jax.random.normal(k1, (c,), jnp.float32)
    beta = 0.1 * jax.random.normal(k2, (c,), jnp.float32)
    mean = 0.1 * jax.random.normal(k3, (c,), jnp.float32)
    var = 1.0 + 0.1 * jnp.abs(jax.random.normal(k4, (c,), jnp.float32))
    scale = gamma / jnp.sqrt(var + eps)
    bias = beta - mean * scale
    return scale.reshape(1, c), bias.reshape(1, c)


def _prep_fc(key, fin, fout):
    kw, kb = jax.random.split(key)
    w_pt = _normal(kw, (fout, fin))                   # PyTorch Linear weight (out, in)
    b = _normal(kb, (fout,))
    return jnp.transpose(w_pt).astype(jnp.bfloat16), b.reshape(1, fout)


def init_params(key, in_channels=1, out_classes=2, init_features=8, sig_dim=128):
    f = init_features
    c2 = f * 2
    half = int(math.ceil(sig_dim / 2))
    ks = jax.random.split(key, 12)
    p = {}
    # encoder1: Conv1d(in,f,7,p3)+BN+ReLU+Drop + Conv1d(f,f,5,p2)+BN+ReLU+Drop
    p["w1"] = _prep_conv_w(ks[0], in_channels, f, 7)
    p["s1"], p["b1"] = _make_bn(ks[1], f)
    p["w2"] = _prep_conv_w(ks[2], f, f, 5)
    p["s2"], p["b2"] = _make_bn(ks[3], f)
    # encoder2: Conv1d(f,2f,7,p3)+BN+ReLU+Drop + Conv1d(2f,2f,5,p2)+BN+ReLU+Drop
    p["w3"] = _prep_conv_w(ks[4], f, c2, 7)
    p["s3"], p["b3"] = _make_bn(ks[5], c2)
    p["w4"] = _prep_conv_w(ks[6], c2, c2, 5)
    p["s4"], p["b4"] = _make_bn(ks[7], c2)
    # linear head.  PyTorch flattens enc2 (N, C2, L2) as index c*L2 + l; the encoder
    # kernel emits (N, L2, C2) flattened as l*C2 + c, so permute fc1 columns to match.
    w1_pt = _normal(ks[8], (128, c2 * half))          # PyTorch Linear(c2*L2, 128) weight
    p["fc1_w"] = (w1_pt.reshape(128, c2, half).transpose(2, 1, 0)
                  .reshape(half * c2, 128).astype(jnp.bfloat16))
    p["fc1_b"] = _normal(ks[9], (1, 128))
    p["fc2_w"], p["fc2_b"] = _prep_fc(ks[10], 128, 64)
    p["fc3_w"], p["fc3_b"] = _prep_fc(ks[11], 64, out_classes)
    return p


if __name__ == "__main__":
    key = jax.random.PRNGKey(0)
    kp, kx = jax.random.split(key)
    params = init_params(kp, in_channels=1, out_classes=2, init_features=8, sig_dim=128)
    x = jax.random.normal(kx, (2, 1, 128), dtype=jnp.float32)   # (N, Cin, L) like PyTorch

    fwd = jax.jit(onedconv_encoder_forward)
    y = fwd(params, x)
    jax.block_until_ready(y)

    assert y.shape == (2, 2), y.shape
    assert bool(jnp.all(jnp.isfinite(y)))
    assert bool(jnp.all((y >= 0.0) & (y <= 1.0)))                       # softmax range
    assert bool(jnp.all(jnp.abs(jnp.sum(y, axis=1) - 1.0) < 1e-3))      # rows sum to 1
    print("KERNEL_OK")
</pallas_src>

<mosaic_0001>
module attributes {stable_mosaic.version = 11 : i64} {
  func.func @_encoder_kernel(%arg0: i32, %arg1: memref<1x128x1xf32, #tpu.memory_space<vmem>>, %arg2: memref<7x8xbf16, #tpu.memory_space<vmem>>, %arg3: memref<1x8xf32, #tpu.memory_space<vmem>>, %arg4: memref<1x8xf32, #tpu.memory_space<vmem>>, %arg5: memref<40x8xbf16, #tpu.memory_space<vmem>>, %arg6: memref<1x8xf32, #tpu.memory_space<vmem>>, %arg7: memref<1x8xf32, #tpu.memory_space<vmem>>, %arg8: memref<56x16xbf16, #tpu.memory_space<vmem>>, %arg9: memref<1x16xf32, #tpu.memory_space<vmem>>, %arg10: memref<1x16xf32, #tpu.memory_space<vmem>>, %arg11: memref<80x16xbf16, #tpu.memory_space<vmem>>, %arg12: memref<1x16xf32, #tpu.memory_space<vmem>>, %arg13: memref<1x16xf32, #tpu.memory_space<vmem>>, %arg14: memref<1x64x16xf32, #tpu.memory_space<vmem>>, %arg15: memref<134x16xf32, #tpu.memory_space<vmem>>, %arg16: memref<128x80xf32, #tpu.memory_space<vmem>>) attributes {dimension_semantics = [#tpu.dimension_semantics<parallel>], iteration_bounds = array<i64: 2>, scalar_prefetch = 0 : i64, scratch_operands = 2 : i64, tpu.core_type = #tpu.core_type<tc>, window_params = [{transform_indices = @transform_0, window_bounds = array<i64: 1, 128, 1>}, {pipeline_mode = #tpu.pipeline_mode<synchronous>, transform_indices = @transform_1, window_bounds = array<i64: 7, 8>}, {pipeline_mode = #tpu.pipeline_mode<synchronous>, transform_indices = @transform_2, window_bounds = array<i64: 1, 8>}, {pipeline_mode = #tpu.pipeline_mode<synchronous>, transform_indices = @transform_3, window_bounds = array<i64: 1, 8>}, {pipeline_mode = #tpu.pipeline_mode<synchronous>, transform_indices = @transform_4, window_bounds = array<i64: 40, 8>}, {pipeline_mode = #tpu.pipeline_mode<synchronous>, transform_indices = @transform_5, window_bounds = array<i64: 1, 8>}, {pipeline_mode = #tpu.pipeline_mode<synchronous>, transform_indices = @transform_6, window_bounds = array<i64: 1, 8>}, {pipeline_mode = #tpu.pipeline_mode<synchronous>, transform_indices = @transform_7, window_bounds = array<i64: 56, 16>}, {pipeline_mode = #tpu.pipeline_mode<synchronous>, transform_indices = @transform_8, window_bounds = array<i64: 1, 16>}, {pipeline_mode = #tpu.pipeline_mode<synchronous>, transform_indices = @transform_9, window_bounds = array<i64: 1, 16>}, {pipeline_mode = #tpu.pipeline_mode<synchronous>, transform_indices = @transform_10, window_bounds = array<i64: 80, 16>}, {pipeline_mode = #tpu.pipeline_mode<synchronous>, transform_indices = @transform_11, window_bounds = array<i64: 1, 16>}, {pipeline_mode = #tpu.pipeline_mode<synchronous>, transform_indices = @transform_12, window_bounds = array<i64: 1, 16>}, {transform_indices = @transform_13, window_bounds = array<i64: 1, 64, 16>}]} {
    %c0 = arith.constant 0 : index
    %c0_0 = arith.constant 0 : index
    %c0_1 = arith.constant 0 : index
    %0 = vector.load %arg1[%c0, %c0_0, %c0_1] : memref<1x128x1xf32, #tpu.memory_space<vmem>>, vector<1x128x1xf32>
    %1 = vector.shape_cast %0 : vector<1x128x1xf32> to vector<128x1xf32>
    %cst = arith.constant 0.000000e+00 : f32
    %2 = vector.broadcast %cst : f32 to vector<134x16xf32>
    %c0_2 = arith.constant 0 : index
    %c0_3 = arith.constant 0 : index
    %3 = vector.load %arg15[%c0_2, %c0_3] : memref<134x16xf32, #tpu.memory_space<vmem>>, vector<134x16xf32>
    tpu.vector_store %arg15[%c0_2, %c0_3], %2 {strides = array<i32>} : memref<134x16xf32, #tpu.memory_space<vmem>>, vector<134x16xf32>,
    %c3 = arith.constant 3 : index
    %c0_4 = arith.constant 0 : index
    %4 = vector.load %arg15[%c3, %c0_4] : memref<134x16xf32, #tpu.memory_space<vmem>>, vector<128x1xf32>
    tpu.vector_store %arg15[%c3, %c0_4], %1 {strides = array<i32>} : memref<134x16xf32, #tpu.memory_space<vmem>>, vector<128x1xf32>,
    %c0_5 = arith.constant 0 : index
    %c0_6 = arith.constant 0 : index
    %5 = vector.load %arg15[%c0_5, %c0_6] : memref<134x16xf32, #tpu.memory_space<vmem>>, vector<128x1xf32>
    %c0_7 = arith.constant 0 : index
    %c0_8 = arith.constant 0 : index
    %6 = vector.load %arg16[%c0_7, %c0_8] : memref<128x80xf32, #tpu.memory_space<vmem>>, vector<128x1xf32>
    tpu.vector_store %arg16[%c0_7, %c0_8], %5 {strides = array<i32>} : memref<128x80xf32, #tpu.memory_space<vmem>>, vector<128x1xf32>,
    %c1 = arith.constant 1 : index
    %c0_9 = arith.constant 0 : index
    %7 = vector.load %arg15[%c1, %c0_9] : memref<134x16xf32, #tpu.memory_space<vmem>>, vector<128x1xf32>
    %c0_10 = arith.constant 0 : index
    %c1_11 = arith.constant 1 : index
    %8 = vector.load %arg16[%c0_10, %c1_11] : memref<128x80xf32, #tpu.memory_space<vmem>>, vector<128x1xf32>
    tpu.vector_store %arg16[%c0_10, %c1_11], %7 {strides = array<i32>} : memref<128x80xf32, #tpu.memory_space<vmem>>, vector<128x1xf32>,
    %c2 = arith.constant 2 : index
    %c0_12 = arith.constant 0 : index
    %9 = vector.load %arg15[%c2, %c0_12] : memref<134x16xf32, #tpu.memory_space<vmem>>, vector<128x1xf32>
    %c0_13 = arith.constant 0 : index
    %c2_14 = arith.constant 2 : index
    %10 = vector.load %arg16[%c0_13, %c2_14] : memref<128x80xf32, #tpu.memory_space<vmem>>, vector<128x1xf32>
    tpu.vector_store %arg16[%c0_13, %c2_14], %9 {strides = array<i32>} : memref<128x80xf32, #tpu.memory_space<vmem>>, vector<128x1xf32>,
    %c3_15 = arith.constant 3 : index
    %c0_16 = arith.constant 0 : index
    %11 = vector.load %arg15[%c3_15, %c0_16] : memref<134x16xf32, #tpu.memory_space<vmem>>, vector<128x1xf32>
    %c0_17 = arith.constant 0 : index
    %c3_18 = arith.constant 3 : index
    %12 = vector.load %arg16[%c0_17, %c3_18] : memref<128x80xf32, #tpu.memory_space<vmem>>, vector<128x1xf32>
    tpu.vector_store %arg16[%c0_17, %c3_18], %11 {strides = array<i32>} : memref<128x80xf32, #tpu.memory_space<vmem>>, vector<128x1xf32>,
    %c4 = arith.constant 4 : index
    %c0_19 = arith.constant 0 : index
    %13 = vector.load %arg15[%c4, %c0_19] : memref<134x16xf32, #tpu.memory_space<vmem>>, vector<128x1xf32>
    %c0_20 = arith.constant 0 : index
    %c4_21 = arith.constant 4 : index
    %14 = vector.load %arg16[%c0_20, %c4_21] : memref<128x80xf32, #tpu.memory_space<vmem>>, vector<128x1xf32>
    tpu.vector_store %arg16[%c0_20, %c4_21], %13 {strides = array<i32>} : memref<128x80xf32, #tpu.memory_space<vmem>>, vector<128x1xf32>,
    %c5 = arith.constant 5 : index
    %c0_22 = arith.constant 0 : index
    %15 = vector.load %arg15[%c5, %c0_22] : memref<134x16xf32, #tpu.memory_space<vmem>>, vector<128x1xf32>
    %c0_23 = arith.constant 0 : index
    %c5_24 = arith.constant 5 : index
    %16 = vector.load %arg16[%c0_23, %c5_24] : memref<128x80xf32, #tpu.memory_space<vmem>>, vector<128x1xf32>
    tpu.vector_store %arg16[%c0_23, %c5_24], %15 {strides = array<i32>} : memref<128x80xf32, #tpu.memory_space<vmem>>, vector<128x1xf32>,
    %c6 = arith.constant 6 : index
    %c0_25 = arith.constant 0 : index
    %17 = vector.load %arg15[%c6, %c0_25] : memref<134x16xf32, #tpu.memory_space<vmem>>, vector<128x1xf32>
    %c0_26 = arith.constant 0 : index
    %c6_27 = arith.constant 6 : index
    %18 = vector.load %arg16[%c0_26, %c6_27] : memref<128x80xf32, #tpu.memory_space<vmem>>, vector<128x1xf32>
    tpu.vector_store %arg16[%c0_26, %c6_27], %17 {strides = array<i32>} : memref<128x80xf32, #tpu.memory_space<vmem>>, vector<128x1xf32>,
    %c0_28 = arith.constant 0 : index
    %c0_29 = arith.constant 0 : index
    %19 = vector.load %arg16[%c0_28, %c0_29] : memref<128x80xf32, #tpu.memory_space<vmem>>, vector<128x7xf32>
    %20 = arith.truncf %19 : vector<128x7xf32> to vector<128x7xbf16>
    %c0_30 = arith.constant 0 : index
    %c0_31 = arith.constant 0 : index
    %21 = vector.load %arg2[%c0_30, %c0_31] : memref<7x8xbf16, #tpu.memory_space<vmem>>, vector<7x8xbf16>
    %cst_32 = arith.constant dense<0.000000e+00> : vector<128x8xf32>
    %22 = tpu.matmul %20, %21, %cst_32 {dimension_numbers = #tpu.dot_dimension_numbers<[1], [0], [0], [1], [0, 0, 1, 1], [], []>} : vector<128x7xbf16>, vector<7x8xbf16>, vector<128x8xf32> -> vector<128x8xf32>
    %c0_33 = arith.constant 0 : index
    %c0_34 = arith.constant 0 : index
    %23 = vector.load %arg3[%c0_33, %c0_34] : memref<1x8xf32, #tpu.memory_space<vmem>>, vector<1x8xf32>
    %24 = vector.broadcast %23 : vector<1x8xf32> to vector<128x8xf32>
    %25 = arith.mulf %22, %24 : vector<128x8xf32>
    %c0_35 = arith.constant 0 : index
    %c0_36 = arith.constant 0 : index
    %26 = vector.load %arg4[%c0_35, %c0_36] : memref<1x8xf32, #tpu.memory_space<vmem>>, vector<1x8xf32>
    %27 = vector.broadcast %26 : vector<1x8xf32> to vector<128x8xf32>
    %28 = arith.addf %25, %27 : vector<128x8xf32>
    %cst_37 = arith.constant 0.000000e+00 : f32
    %29 = vector.broadcast %cst_37 : f32 to vector<128x8xf32>
    %30 = arith.maximumf %28, %29 : vector<128x8xf32>
    %cst_38 = arith.constant 0.000000e+00 : f32
    %31 = vector.broadcast %cst_38 : f32 to vector<134x16xf32>
    %c0_39 = arith.constant 0 : index
    %c0_40 = arith.constant 0 : index
    %32 = vector.load %arg15[%c0_39, %c0_40] : memref<134x16xf32, #tpu.memory_space<vmem>>, vector<134x16xf32>
    tpu.vector_store %arg15[%c0_39, %c0_40], %31 {strides = array<i32>} : memref<134x16xf32, #tpu.memory_space<vmem>>, vector<134x16xf32>,
    %c2_41 = arith.constant 2 : index
    %c0_42 = arith.constant 0 : index
    %33 = vector.load %arg15[%c2_41, %c0_42] : memref<134x16xf32, #tpu.memory_space<vmem>>, vector<128x8xf32>
    tpu.vector_store %arg15[%c2_41, %c0_42], %30 {strides = array<i32>} : memref<134x16xf32, #tpu.memory_space<vmem>>, vector<128x8xf32>,
    %c0_43 = arith.constant 0 : index
    %c0_44 = arith.constant 0 : index
    %34 = vector.load %arg15[%c0_43, %c0_44] : memref<134x16xf32, #tpu.memory_space<vmem>>, vector<128x8xf32>
    %c0_45 = arith.constant 0 : index
    %c0_46 = arith.constant 0 : index
    %35 = vector.load %arg16[%c0_45, %c0_46] : memref<128x80xf32, #tpu.memory_space<vmem>>, vector<128x8xf32>
    tpu.vector_store %arg16[%c0_45, %c0_46], %34 {strides = array<i32>} : memref<128x80xf32, #tpu.memory_space<vmem>>, vector<128x8xf32>,
    %c1_47 = arith.constant 1 : index
    %c0_48 = arith.constant 0 : index
    %36 = vector.load %arg15[%c1_47, %c0_48] : memref<134x16xf32, #tpu.memory_space<vmem>>, vector<128x8xf32>
    %c0_49 = arith.constant 0 : index
    %c8 = arith.constant 8 : index
    %37 = vector.load %arg16[%c0_49, %c8] : memref<128x80xf32, #tpu.memory_space<vmem>>, vector<128x8xf32>
    tpu.vector_store %arg16[%c0_49, %c8], %36 {strides = array<i32>} : memref<128x80xf32, #tpu.memory_space<vmem>>, vector<128x8xf32>,
    %c2_50 = arith.constant 2 : index
    %c0_51 = arith.constant 0 : index
    %38 = vector.load %arg15[%c2_50, %c0_51] : memref<134x16xf32, #tpu.memory_space<vmem>>, vector<128x8xf32>
    %c0_52 = arith.constant 0 : index
    %c16 = arith.constant 16 : index
    %39 = vector.load %arg16[%c0_52, %c16] : memref<128x80xf32, #tpu.memory_space<vmem>>, vector<128x8xf32>
    tpu.vector_store %arg16[%c0_52, %c16], %38 {strides = array<i32>} : memref<128x80xf32, #tpu.memory_space<vmem>>, vector<128x8xf32>,
    %c3_53 = arith.constant 3 : index
    %c0_54 = arith.constant 0 : index
    %40 = vector.load %arg15[%c3_53, %c0_54] : memref<134x16xf32, #tpu.memory_space<vmem>>, vector<128x8xf32>
    %c0_55 = arith.constant 0 : index
    %c24 = arith.constant 24 : index
    %41 = vector.load %arg16[%c0_55, %c24] : memref<128x80xf32, #tpu.memory_space<vmem>>, vector<128x8xf32>
    tpu.vector_store %arg16[%c0_55, %c24], %40 {strides = array<i32>} : memref<128x80xf32, #tpu.memory_space<vmem>>, vector<128x8xf32>,
    %c4_56 = arith.constant 4 : index
    %c0_57 = arith.constant 0 : index
    %42 = vector.load %arg15[%c4_56, %c0_57] : memref<134x16xf32, #tpu.memory_space<vmem>>, vector<128x8xf32>
    %c0_58 = arith.constant 0 : index
    %c32 = arith.constant 32 : index
    %43 = vector.load %arg16[%c0_58, %c32] : memref<128x80xf32, #tpu.memory_space<vmem>>, vector<128x8xf32>
    tpu.vector_store %arg16[%c0_58, %c32], %42 {strides = array<i32>} : memref<128x80xf32, #tpu.memory_space<vmem>>, vector<128x8xf32>,
    %c0_59 = arith.constant 0 : index
    %c0_60 = arith.constant 0 : index
    %44 = vector.load %arg16[%c0_59, %c0_60] : memref<128x80xf32, #tpu.memory_space<vmem>>, vector<128x40xf32>
    %45 = arith.truncf %44 : vector<128x40xf32> to vector<128x40xbf16>
    %c0_61 = arith.constant 0 : index
    %c0_62 = arith.constant 0 : index
    %46 = vector.load %arg5[%c0_61, %c0_62] : memref<40x8xbf16, #tpu.memory_space<vmem>>, vector<40x8xbf16>
    %cst_63 = arith.constant dense<0.000000e+00> : vector<128x8xf32>
    %47 = tpu.matmul %45, %46, %cst_63 {dimension_numbers = #tpu.dot_dimension_numbers<[1], [0], [0], [1], [0, 0, 1, 1], [], []>} : vector<128x40xbf16>, vector<40x8xbf16>, vector<128x8xf32> -> vector<128x8xf32>
    %c0_64 = arith.constant 0 : index
    %c0_65 = arith.constant 0 : index
    %48 = vector.load %arg6[%c0_64, %c0_65] : memref<1x8xf32, #tpu.memory_space<vmem>>, vector<1x8xf32>
    %49 = vector.broadcast %48 : vector<1x8xf32> to vector<128x8xf32>
    %50 = arith.mulf %47, %49 : vector<128x8xf32>
    %c0_66 = arith.constant 0 : index
    %c0_67 = arith.constant 0 : index
    %51 = vector.load %arg7[%c0_66, %c0_67] : memref<1x8xf32, #tpu.memory_space<vmem>>, vector<1x8xf32>
    %52 = vector.broadcast %51 : vector<1x8xf32> to vector<128x8xf32>
    %53 = arith.addf %50, %52 : vector<128x8xf32>
    %cst_68 = arith.constant 0.000000e+00 : f32
    %54 = vector.broadcast %cst_68 : f32 to vector<128x8xf32>
    %55 = arith.maximumf %53, %54 : vector<128x8xf32>
    %56 = tpu.iota {dimensions = array<i32: 0>} : vector<64x128xi32>
    %57 = tpu.iota {dimensions = array<i32: 1>} : vector<64x128xi32>
    %c2_i32 = arith.constant 2 : i32
    %58 = vector.broadcast %c2_i32 : i32 to vector<64x128xi32>
    %59 = arith.muli %58, %56 : vector<64x128xi32>
    %60 = arith.cmpi eq, %57, %59 : vector<64x128xi32>
    %61 = arith.extui %60 : vector<64x128xi1> to vector<64x128xi32>
    %62 = arith.sitofp %61 : vector<64x128xi32> to vector<64x128xf32>
    %c2_i32_69 = arith.constant 2 : i32
    %63 = vector.broadcast %c2_i32_69 : i32 to vector<64x128xi32>
    %64 = arith.muli %63, %56 : vector<64x128xi32>
    %c1_i32 = arith.constant 1 : i32
    %65 = vector.broadcast %c1_i32 : i32 to vector<64x128xi32>
    %66 = arith.addi %64, %65 : vector<64x128xi32>
    %67 = arith.cmpi eq, %57, %66 : vector<64x128xi32>
    %68 = arith.extui %67 : vector<64x128xi1> to vector<64x128xi32>
    %69 = arith.sitofp %68 : vector<64x128xi32> to vector<64x128xf32>
    %cst_70 = arith.constant dense<0.000000e+00> : vector<64x8xf32>
    %70 = tpu.matmul %62, %55, %cst_70 {dimension_numbers = #tpu.dot_dimension_numbers<[1], [0], [0], [1], [0, 0, 1, 1], [], []>} : vector<64x128xf32>, vector<128x8xf32>, vector<64x8xf32> -> vector<64x8xf32>
    %cst_71 = arith.constant dense<0.000000e+00> : vector<64x8xf32>
    %71 = tpu.matmul %69, %55, %cst_71 {dimension_numbers = #tpu.dot_dimension_numbers<[1], [0], [0], [1], [0, 0, 1, 1], [], []>} : vector<64x128xf32>, vector<128x8xf32>, vector<64x8xf32> -> vector<64x8xf32>
    %72 = arith.maximumf %70, %71 : vector<64x8xf32>
    %cst_72 = arith.constant 0.000000e+00 : f32
    %73 = vector.broadcast %cst_72 : f32 to vector<134x16xf32>
    %c0_73 = arith.constant 0 : index
    %c0_74 = arith.constant 0 : index
    %74 = vector.load %arg15[%c0_73, %c0_74] : memref<134x16xf32, #tpu.memory_space<vmem>>, vector<134x16xf32>
    tpu.vector_store %arg15[%c0_73, %c0_74], %73 {strides = array<i32>} : memref<134x16xf32, #tpu.memory_space<vmem>>, vector<134x16xf32>,
    %c3_75 = arith.constant 3 : index
    %c0_76 = arith.constant 0 : index
    %75 = vector.load %arg15[%c3_75, %c0_76] : memref<134x16xf32, #tpu.memory_space<vmem>>, vector<64x8xf32>
    tpu.vector_store %arg15[%c3_75, %c0_76], %72 {strides = array<i32>} : memref<134x16xf32, #tpu.memory_space<vmem>>, vector<64x8xf32>,
    %c0_77 = arith.constant 0 : index
    %c0_78 = arith.constant 0 : index
    %76 = vector.load %arg15[%c0_77, %c0_78] : memref<134x16xf32, #tpu.memory_space<vmem>>, vector<64x8xf32>
    %c0_79 = arith.constant 0 : index
    %c0_80 = arith.constant 0 : index
    %77 = vector.load %arg16[%c0_79, %c0_80] : memref<128x80xf32, #tpu.memory_space<vmem>>, vector<64x8xf32>
    tpu.vector_store %arg16[%c0_79, %c0_80], %76 {strides = array<i32>} : memref<128x80xf32, #tpu.memory_space<vmem>>, vector<64x8xf32>,
    %c1_81 = arith.constant 1 : index
    %c0_82 = arith.constant 0 : index
    %78 = vector.load %arg15[%c1_81, %c0_82] : memref<134x16xf32, #tpu.memory_space<vmem>>, vector<64x8xf32>
    %c0_83 = arith.constant 0 : index
    %c8_84 = arith.constant 8 : index
    %79 = vector.load %arg16[%c0_83, %c8_84] : memref<128x80xf32, #tpu.memory_space<vmem>>, vector<64x8xf32>
    tpu.vector_store %arg16[%c0_83, %c8_84], %78 {strides = array<i32>} : memref<128x80xf32, #tpu.memory_space<vmem>>, vector<64x8xf32>,
    %c2_85 = arith.constant 2 : index
    %c0_86 = arith.constant 0 : index
    %80 = vector.load %arg15[%c2_85, %c0_86] : memref<134x16xf32, #tpu.memory_space<vmem>>, vector<64x8xf32>
    %c0_87 = arith.constant 0 : index
    %c16_88 = arith.constant 16 : index
    %81 = vector.load %arg16[%c0_87, %c16_88] : memref<128x80xf32, #tpu.memory_space<vmem>>, vector<64x8xf32>
    tpu.vector_store %arg16[%c0_87, %c16_88], %80 {strides = array<i32>} : memref<128x80xf32, #tpu.memory_space<vmem>>, vector<64x8xf32>,
    %c3_89 = arith.constant 3 : index
    %c0_90 = arith.constant 0 : index
    %82 = vector.load %arg15[%c3_89, %c0_90] : memref<134x16xf32, #tpu.memory_space<vmem>>, vector<64x8xf32>
    %c0_91 = arith.constant 0 : index
    %c24_92 = arith.constant 24 : index
    %83 = vector.load %arg16[%c0_91, %c24_92] : memref<128x80xf32, #tpu.memory_space<vmem>>, vector<64x8xf32>
    tpu.vector_store %arg16[%c0_91, %c24_92], %82 {strides = array<i32>} : memref<128x80xf32, #tpu.memory_space<vmem>>, vector<64x8xf32>,
    %c4_93 = arith.constant 4 : index
    %c0_94 = arith.constant 0 : index
    %84 = vector.load %arg15[%c4_93, %c0_94] : memref<134x16xf32, #tpu.memory_space<vmem>>, vector<64x8xf32>
    %c0_95 = arith.constant 0 : index
    %c32_96 = arith.constant 32 : index
    %85 = vector.load %arg16[%c0_95, %c32_96] : memref<128x80xf32, #tpu.memory_space<vmem>>, vector<64x8xf32>
    tpu.vector_store %arg16[%c0_95, %c32_96], %84 {strides = array<i32>} : memref<128x80xf32, #tpu.memory_space<vmem>>, vector<64x8xf32>,
    %c5_97 = arith.constant 5 : index
    %c0_98 = arith.constant 0 : index
    %86 = vector.load %arg15[%c5_97, %c0_98] : memref<134x16xf32, #tpu.memory_space<vmem>>, vector<64x8xf32>
    %c0_99 = arith.constant 0 : index
    %c40 = arith.constant 40 : index
    %87 = vector.load %arg16[%c0_99, %c40] : memref<128x80xf32, #tpu.memory_space<vmem>>, vector<64x8xf32>
    tpu.vector_store %arg16[%c0_99, %c40], %86 {strides = array<i32>} : memref<128x80xf32, #tpu.memory_space<vmem>>, vector<64x8xf32>,
    %c6_100 = arith.constant 6 : index
    %c0_101 = arith.constant 0 : index
    %88 = vector.load %arg15[%c6_100, %c0_101] : memref<134x16xf32, #tpu.memory_space<vmem>>, vector<64x8xf32>
    %c0_102 = arith.constant 0 : index
    %c48 = arith.constant 48 : index
    %89 = vector.load %arg16[%c0_102, %c48] : memref<128x80xf32, #tpu.memory_space<vmem>>, vector<64x8xf32>
    tpu.vector_store %arg16[%c0_102, %c48], %88 {strides = array<i32>} : memref<128x80xf32, #tpu.memory_space<vmem>>, vector<64x8xf32>,
    %c0_103 = arith.constant 0 : index
    %c0_104 = arith.constant 0 : index
    %90 = vector.load %arg16[%c0_103, %c0_104] : memref<128x80xf32, #tpu.memory_space<vmem>>, vector<64x56xf32>
    %91 = arith.truncf %90 : vector<64x56xf32> to vector<64x56xbf16>
    %c0_105 = arith.constant 0 : index
    %c0_106 = arith.constant 0 : index
    %92 = vector.load %arg8[%c0_105, %c0_106] : memref<56x16xbf16, #tpu.memory_space<vmem>>, vector<56x16xbf16>
    %cst_107 = arith.constant dense<0.000000e+00> : vector<64x16xf32>
    %93 = tpu.matmul %91, %92, %cst_107 {dimension_numbers = #tpu.dot_dimension_numbers<[1], [0], [0], [1], [0, 0, 1, 1], [], []>} : vector<64x56xbf16>, vector<56x16xbf16>, vector<64x16xf32> -> vector<64x16xf32>
    %c0_108 = arith.constant 0 : index
    %c0_109 = arith.constant 0 : index
    %94 = vector.load %arg9[%c0_108, %c0_109] : memref<1x16xf32, #tpu.memory_space<vmem>>, vector<1x16xf32>
    %95 = vector.broadcast %94 : vector<1x16xf32> to vector<64x16xf32>
    %96 = arith.mulf %93, %95 : vector<64x16xf32>
    %c0_110 = arith.constant 0 : index
    %c0_111 = arith.constant 0 : index
    %97 = vector.load %arg10[%c0_110, %c0_111] : memref<1x16xf32, #tpu.memory_space<vmem>>, vector<1x16xf32>
    %98 = vector.broadcast %97 : vector<1x16xf32> to vector<64x16xf32>
    %99 = arith.addf %96, %98 : vector<64x16xf32>
    %cst_112 = arith.constant 0.000000e+00 : f32
    %100 = vector.broadcast %cst_112 : f32 to vector<64x16xf32>
    %101 = arith.maximumf %99, %100 : vector<64x16xf32>
    %cst_113 = arith.constant 0.000000e+00 : f32
    %102 = vector.broadcast %cst_113 : f32 to vector<134x16xf32>
    %c0_114 = arith.constant 0 : index
    %c0_115 = arith.constant 0 : index
    %103 = vector.load %arg15[%c0_114, %c0_115] : memref<134x16xf32, #tpu.memory_space<vmem>>, vector<134x16xf32>
    tpu.vector_store %arg15[%c0_114, %c0_115], %102 {strides = array<i32>} : memref<134x16xf32, #tpu.memory_space<vmem>>, vector<134x16xf32>,
    %c2_116 = arith.constant 2 : index
    %c0_117 = arith.constant 0 : index
    %104 = vector.load %arg15[%c2_116, %c0_117] : memref<134x16xf32, #tpu.memory_space<vmem>>, vector<64x16xf32>
    tpu.vector_store %arg15[%c2_116, %c0_117], %101 {strides = array<i32>} : memref<134x16xf32, #tpu.memory_space<vmem>>, vector<64x16xf32>,
    %c0_118 = arith.constant 0 : index
    %c0_119 = arith.constant 0 : index
    %105 = vector.load %arg15[%c0_118, %c0_119] : memref<134x16xf32, #tpu.memory_space<vmem>>, vector<64x16xf32>
    %c0_120 = arith.constant 0 : index
    %c0_121 = arith.constant 0 : index
    %106 = vector.load %arg16[%c0_120, %c0_121] : memref<128x80xf32, #tpu.memory_space<vmem>>, vector<64x16xf32>
    tpu.vector_store %arg16[%c0_120, %c0_121], %105 {strides = array<i32>} : memref<128x80xf32, #tpu.memory_space<vmem>>, vector<64x16xf32>,
    %c1_122 = arith.constant 1 : index
    %c0_123 = arith.constant 0 : index
    %107 = vector.load %arg15[%c1_122, %c0_123] : memref<134x16xf32, #tpu.memory_space<vmem>>, vector<64x16xf32>
    %c0_124 = arith.constant 0 : index
    %c16_125 = arith.constant 16 : index
    %108 = vector.load %arg16[%c0_124, %c16_125] : memref<128x80xf32, #tpu.memory_space<vmem>>, vector<64x16xf32>
    tpu.vector_store %arg16[%c0_124, %c16_125], %107 {strides = array<i32>} : memref<128x80xf32, #tpu.memory_space<vmem>>, vector<64x16xf32>,
    %c2_126 = arith.constant 2 : index
    %c0_127 = arith.constant 0 : index
    %109 = vector.load %arg15[%c2_126, %c0_127] : memref<134x16xf32, #tpu.memory_space<vmem>>, vector<64x16xf32>
    %c0_128 = arith.constant 0 : index
    %c32_129 = arith.constant 32 : index
    %110 = vector.load %arg16[%c0_128, %c32_129] : memref<128x80xf32, #tpu.memory_space<vmem>>, vector<64x16xf32>
    tpu.vector_store %arg16[%c0_128, %c32_129], %109 {strides = array<i32>} : memref<128x80xf32, #tpu.memory_space<vmem>>, vector<64x16xf32>,
    %c3_130 = arith.constant 3 : index
    %c0_131 = arith.constant 0 : index
    %111 = vector.load %arg15[%c3_130, %c0_131] : memref<134x16xf32, #tpu.memory_space<vmem>>, vector<64x16xf32>
    %c0_132 = arith.constant 0 : index
    %c48_133 = arith.constant 48 : index
    %112 = vector.load %arg16[%c0_132, %c48_133] : memref<128x80xf32, #tpu.memory_space<vmem>>, vector<64x16xf32>
    tpu.vector_store %arg16[%c0_132, %c48_133], %111 {strides = array<i32>} : memref<128x80xf32, #tpu.memory_space<vmem>>, vector<64x16xf32>,
    %c4_134 = arith.constant 4 : index
    %c0_135 = arith.constant 0 : index
    %113 = vector.load %arg15[%c4_134, %c0_135] : memref<134x16xf32, #tpu.memory_space<vmem>>, vector<64x16xf32>
    %c0_136 = arith.constant 0 : index
    %c64 = arith.constant 64 : index
    %114 = vector.load %arg16[%c0_136, %c64] : memref<128x80xf32, #tpu.memory_space<vmem>>, vector<64x16xf32>
    tpu.vector_store %arg16[%c0_136, %c64], %113 {strides = array<i32>} : memref<128x80xf32, #tpu.memory_space<vmem>>, vector<64x16xf32>,
    %c0_137 = arith.constant 0 : index
    %c0_138 = arith.constant 0 : index
    %115 = vector.load %arg16[%c0_137, %c0_138] : memref<128x80xf32, #tpu.memory_space<vmem>>, vector<64x80xf32>
    %116 = arith.truncf %115 : vector<64x80xf32> to vector<64x80xbf16>
    %c0_139 = arith.constant 0 : index
    %c0_140 = arith.constant 0 : index
    %117 = vector.load %arg11[%c0_139, %c0_140] : memref<80x16xbf16, #tpu.memory_space<vmem>>, vector<80x16xbf16>
    %cst_141 = arith.constant dense<0.000000e+00> : vector<64x16xf32>
    %118 = tpu.matmul %116, %117, %cst_141 {dimension_numbers = #tpu.dot_dimension_numbers<[1], [0], [0], [1], [0, 0, 1, 1], [], []>} : vector<64x80xbf16>, vector<80x16xbf16>, vector<64x16xf32> -> vector<64x16xf32>
    %c0_142 = arith.constant 0 : index
    %c0_143 = arith.constant 0 : index
    %119 = vector.load %arg12[%c0_142, %c0_143] : memref<1x16xf32, #tpu.memory_space<vmem>>, vector<1x16xf32>
    %120 = vector.broadcast %119 : vector<1x16xf32> to vector<64x16xf32>
    %121 = arith.mulf %118, %120 : vector<64x16xf32>
    %c0_144 = arith.constant 0 : index
    %c0_145 = arith.constant 0 : index
    %122 = vector.load %arg13[%c0_144, %c0_145] : memref<1x16xf32, #tpu.memory_space<vmem>>, vector<1x16xf32>
    %123 = vector.broadcast %122 : vector<1x16xf32> to vector<64x16xf32>
    %124 = arith.addf %121, %123 : vector<64x16xf32>
    %cst_146 = arith.constant 0.000000e+00 : f32
    %125 = vector.broadcast %cst_146 : f32 to vector<64x16xf32>
    %126 = arith.maximumf %124, %125 : vector<64x16xf32>
    %c0_147 = arith.constant 0 : index
    %c0_148 = arith.constant 0 : index
    %c0_149 = arith.constant 0 : index
    %127 = vector.load %arg14[%c0_147, %c0_148, %c0_149] : memref<1x64x16xf32, #tpu.memory_space<vmem>>, vector<1x64x16xf32>
    %128 = vector.shape_cast %127 : vector<1x64x16xf32> to vector<64x16xf32>
    %129 = vector.shape_cast %126 : vector<64x16xf32> to vector<1x64x16xf32>
    tpu.vector_store %arg14[%c0_147, %c0_148, %c0_149], %129 {strides = array<i32>} : memref<1x64x16xf32, #tpu.memory_space<vmem>>, vector<1x64x16xf32>,
    return
  }
  func.func @transform_0(%arg0: i32) -> (i32, i32, i32) {
    %c0_i32 = arith.constant 0 : i32
    %c0_i32_0 = arith.constant 0 : i32
    %c0_i32_1 = arith.constant 0 : i32
    return %arg0, %c0_i32, %c0_i32_0 : i32, i32, i32
  }
  func.func @transform_1(%arg0: i32) -> (i32, i32) {
    %c0_i32 = arith.constant 0 : i32
    %c0_i32_0 = arith.constant 0 : i32
    %c0_i32_1 = arith.constant 0 : i32
    return %c0_i32, %c0_i32_0 : i32, i32
  }
  func.func @transform_2(%arg0: i32) -> (i32, i32) {
    %c0_i32 = arith.constant 0 : i32
    %c0_i32_0 = arith.constant 0 : i32
    %c0_i32_1 = arith.constant 0 : i32
    return %c0_i32, %c0_i32_0 : i32, i32
  }
  func.func @transform_3(%arg0: i32) -> (i32, i32) {
    %c0_i32 = arith.constant 0 : i32
    %c0_i32_0 = arith.constant 0 : i32
    %c0_i32_1 = arith.constant 0 : i32
    return %c0_i32, %c0_i32_0 : i32, i32
  }
  func.func @transform_4(%arg0: i32) -> (i32, i32) {
    %c0_i32 = arith.constant 0 : i32
    %c0_i32_0 = arith.constant 0 : i32
    %c0_i32_1 = arith.constant 0 : i32
    return %c0_i32, %c0_i32_0 : i32, i32
  }
  func.func @transform_5(%arg0: i32) -> (i32, i32) {
    %c0_i32 = arith.constant 0 : i32
    %c0_i32_0 = arith.constant 0 : i32
    %c0_i32_1 = arith.constant 0 : i32
    return %c0_i32, %c0_i32_0 : i32, i32
  }
  func.func @transform_6(%arg0: i32) -> (i32, i32) {
    %c0_i32 = arith.constant 0 : i32
    %c0_i32_0 = arith.constant 0 : i32
    %c0_i32_1 = arith.constant 0 : i32
    return %c0_i32, %c0_i32_0 : i32, i32
  }
  func.func @transform_7(%arg0: i32) -> (i32, i32) {
    %c0_i32 = arith.constant 0 : i32
    %c0_i32_0 = arith.constant 0 : i32
    %c0_i32_1 = arith.constant 0 : i32
    return %c0_i32, %c0_i32_0 : i32, i32
  }
  func.func @transform_8(%arg0: i32) -> (i32, i32) {
    %c0_i32 = arith.constant 0 : i32
    %c0_i32_0 = arith.constant 0 : i32
    %c0_i32_1 = arith.constant 0 : i32
    return %c0_i32, %c0_i32_0 : i32, i32
  }
  func.func @transform_9(%arg0: i32) -> (i32, i32) {
    %c0_i32 = arith.constant 0 : i32
    %c0_i32_0 = arith.constant 0 : i32
    %c0_i32_1 = arith.constant 0 : i32
    return %c0_i32, %c0_i32_0 : i32, i32
  }
  func.func @transform_10(%arg0: i32) -> (i32, i32) {
    %c0_i32 = arith.constant 0 : i32
    %c0_i32_0 = arith.constant 0 : i32
    %c0_i32_1 = arith.constant 0 : i32
    return %c0_i32, %c0_i32_0 : i32, i32
  }
  func.func @transform_11(%arg0: i32) -> (i32, i32) {
    %c0_i32 = arith.constant 0 : i32
    %c0_i32_0 = arith.constant 0 : i32
    %c0_i32_1 = arith.constant 0 : i32
    return %c0_i32, %c0_i32_0 : i32, i32
  }
  func.func @transform_12(%arg0: i32) -> (i32, i32) {
    %c0_i32 = arith.constant 0 : i32
    %c0_i32_0 = arith.constant 0 : i32
    %c0_i32_1 = arith.constant 0 : i32
    return %c0_i32, %c0_i32_0 : i32, i32
  }
  func.func @transform_13(%arg0: i32) -> (i32, i32, i32) {
    %c0_i32 = arith.constant 0 : i32
    %c0_i32_0 = arith.constant 0 : i32
    %c0_i32_1 = arith.constant 0 : i32
    return %arg0, %c0_i32, %c0_i32_0 : i32, i32, i32
  }
}

module attributes {stable_mosaic.version = 11 : i64} {
  func.func @_head_kernel(%arg0: memref<2x1024xf32, #tpu.memory_space<vmem>>, %arg1: memref<1024x128xbf16, #tpu.memory_space<vmem>>, %arg2: memref<1x128xf32, #tpu.memory_space<vmem>>, %arg3: memref<128x64xbf16, #tpu.memory_space<vmem>>, %arg4: memref<1x64xf32, #tpu.memory_space<vmem>>, %arg5: memref<64x2xbf16, #tpu.memory_space<vmem>>, %arg6: memref<1x2xf32, #tpu.memory_space<vmem>>, %arg7: memref<2x2xf32, #tpu.memory_space<vmem>>) attributes {dimension_semantics = [], scalar_prefetch = 0 : i64, scratch_operands = 0 : i64, tpu.core_type = #tpu.core_type<tc>} {
    %c0 = arith.constant 0 : index
    %c0_0 = arith.constant 0 : index
    %0 = vector.load %arg0[%c0, %c0_0] : memref<2x1024xf32, #tpu.memory_space<vmem>>, vector<2x1024xf32>
    %1 = arith.truncf %0 : vector<2x1024xf32> to vector<2x1024xbf16>
    %c0_1 = arith.constant 0 : index
    %c0_2 = arith.constant 0 : index
    %2 = vector.load %arg1[%c0_1, %c0_2] : memref<1024x128xbf16, #tpu.memory_space<vmem>>, vector<1024x128xbf16>
    %cst = arith.constant dense<0.000000e+00> : vector<2x128xf32>
    %3 = tpu.matmul %1, %2, %cst {dimension_numbers = #tpu.dot_dimension_numbers<[1], [0], [0], [1], [0, 0, 1, 1], [], []>} : vector<2x1024xbf16>, vector<1024x128xbf16>, vector<2x128xf32> -> vector<2x128xf32>
    %c0_3 = arith.constant 0 : index
    %c0_4 = arith.constant 0 : index
    %4 = vector.load %arg2[%c0_3, %c0_4] : memref<1x128xf32, #tpu.memory_space<vmem>>, vector<1x128xf32>
    %5 = vector.broadcast %4 : vector<1x128xf32> to vector<2x128xf32>
    %6 = arith.addf %3, %5 : vector<2x128xf32>
    %cst_5 = arith.constant 0.000000e+00 : f32
    %7 = vector.broadcast %cst_5 : f32 to vector<2x128xf32>
    %8 = arith.maximumf %6, %7 : vector<2x128xf32>
    %9 = arith.truncf %8 : vector<2x128xf32> to vector<2x128xbf16>
    %c0_6 = arith.constant 0 : index
    %c0_7 = arith.constant 0 : index
    %10 = vector.load %arg3[%c0_6, %c0_7] : memref<128x64xbf16, #tpu.memory_space<vmem>>, vector<128x64xbf16>
    %cst_8 = arith.constant dense<0.000000e+00> : vector<2x64xf32>
    %11 = tpu.matmul %9, %10, %cst_8 {dimension_numbers = #tpu.dot_dimension_numbers<[1], [0], [0], [1], [0, 0, 1, 1], [], []>} : vector<2x128xbf16>, vector<128x64xbf16>, vector<2x64xf32> -> vector<2x64xf32>
    %c0_9 = arith.constant 0 : index
    %c0_10 = arith.constant 0 : index
    %12 = vector.load %arg4[%c0_9, %c0_10] : memref<1x64xf32, #tpu.memory_space<vmem>>, vector<1x64xf32>
    %13 = vector.broadcast %12 : vector<1x64xf32> to vector<2x64xf32>
    %14 = arith.addf %11, %13 : vector<2x64xf32>
    %cst_11 = arith.constant 0.000000e+00 : f32
    %15 = vector.broadcast %cst_11 : f32 to vector<2x64xf32>
    %16 = arith.maximumf %14, %15 : vector<2x64xf32>
    %17 = arith.truncf %16 : vector<2x64xf32> to vector<2x64xbf16>
    %c0_12 = arith.constant 0 : index
    %c0_13 = arith.constant 0 : index
    %18 = vector.load %arg5[%c0_12, %c0_13] : memref<64x2xbf16, #tpu.memory_space<vmem>>, vector<64x2xbf16>
    %cst_14 = arith.constant dense<0.000000e+00> : vector<2x2xf32>
    %19 = tpu.matmul %17, %18, %cst_14 {dimension_numbers = #tpu.dot_dimension_numbers<[1], [0], [0], [1], [0, 0, 1, 1], [], []>} : vector<2x64xbf16>, vector<64x2xbf16>, vector<2x2xf32> -> vector<2x2xf32>
    %c0_15 = arith.constant 0 : index
    %c0_16 = arith.constant 0 : index
    %20 = vector.load %arg6[%c0_15, %c0_16] : memref<1x2xf32, #tpu.memory_space<vmem>>, vector<1x2xf32>
    %21 = vector.broadcast %20 : vector<1x2xf32> to vector<2x2xf32>
    %22 = arith.addf %19, %21 : vector<2x2xf32>
    %cst_17 = arith.constant dense<0xFF800000> : vector<2xf32>
    %23 = vector.multi_reduction <maximumf>, %22, %cst_17 [1] : vector<2x2xf32> to vector<2xf32>
    %24 = vector.shape_cast %23 : vector<2xf32> to vector<2x1xf32>
    %25 = vector.broadcast %24 : vector<2x1xf32> to vector<2x2xf32>
    %26 = arith.subf %22, %25 : vector<2x2xf32>
    %27 = math.exp %26 : vector<2x2xf32>
    %cst_18 = arith.constant dense<0.000000e+00> : vector<2xf32>
    %28 = vector.multi_reduction <add>, %27, %cst_18 [1] : vector<2x2xf32> to vector<2xf32>
    %29 = vector.shape_cast %28 : vector<2xf32> to vector<2x1xf32>
    %30 = vector.broadcast %29 : vector<2x1xf32> to vector<2x2xf32>
    %31 = arith.divf %27, %30 : vector<2x2xf32>
    %c0_19 = arith.constant 0 : index
    %c0_20 = arith.constant 0 : index
    %32 = vector.load %arg7[%c0_19, %c0_20] : memref<2x2xf32, #tpu.memory_space<vmem>>, vector<2x2xf32>
    tpu.vector_store %arg7[%c0_19, %c0_20], %31 {strides = array<i32>} : memref<2x2xf32, #tpu.memory_space<vmem>>, vector<2x2xf32>,
    return
  }
}

</mosaic_0001>

<llo_original>
// kernel: onedconv_encoder_forward.3
$region0: #{onedconv_encoder_forward.3}
  #allocation0 [shape = 'u32[]', space=smem, size = 0x4, offset = 0x4, fixed_abs, tag = 'smem constant byte address 0x4 - core index']
  #allocation1 [shape = 'u32[72,128]{1,0:T(1,128)}', space=vmem, size = 0x9000, scoped, tag = 'internal scratch']
  %s0 = inlined_call_operand.vmem [shape: f32[2,1024], index: 0, kind: input, shape index: {}]
  %s1 = inlined_call_operand.hbm [shape: bf16[1024,128], index: 1, kind: input, shape index: {}]
  %s2 = inlined_call_operand.vmem [shape: f32[1,128], index: 2, kind: input, shape index: {}]
  %s3 = inlined_call_operand.vmem [shape: bf16[128,64], index: 3, kind: input, shape index: {}]
  %s4 = inlined_call_operand.vmem [shape: f32[1,64], index: 4, kind: input, shape index: {}]
  %s5 = inlined_call_operand.vmem [shape: bf16[64,2], index: 5, kind: input, shape index: {}]
  %s6 = inlined_call_operand.vmem [shape: f32[1,2], index: 6, kind: input, shape index: {}]
  %s7 = inlined_call_operand.hbm [shape: f32[2,2], index: 7, kind: output, shape index: {}]
  %s8 = sld [smem:[#allocation0]]
  $region42: #{onedconv_encoder_forward.3} parent=0
    _
  %s10 = ssub.s32 1, %s8
  %s11 = scalar_select 0, %s10, %s8
  $region1: #{onedconv_encoder_forward.3} parent=0
    #allocation2 [shape = 'u8[262144]{0}', space=vmem, size = 0x40000, scoped, tag = 'input window, operand 1, single buffered']
    #allocation3 [shape = 's32[1]{0}', space=sflag, size = 0x4, scoped, tag = 'scoped memory for onedconv_encoder_forward.3']
    #allocation4 [shape = 's32[1]{0}', space=sflag, size = 0x4, scoped, tag = 'scoped memory for onedconv_encoder_forward.3']
    #allocation5 [shape = 'u8[1024]{0}', space=vmem, size = 0x400, scoped, tag = 'output window, operand 0, single buffered']
    %12 = vsyncpa [#allocation3], 0
    %13 = vsyncpa [#allocation4], 0
    // Predicated region
    $region2: #{onedconv_encoder_forward.3} parent=1 // pred_check
      _
    $region3: #{onedconv_encoder_forward.3} parent=1 // pred_check_branch
      %15 = sbr.rel (0) target = $region5
    $region4: #{onedconv_encoder_forward.3} parent=1 // pred_region
      _
    $region5: #{onedconv_encoder_forward.3} parent=1 // pred_fallthru
      _
    // Predicated region
    $region6: #{onedconv_encoder_forward.3} parent=1 // pred_check
      _
    $region7: #{onedconv_encoder_forward.3} parent=1 // pred_check_branch
      %17 = sbr.rel (0) target = $region9
    $region8: #{onedconv_encoder_forward.3} parent=1 // pred_region
      %19 = vsyncadd [#allocation3], 0
      %s20 = sshll.u32 %s1, 4
      %s21 = int_to_ptr.hbm [resolvable:$true] %s20
      %s22 = sshll.u32 [#allocation2], 4
      %s23 = int_to_ptr.vmem [resolvable:$true] %s22
      %28 = dma.hbm_to_vmem [thread:$0]  %s21, 8192, %s23, [#allocation3], 64, 64, 4
    $region9: #{onedconv_encoder_forward.3} parent=1 // pred_fallthru
      _
    // Predicated region
    $region10: #{onedconv_encoder_forward.3} parent=1 // pred_check
      _
    $region11: #{onedconv_encoder_forward.3} parent=1 // pred_check_branch
      %30 = sbr.rel (0) target = $region13
    $region12: #{onedconv_encoder_forward.3} parent=1 // pred_region
      _
    $region13: #{onedconv_encoder_forward.3} parent=1 // pred_fallthru
      _
    // Predicated region
    $region14: #{onedconv_encoder_forward.3} parent=1 // pred_check
      _
    $region15: #{onedconv_encoder_forward.3} parent=1 // pred_check_branch
      %32 = sbr.rel (0) target = $region17
    $region16: #{onedconv_encoder_forward.3} parent=1 // pred_region
      _
    $region17: #{onedconv_encoder_forward.3} parent=1 // pred_fallthru
      _
    // Predicated region
    $region18: #{onedconv_encoder_forward.3} parent=1 // pred_check
      _
    $region19: #{onedconv_encoder_forward.3} parent=1 // pred_check_branch
      %34 = sbr.rel (0) target = $region21
    $region20: #{onedconv_encoder_forward.3} parent=1 // pred_region
      _
    $region21: #{onedconv_encoder_forward.3} parent=1 // pred_fallthru
      _
    // Predicated region
    $region22: #{onedconv_encoder_forward.3} parent=1 // pred_check
      _
    $region23: #{onedconv_encoder_forward.3} parent=1 // pred_check_branch
      %36 = sbr.rel (0) target = $region25
    $region24: #{onedconv_encoder_forward.3} parent=1 // pred_region
      _
    $region25: #{onedconv_encoder_forward.3} parent=1 // pred_fallthru
      _
    // Predicated region
    $region26: #{onedconv_encoder_forward.3} parent=1 // pred_check
      _
    $region27: #{onedconv_encoder_forward.3} parent=1 // pred_check_branch
      %38 = sbr.rel (0) target = $region29
    $region28: #{onedconv_encoder_forward.3} parent=1 // pred_region
      _
    $region29: #{onedconv_encoder_forward.3} parent=1 // pred_fallthru
      _
    // Predicated region
    $region30: #{onedconv_encoder_forward.3} parent=1 // pred_check
      _
    $region31: #{onedconv_encoder_forward.3} parent=1 // pred_check_branch
      %40 = sbr.rel (0) target = $region33
    $region32: #{onedconv_encoder_forward.3} parent=1 // pred_region
      %42 = dma.done [#allocation3], 8192
    $region33: #{onedconv_encoder_forward.3} parent=1 // pred_fallthru
      _
    %v44 = vld [vmem:[%s0] sm:$0xff]
    %v45 = vld [vmem:[%s0 + $0x8] sm:$0xff]
    %48 = vst [vmem:[#allocation1] ss:$4 sm:$0xff] %v44
    %s49 = scalar_lea.vmem [#allocation1], 32
    %50 = vst [vmem:[%s49] ss:$4 sm:$0xff] %v45
    %v51 = vld.sshfl [vmem:[#allocation1] sm:$0xff pattern:$0x73625140]
    %v52 = vld.sshfl [vmem:[#allocation1 + $0x8] sm:$0xff pattern:$0x73625140]
    %v53 = vld.sshfl [vmem:[#allocation1 + $0x10] sm:$0xff pattern:$0x73625140]
    %v54 = vld.sshfl [vmem:[#allocation1 + $0x18] sm:$0xff pattern:$0x73625140]
    %v55 = vld.sshfl [vmem:[#allocation1 + $0x20] sm:$0xff pattern:$0x73625140]
    %v56 = vld.sshfl [vmem:[#allocation1 + $0x28] sm:$0xff pattern:$0x73625140]
    %v57 = vld.sshfl [vmem:[#allocation1 + $0x30] sm:$0xff pattern:$0x73625140]
    %v58 = vld.sshfl [vmem:[#allocation1 + $0x38] sm:$0xff pattern:$0x73625140]
    %v67 = vpack.c.bf16 %v51, %v51
    %v68 = vpack.c.bf16 %v52, %v52
    %v69 = vpack.c.bf16 %v53, %v53
    %v70 = vpack.c.bf16 %v54, %v54
    %v71 = vpack.c.bf16 %v55, %v55
    %v72 = vpack.c.bf16 %v56, %v56
    %v73 = vpack.c.bf16 %v57, %v57
    %v74 = vpack.c.bf16 %v58, %v58
    %v75 = vld [vmem:[#allocation2] sm:$0xf]
    %v76 = vld [vmem:[#allocation2 + $0x4] sm:$0xf]
    %v77 = vld [vmem:[#allocation2 + $0x8] sm:$0xf]
    %v78 = vld [vmem:[#allocation2 + $0xc] sm:$0xf]
    %v79 = vld [vmem:[#allocation2 + $0x10] sm:$0xf]
    %v80 = vld [vmem:[#allocation2 + $0x14] sm:$0xf]
    %v81 = vld [vmem:[#allocation2 + $0x18] sm:$0xf]
    %v82 = vld [vmem:[#allocation2 + $0x1c] sm:$0xf]
    %v83 = vld [vmem:[#allocation2 + $0x20] sm:$0xf]
    %v84 = vld [vmem:[#allocation2 + $0x24] sm:$0xf]
    %v85 = vld [vmem:[#allocation2 + $0x28] sm:$0xf]
    %v86 = vld [vmem:[#allocation2 + $0x2c] sm:$0xf]
    %v87 = vld [vmem:[#allocation2 + $0x30] sm:$0xf]
    %v88 = vld [vmem:[#allocation2 + $0x34] sm:$0xf]
    %v89 = vld [vmem:[#allocation2 + $0x38] sm:$0xf]
    %v90 = vld [vmem:[#allocation2 + $0x3c] sm:$0xf]
    %v91 = vld [vmem:[#allocation2 + $0x40] sm:$0xf]
    %v92 = vld [vmem:[#allocation2 + $0x44] sm:$0xf]
    %v93 = vld [vmem:[#allocation2 + $0x48] sm:$0xf]
    %v94 = vld [vmem:[#allocation2 + $0x4c] sm:$0xf]
    %v95 = vld [vmem:[#allocation2 + $0x50] sm:$0xf]
    %v96 = vld [vmem:[#allocation2 + $0x54] sm:$0xf]
    %v97 = vld [vmem:[#allocation2 + $0x58] sm:$0xf]
    %v98 = vld [vmem:[#allocation2 + $0x5c] sm:$0xf]
    %v99 = vld [vmem:[#allocation2 + $0x60] sm:$0xf]
    %v100 = vld [vmem:[#allocation2 + $0x64] sm:$0xf]
    %v101 = vld [vmem:[#allocation2 + $0x68] sm:$0xf]
    %v102 = vld [vmem:[#allocation2 + $0x6c] sm:$0xf]
    %v103 = vld [vmem:[#allocation2 + $0x70] sm:$0xf]
    %v104 = vld [vmem:[#allocation2 + $0x74] sm:$0xf]
    %v105 = vld [vmem:[#allocation2 + $0x78] sm:$0xf]
    %v106 = vld [vmem:[#allocation2 + $0x7c] sm:$0xf]
    %v107 = vld [vmem:[#allocation2 + $0x80] sm:$0xf]
    %v108 = vld [vmem:[#allocation2 + $0x84] sm:$0xf]
    %v109 = vld [vmem:[#allocation2 + $0x88] sm:$0xf]
    %v110 = vld [vmem:[#allocation2 + $0x8c] sm:$0xf]
    %v111 = vld [vmem:[#allocation2 + $0x90] sm:$0xf]
    %v112 = vld [vmem:[#allocation2 + $0x94] sm:$0xf]
    %v113 = vld [vmem:[#allocation2 + $0x98] sm:$0xf]
    %v114 = vld [vmem:[#allocation2 + $0x9c] sm:$0xf]
    %v115 = vld [vmem:[#allocation2 + $0xa0] sm:$0xf]
    %v116 = vld [vmem:[#allocation2 + $0xa4] sm:$0xf]
    %v117 = vld [vmem:[#allocation2 + $0xa8] sm:$0xf]
    %v118 = vld [vmem:[#allocation2 + $0xac] sm:$0xf]
    %v119 = vld [vmem:[#allocation2 + $0xb0] sm:$0xf]
    %v120 = vld [vmem:[#allocation2 + $0xb4] sm:$0xf]
    %v121 = vld [vmem:[#allocation2 + $0xb8] sm:$0xf]
    %v122 = vld [vmem:[#allocation2 + $0xbc] sm:$0xf]
    %v123 = vld [vmem:[#allocation2 + $0xc0] sm:$0xf]
    %v124 = vld [vmem:[#allocation2 + $0xc4] sm:$0xf]
    %v125 = vld [vmem:[#allocation2 + $0xc8] sm:$0xf]
    %v126 = vld [vmem:[#allocation2 + $0xcc] sm:$0xf]
    %v127 = vld [vmem:[#allocation2 + $0xd0] sm:$0xf]
    %v128 = vld [vmem:[#allocation2 + $0xd4] sm:$0xf]
    %v129 = vld [vmem:[#allocation2 + $0xd8] sm:$0xf]
    %v130 = vld [vmem:[#allocation2 + $0xdc] sm:$0xf]
    %v131 = vld [vmem:[#allocation2 + $0xe0] sm:$0xf]
    %v132 = vld [vmem:[#allocation2 + $0xe4] sm:$0xf]
    %v133 = vld [vmem:[#allocation2 + $0xe8] sm:$0xf]
    %v134 = vld [vmem:[#allocation2 + $0xec] sm:$0xf]
    %v135 = vld [vmem:[#allocation2 + $0xf0] sm:$0xf]
    %v136 = vld [vmem:[#allocation2 + $0xf4] sm:$0xf]
    %v137 = vld [vmem:[#allocation2 + $0xf8] sm:$0xf]
    %v138 = vld [vmem:[#allocation2 + $0xfc] sm:$0xf]
    %v139 = vld [vmem:[#allocation2 + $0x100] sm:$0xf]
    %v140 = vld [vmem:[#allocation2 + $0x104] sm:$0xf]
    %v141 = vld [vmem:[#allocation2 + $0x108] sm:$0xf]
    %v142 = vld [vmem:[#allocation2 + $0x10c] sm:$0xf]
    %v143 = vld [vmem:[#allocation2 + $0x110] sm:$0xf]
    %v144 = vld [vmem:[#allocation2 + $0x114] sm:$0xf]
    %v145 = vld [vmem:[#allocation2 + $0x118] sm:$0xf]
    %v146 = vld [vmem:[#allocation2 + $0x11c] sm:$0xf]
    %v147 = vld [vmem:[#allocation2 + $0x120] sm:$0xf]
    %v148 = vld [vmem:[#allocation2 + $0x124] sm:$0xf]
    %v149 = vld [vmem:[#allocation2 + $0x128] sm:$0xf]
    %v150 = vld [vmem:[#allocation2 + $0x12c] sm:$0xf]
    %v151 = vld [vmem:[#allocation2 + $0x130] sm:$0xf]
    %v152 = vld [vmem:[#allocation2 + $0x134] sm:$0xf]
    %v153 = vld [vmem:[#allocation2 + $0x138] sm:$0xf]
    %v154 = vld [vmem:[#allocation2 + $0x13c] sm:$0xf]
    %v155 = vld [vmem:[#allocation2 + $0x140] sm:$0xf]
    %v156 = vld [vmem:[#allocation2 + $0x144] sm:$0xf]
    %v157 = vld [vmem:[#allocation2 + $0x148] sm:$0xf]
    %v158 = vld [vmem:[#allocation2 + $0x14c] sm:$0xf]
    %v159 = vld [vmem:[#allocation2 + $0x150] sm:$0xf]
    %v160 = vld [vmem:[#allocation2 + $0x154] sm:$0xf]
    %v161 = vld [vmem:[#allocation2 + $0x158] sm:$0xf]
    %v162 = vld [vmem:[#allocation2 + $0x15c] sm:$0xf]
    %v163 = vld [vmem:[#allocation2 + $0x160] sm:$0xf]
    %v164 = vld [vmem:[#allocation2 + $0x164] sm:$0xf]
    %v165 = vld [vmem:[#allocation2 + $0x168] sm:$0xf]
    %v166 = vld [vmem:[#allocation2 + $0x16c] sm:$0xf]
    %v167 = vld [vmem:[#allocation2 + $0x170] sm:$0xf]
    %v168 = vld [vmem:[#allocation2 + $0x174] sm:$0xf]
    %v169 = vld [vmem:[#allocation2 + $0x178] sm:$0xf]
    %v170 = vld [vmem:[#allocation2 + $0x17c] sm:$0xf]
    %v171 = vld [vmem:[#allocation2 + $0x180] sm:$0xf]
    %v172 = vld [vmem:[#allocation2 + $0x184] sm:$0xf]
    %v173 = vld [vmem:[#allocation2 + $0x188] sm:$0xf]
    %v174 = vld [vmem:[#allocation2 + $0x18c] sm:$0xf]
    %v175 = vld [vmem:[#allocation2 + $0x190] sm:$0xf]
    %v176 = vld [vmem:[#allocation2 + $0x194] sm:$0xf]
    %v177 = vld [vmem:[#allocation2 + $0x198] sm:$0xf]
    %v178 = vld [vmem:[#allocation2 + $0x19c] sm:$0xf]
    %v179 = vld [vmem:[#allocation2 + $0x1a0] sm:$0xf]
    %v180 = vld [vmem:[#allocation2 + $0x1a4] sm:$0xf]
    %v181 = vld [vmem:[#allocation2 + $0x1a8] sm:$0xf]
    %v182 = vld [vmem:[#allocation2 + $0x1ac] sm:$0xf]
    %v183 = vld [vmem:[#allocation2 + $0x1b0] sm:$0xf]
    %v184 = vld [vmem:[#allocation2 + $0x1b4] sm:$0xf]
    %v185 = vld [vmem:[#allocation2 + $0x1b8] sm:$0xf]
    %v186 = vld [vmem:[#allocation2 + $0x1bc] sm:$0xf]
    %v187 = vld [vmem:[#allocation2 + $0x1c0] sm:$0xf]
    %v188 = vld [vmem:[#allocation2 + $0x1c4] sm:$0xf]
    %v189 = vld [vmem:[#allocation2 + $0x1c8] sm:$0xf]
    %v190 = vld [vmem:[#allocation2 + $0x1cc] sm:$0xf]
    %v191 = vld [vmem:[#allocation2 + $0x1d0] sm:$0xf]
    %v192 = vld [vmem:[#allocation2 + $0x1d4] sm:$0xf]
    %v193 = vld [vmem:[#allocation2 + $0x1d8] sm:$0xf]
    %v194 = vld [vmem:[#allocation2 + $0x1dc] sm:$0xf]
    %v195 = vld [vmem:[#allocation2 + $0x1e0] sm:$0xf]
    %v196 = vld [vmem:[#allocation2 + $0x1e4] sm:$0xf]
    %v197 = vld [vmem:[#allocation2 + $0x1e8] sm:$0xf]
    %v198 = vld [vmem:[#allocation2 + $0x1ec] sm:$0xf]
    %v199 = vld [vmem:[#allocation2 + $0x1f0] sm:$0xf]
    %v200 = vld [vmem:[#allocation2 + $0x1f4] sm:$0xf]
    %v201 = vld [vmem:[#allocation2 + $0x1f8] sm:$0xf]
    %v202 = vld [vmem:[#allocation2 + $0x1fc] sm:$0xf]
    %v203 = vld [vmem:[%s2] sm:$0x1]
    %v205 = vperm.slane %v203, 0
    %v335 = vunpack.c.l.b16 %v75
    %v336 = vunpack.c.l.b16 %v76
    %v337 = vunpack.c.l.b16 %v77
    %v338 = vunpack.c.l.b16 %v78
    %v339 = vunpack.c.l.b16 %v79
    %v340 = vunpack.c.l.b16 %v80
    %v341 = vunpack.c.l.b16 %v81
    %v342 = vunpack.c.l.b16 %v82
    %v343 = vunpack.c.l.b16 %v83
    %v344 = vunpack.c.l.b16 %v84
    %v345 = vunpack.c.l.b16 %v85
    %v346 = vunpack.c.l.b16 %v86
    %v347 = vunpack.c.l.b16 %v87
    %v348 = vunpack.c.l.b16 %v88
    %v349 = vunpack.c.l.b16 %v89
    %v350 = vunpack.c.l.b16 %v90
    %v351 = vunpack.c.l.b16 %v91
    %v352 = vunpack.c.l.b16 %v92
    %v353 = vunpack.c.l.b16 %v93
    %v354 = vunpack.c.l.b16 %v94
    %v355 = vunpack.c.l.b16 %v95
    %v356 = vunpack.c.l.b16 %v96
    %v357 = vunpack.c.l.b16 %v97
    %v358 = vunpack.c.l.b16 %v98
    %v359 = vunpack.c.l.b16 %v99
    %v360 = vunpack.c.l.b16 %v100
    %v361 = vunpack.c.l.b16 %v101
    %v362 = vunpack.c.l.b16 %v102
    %v363 = vunpack.c.l.b16 %v103
    %v364 = vunpack.c.l.b16 %v104
    %v365 = vunpack.c.l.b16 %v105
    %v366 = vunpack.c.l.b16 %v106
    %v367 = vunpack.c.l.b16 %v107
    %v368 = vunpack.c.l.b16 %v108
    %v369 = vunpack.c.l.b16 %v109
    %v370 = vunpack.c.l.b16 %v110
    %v371 = vunpack.c.l.b16 %v111
    %v372 = vunpack.c.l.b16 %v112
    %v373 = vunpack.c.l.b16 %v113
    %v374 = vunpack.c.l.b16 %v114
    %v375 = vunpack.c.l.b16 %v115
    %v376 = vunpack.c.l.b16 %v116
    %v377 = vunpack.c.l.b16 %v117
    %v378 = vunpack.c.l.b16 %v118
    %v379 = vunpack.c.l.b16 %v119
    %v380 = vunpack.c.l.b16 %v120
    %v381 = vunpack.c.l.b16 %v121
    %v382 = vunpack.c.l.b16 %v122
    %v383 = vunpack.c.l.b16 %v123
    %v384 = vunpack.c.l.b16 %v124
    %v385 = vunpack.c.l.b16 %v125
    %v386 = vunpack.c.l.b16 %v126
    %v387 = vunpack.c.l.b16 %v127
    %v388 = vunpack.c.l.b16 %v128
    %v389 = vunpack.c.l.b16 %v129
    %v390 = vunpack.c.l.b16 %v130
    %v391 = vunpack.c.l.b16 %v131
    %v392 = vunpack.c.l.b16 %v132
    %v393 = vunpack.c.l.b16 %v133
    %v394 = vunpack.c.l.b16 %v134
    %v395 = vunpack.c.l.b16 %v135
    %v396 = vunpack.c.l.b16 %v136
    %v397 = vunpack.c.l.b16 %v137
    %v398 = vunpack.c.l.b16 %v138
    %v399 = vunpack.c.l.b16 %v139
    %v400 = vunpack.c.l.b16 %v140
    %v401 = vunpack.c.l.b16 %v141
    %v402 = vunpack.c.l.b16 %v142
    %v403 = vunpack.c.l.b16 %v143
    %v404 = vunpack.c.l.b16 %v144
    %v405 = vunpack.c.l.b16 %v145
    %v406 = vunpack.c.l.b16 %v146
    %v407 = vunpack.c.l.b16 %v147
    %v408 = vunpack.c.l.b16 %v148
    %v409 = vunpack.c.l.b16 %v149
    %v410 = vunpack.c.l.b16 %v150
    %v411 = vunpack.c.l.b16 %v151
    %v412 = vunpack.c.l.b16 %v152
    %v413 = vunpack.c.l.b16 %v153
    %v414 = vunpack.c.l.b16 %v154
    %v415 = vunpack.c.l.b16 %v155
    %v416 = vunpack.c.l.b16 %v156
    %v417 = vunpack.c.l.b16 %v157
    %v418 = vunpack.c.l.b16 %v158
    %v419 = vunpack.c.l.b16 %v159
    %v420 = vunpack.c.l.b16 %v160
    %v421 = vunpack.c.l.b16 %v161
    %v422 = vunpack.c.l.b16 %v162
    %v423 = vunpack.c.l.b16 %v163
    %v424 = vunpack.c.l.b16 %v164
    %v425 = vunpack.c.l.b16 %v165
    %v426 = vunpack.c.l.b16 %v166
    %v427 = vunpack.c.l.b16 %v167
    %v428 = vunpack.c.l.b16 %v168
    %v429 = vunpack.c.l.b16 %v169
    %v430 = vunpack.c.l.b16 %v170
    %v431 = vunpack.c.l.b16 %v171
    %v432 = vunpack.c.l.b16 %v172
    %v433 = vunpack.c.l.b16 %v173
    %v434 = vunpack.c.l.b16 %v174
    %v435 = vunpack.c.l.b16 %v175
    %v436 = vunpack.c.l.b16 %v176
    %v437 = vunpack.c.l.b16 %v177
    %v438 = vunpack.c.l.b16 %v178
    %v439 = vunpack.c.l.b16 %v179
    %v440 = vunpack.c.l.b16 %v180
    %v441 = vunpack.c.l.b16 %v181
    %v442 = vunpack.c.l.b16 %v182
    %v443 = vunpack.c.l.b16 %v183
    %v444 = vunpack.c.l.b16 %v184
    %v445 = vunpack.c.l.b16 %v185
    %v446 = vunpack.c.l.b16 %v186
    %v447 = vunpack.c.l.b16 %v187
    %v448 = vunpack.c.l.b16 %v188
    %v449 = vunpack.c.l.b16 %v189
    %v450 = vunpack.c.l.b16 %v190
    %v451 = vunpack.c.l.b16 %v191
    %v452 = vunpack.c.l.b16 %v192
    %v453 = vunpack.c.l.b16 %v193
    %v454 = vunpack.c.l.b16 %v194
    %v455 = vunpack.c.l.b16 %v195
    %v456 = vunpack.c.l.b16 %v196
    %v457 = vunpack.c.l.b16 %v197
    %v458 = vunpack.c.l.b16 %v198
    %v459 = vunpack.c.l.b16 %v199
    %v460 = vunpack.c.l.b16 %v200
    %v461 = vunpack.c.l.b16 %v201
    %v462 = vunpack.c.l.b16 %v202
    %v463 = vpack.c.b16 %v336, %v335
    %v464 = vpack.c.b16 %v338, %v337
    %v465 = vpack.c.b16 %v340, %v339
    %v466 = vpack.c.b16 %v342, %v341
    %v467 = vpack.c.b16 %v344, %v343
    %v468 = vpack.c.b16 %v346, %v345
    %v469 = vpack.c.b16 %v348, %v347
    %v470 = vpack.c.b16 %v350, %v349
    %v471 = vpack.c.b16 %v352, %v351
    %v472 = vpack.c.b16 %v354, %v353
    %v473 = vpack.c.b16 %v356, %v355
    %v474 = vpack.c.b16 %v358, %v357
    %v475 = vpack.c.b16 %v360, %v359
    %v476 = vpack.c.b16 %v362, %v361
    %v477 = vpack.c.b16 %v364, %v363
    %v478 = vpack.c.b16 %v366, %v365
    %v479 = vpack.c.b16 %v368, %v367
    %v480 = vpack.c.b16 %v370, %v369
    %v481 = vpack.c.b16 %v372, %v371
    %v482 = vpack.c.b16 %v374, %v373
    %v483 = vpack.c.b16 %v376, %v375
    %v484 = vpack.c.b16 %v378, %v377
    %v485 = vpack.c.b16 %v380, %v379
    %v486 = vpack.c.b16 %v382, %v381
    %v487 = vpack.c.b16 %v384, %v383
    %v488 = vpack.c.b16 %v386, %v385
    %v489 = vpack.c.b16 %v388, %v387
    %v490 = vpack.c.b16 %v390, %v389
    %v491 = vpack.c.b16 %v392, %v391
    %v492 = vpack.c.b16 %v394, %v393
    %v493 = vpack.c.b16 %v396, %v395
    %v494 = vpack.c.b16 %v398, %v397
    %v495 = vpack.c.b16 %v400, %v399
    %v496 = vpack.c.b16 %v402, %v401
    %v497 = vpack.c.b16 %v404, %v403
    %v498 = vpack.c.b16 %v406, %v405
    %v499 = vpack.c.b16 %v408, %v407
    %v500 = vpack.c.b16 %v410, %v409
    %v501 = vpack.c.b16 %v412, %v411
    %v502 = vpack.c.b16 %v414, %v413
    %v503 = vpack.c.b16 %v416, %v415
    %v504 = vpack.c.b16 %v418, %v417
    %v505 = vpack.c.b16 %v420, %v419
    %v506 = vpack.c.b16 %v422, %v421
    %v507 = vpack.c.b16 %v424, %v423
    %v508 = vpack.c.b16 %v426, %v425
    %v509 = vpack.c.b16 %v428, %v427
    %v510 = vpack.c.b16 %v430, %v429
    %v511 = vpack.c.b16 %v432, %v431
    %v512 = vpack.c.b16 %v434, %v433
    %v513 = vpack.c.b16 %v436, %v435
    %v514 = vpack.c.b16 %v438, %v437
    %v515 = vpack.c.b16 %v440, %v439
    %v516 = vpack.c.b16 %v442, %v441
    %v517 = vpack.c.b16 %v444, %v443
    %v518 = vpack.c.b16 %v446, %v445
    %v519 = vpack.c.b16 %v448, %v447
    %v520 = vpack.c.b16 %v450, %v449
    %v521 = vpack.c.b16 %v452, %v451
    %v522 = vpack.c.b16 %v454, %v453
    %v523 = vpack.c.b16 %v456, %v455
    %v524 = vpack.c.b16 %v458, %v457
    %v525 = vpack.c.b16 %v460, %v459
    %v526 = vpack.c.b16 %v462, %v461
    %591 = vmatpush.bf16.msra.mxu0 %v470
    %592 = vmatpush.bf16.msra.mxu0 %v469
    %593 = vmatpush.bf16.msra.mxu0 %v468
    %594 = vmatpush.bf16.msra.mxu0 %v467
    %595 = vmatpush.bf16.msra.mxu0 %v466
    %596 = vmatpush.bf16.msra.mxu0 %v465
    %597 = vmatpush.bf16.msra.mxu0 %v464
    %598 = vmatpush.bf16.msra.mxu0 %v463
    %599 = vmatmul.bf16.gmra.mxu0 %v67
    %v600 = vpop.f32.mrf.mxu0
    %v601 = vadd.f32 %v205, %v600
    %v602 = vpop.f32.mrf.mxu0
    %603 = vdwg.mxu0
    %604 = vmatpush.bf16.msra.mxu0 %v478
    %605 = vmatpush.bf16.msra.mxu0 %v477
    %606 = vmatpush.bf16.msra.mxu0 %v476
    %607 = vmatpush.bf16.msra.mxu0 %v475
    %608 = vmatpush.bf16.msra.mxu0 %v474
    %609 = vmatpush.bf16.msra.mxu0 %v473
    %610 = vmatpush.bf16.msra.mxu0 %v472
    %611 = vmatpush.bf16.msra.mxu0 %v471
    %612 = vmatmul.bf16.gmra.mxu0 %v68
    %v613 = vpop.f32.mrf.mxu0
    %v614 = vadd.f32 %v601, %v613
    %v615 = vpop.f32.mrf.mxu0
    %616 = vdwg.mxu0
    %617 = vmatpush.bf16.msra.mxu0 %v486
    %618 = vmatpush.bf16.msra.mxu0 %v485
    %619 = vmatpush.bf16.msra.mxu0 %v484
    %620 = vmatpush.bf16.msra.mxu0 %v483
    %621 = vmatpush.bf16.msra.mxu0 %v482
    %622 = vmatpush.bf16.msra.mxu0 %v481
    %623 = vmatpush.bf16.msra.mxu0 %v480
    %624 = vmatpush.bf16.msra.mxu0 %v479
    %625 = vmatmul.bf16.gmra.mxu0 %v69
    %v626 = vpop.f32.mrf.mxu0
    %v627 = vadd.f32 %v614, %v626
    %v628 = vpop.f32.mrf.mxu0
    %629 = vdwg.mxu0
    %630 = vmatpush.bf16.msra.mxu0 %v494
    %631 = vmatpush.bf16.msra.mxu0 %v493
    %632 = vmatpush.bf16.msra.mxu0 %v492
    %633 = vmatpush.bf16.msra.mxu0 %v491
    %634 = vmatpush.bf16.msra.mxu0 %v490
    %635 = vmatpush.bf16.msra.mxu0 %v489
    %636 = vmatpush.bf16.msra.mxu0 %v488
    %637 = vmatpush.bf16.msra.mxu0 %v487
    %638 = vmatmul.bf16.gmra.mxu0 %v70
    %v639 = vpop.f32.mrf.mxu0
    %v640 = vadd.f32 %v627, %v639
    %v641 = vpop.f32.mrf.mxu0
    %642 = vdwg.mxu0
    %643 = vmatpush.bf16.msra.mxu0 %v502
    %644 = vmatpush.bf16.msra.mxu0 %v501
    %645 = vmatpush.bf16.msra.mxu0 %v500
    %646 = vmatpush.bf16.msra.mxu0 %v499
    %647 = vmatpush.bf16.msra.mxu0 %v498
    %648 = vmatpush.bf16.msra.mxu0 %v497
    %649 = vmatpush.bf16.msra.mxu0 %v496
    %650 = vmatpush.bf16.msra.mxu0 %v495
    %651 = vmatmul.bf16.gmra.mxu0 %v71
    %v652 = vpop.f32.mrf.mxu0
    %v653 = vadd.f32 %v640, %v652
    %v654 = vpop.f32.mrf.mxu0
    %655 = vdwg.mxu0
    %656 = vmatpush.bf16.msra.mxu0 %v510
    %657 = vmatpush.bf16.msra.mxu0 %v509
    %658 = vmatpush.bf16.msra.mxu0 %v508
    %659 = vmatpush.bf16.msra.mxu0 %v507
    %660 = vmatpush.bf16.msra.mxu0 %v506
    %661 = vmatpush.bf16.msra.mxu0 %v505
    %662 = vmatpush.bf16.msra.mxu0 %v504
    %663 = vmatpush.bf16.msra.mxu0 %v503
    %664 = vmatmul.bf16.gmra.mxu0 %v72
    %v665 = vpop.f32.mrf.mxu0
    %v666 = vadd.f32 %v653, %v665
    %v667 = vpop.f32.mrf.mxu0
    %668 = vdwg.mxu0
    %669 = vmatpush.bf16.msra.mxu0 %v518
    %670 = vmatpush.bf16.msra.mxu0 %v517
    %671 = vmatpush.bf16.msra.mxu0 %v516
    %672 = vmatpush.bf16.msra.mxu0 %v515
    %673 = vmatpush.bf16.msra.mxu0 %v514
    %674 = vmatpush.bf16.msra.mxu0 %v513
    %675 = vmatpush.bf16.msra.mxu0 %v512
    %676 = vmatpush.bf16.msra.mxu0 %v511
    %677 = vmatmul.bf16.gmra.mxu0 %v73
    %v678 = vpop.f32.mrf.mxu0
    %v679 = vadd.f32 %v666, %v678
    %v680 = vpop.f32.mrf.mxu0
    %681 = vdwg.mxu0
    %682 = vmatpush.bf16.msra.mxu0 %v526
    %683 = vmatpush.bf16.msra.mxu0 %v525
    %684 = vmatpush.bf16.msra.mxu0 %v524
    %685 = vmatpush.bf16.msra.mxu0 %v523
    %686 = vmatpush.bf16.msra.mxu0 %v522
    %687 = vmatpush.bf16.msra.mxu0 %v521
    %688 = vmatpush.bf16.msra.mxu0 %v520
    %689 = vmatpush.bf16.msra.mxu0 %v519
    %690 = vmatmul.bf16.gmra.mxu0 %v74
    %v691 = vpop.f32.mrf.mxu0
    %v692 = vadd.f32 %v679, %v691
    %v693 = vpop.f32.mrf.mxu0
    %694 = vdwg.mxu0
    %v695 = vmax.f32 %v692, 0.0
    %v696 = vpack.c.bf16 %v695, %v695
    %v697 = vld [vmem:[%s3] sm:$0xf]
    %v698 = vld [vmem:[%s3 + $0x4] sm:$0xf]
    %v699 = vld [vmem:[%s3 + $0x8] sm:$0xf]
    %v700 = vld [vmem:[%s3 + $0xc] sm:$0xf]
    %v701 = vld [vmem:[%s3 + $0x10] sm:$0xf]
    %v702 = vld [vmem:[%s3 + $0x14] sm:$0xf]
    %v703 = vld [vmem:[%s3 + $0x18] sm:$0xf]
    %v704 = vld [vmem:[%s3 + $0x1c] sm:$0xf]
    %v705 = vld [vmem:[%s3 + $0x20] sm:$0xf]
    %v706 = vld [vmem:[%s3 + $0x24] sm:$0xf]
    %v707 = vld [vmem:[%s3 + $0x28] sm:$0xf]
    %v708 = vld [vmem:[%s3 + $0x2c] sm:$0xf]
    %v709 = vld [vmem:[%s3 + $0x30] sm:$0xf]
    %v710 = vld [vmem:[%s3 + $0x34] sm:$0xf]
    %v711 = vld [vmem:[%s3 + $0x38] sm:$0xf]
    %v712 = vld [vmem:[%s3 + $0x3c] sm:$0xf]
    %v713 = vld [vmem:[%s4] sm:$0x1]
    %v715 = vperm.slane %v713, 0
    %v733 = vunpack.c.l.b16 %v697
    %v734 = vunpack.c.l.b16 %v698
    %v735 = vunpack.c.l.b16 %v699
    %v736 = vunpack.c.l.b16 %v700
    %v737 = vunpack.c.l.b16 %v701
    %v738 = vunpack.c.l.b16 %v702
    %v739 = vunpack.c.l.b16 %v703
    %v740 = vunpack.c.l.b16 %v704
    %v741 = vunpack.c.l.b16 %v705
    %v742 = vunpack.c.l.b16 %v706
    %v743 = vunpack.c.l.b16 %v707
    %v744 = vunpack.c.l.b16 %v708
    %v745 = vunpack.c.l.b16 %v709
    %v746 = vunpack.c.l.b16 %v710
    %v747 = vunpack.c.l.b16 %v711
    %v748 = vunpack.c.l.b16 %v712
    %v749 = vpack.c.b16 %v734, %v733
    %v750 = vpack.c.b16 %v736, %v735
    %v751 = vpack.c.b16 %v738, %v737
    %v752 = vpack.c.b16 %v740, %v739
    %v753 = vpack.c.b16 %v742, %v741
    %v754 = vpack.c.b16 %v744, %v743
    %v755 = vpack.c.b16 %v746, %v745
    %v756 = vpack.c.b16 %v748, %v747
    %765 = vmatpush.bf16.msra.mxu0 %v756
    %766 = vmatpush.bf16.msra.mxu0 %v755
    %767 = vmatpush.bf16.msra.mxu0 %v754
    %768 = vmatpush.bf16.msra.mxu0 %v753
    %769 = vmatpush.bf16.msra.mxu0 %v752
    %770 = vmatpush.bf16.msra.mxu0 %v751
    %771 = vmatpush.bf16.msra.mxu0 %v750
    %772 = vmatpush.bf16.msra.mxu0 %v749
    %773 = vmatmul.bf16.gmra.mxu0 %v696
    %v774 = vpop.f32.mrf.mxu0
    %v775 = vadd.f32 %v715, %v774
    %v776 = vpop.f32.mrf.mxu0
    %777 = vdwg.mxu0
    %v778 = vmax.f32 %v775, 0.0
    %v779 = vpack.c.bf16 %v778, %v778
    %v780 = vld [vmem:[%s5] sm:$0xf]
    %v781 = vld [vmem:[%s5 + $0x4] sm:$0xf]
    %v782 = vld [vmem:[%s5 + $0x8] sm:$0xf]
    %v783 = vld [vmem:[%s5 + $0xc] sm:$0xf]
    %v784 = vld [vmem:[%s5 + $0x10] sm:$0xf]
    %v785 = vld [vmem:[%s5 + $0x14] sm:$0xf]
    %v786 = vld [vmem:[%s5 + $0x18] sm:$0xf]
    %v787 = vld [vmem:[%s5 + $0x1c] sm:$0xf]
    %v788 = vld [vmem:[%s6] sm:$0x1]
    %v790 = vperm.slane %v788, 0
    %v800 = vunpack.c.l.b16 %v780
    %v801 = vunpack.c.l.b16 %v781
    %v802 = vunpack.c.l.b16 %v782
    %v803 = vunpack.c.l.b16 %v783
    %v804 = vunpack.c.l.b16 %v784
    %v805 = vunpack.c.l.b16 %v785
    %v806 = vunpack.c.l.b16 %v786
    %v807 = vunpack.c.l.b16 %v787
    %v808 = vpack.c.b16 %v801, %v800
    %v809 = vpack.c.b16 %v803, %v802
    %v810 = vpack.c.b16 %v805, %v804
    %v811 = vpack.c.b16 %v807, %v806
    %vm816 = vcmask 523264
    %v818 = vsel %vm816, %v779, 0
    %820 = vmatpush.bf16.msra.mxu0 0
    %821 = vmatpush.bf16.msra.mxu0 0
    %822 = vmatpush.bf16.msra.mxu0 0
    %823 = vmatpush.bf16.msra.mxu0 0
    %824 = vmatpush.bf16.msra.mxu0 %v811
    %825 = vmatpush.bf16.msra.mxu0 %v810
    %826 = vmatpush.bf16.msra.mxu0 %v809
    %827 = vmatpush.bf16.msra.mxu0 %v808
    %828 = vmatmul.bf16.gmra.mxu0 %v818
    %v829 = vpop.f32.mrf.mxu0
    %v830 = vadd.f32 %v790, %v829
    %v831 = vpop.f32.mrf.mxu0
    %832 = vdwg.mxu0
    %vm833 = vcmask 9216
    %v834 = vsel %vm833, %v830, -inf
    %835 = vmax.xlane.f32.xlu0 %v834
    %v836 = vpop.xlane.xlu0 %835
    %v837 = vsub.f32 %v830, %v836
    %v838 = vmul.f32 %v837, 1.442695
    %v839 = vpow.pop %v838
    %v840 = vsel %vm833, %v839, 0.0
    %841 = vadd.xlane.f32.xlu0 %v840
    %v842 = vpop.xlane.xlu0 %841
    %v843 = vrcp.pop %v842
    %v844 = vmul.f32 %v842, %v843
    %v845 = vsub.f32 1.0, %v844
    %v846 = vmul.f32 %v843, %v845
    %v847 = vadd.f32 %v843, %v846
    %vm848 = vweird.f32 %v842
    %vm849 = vweird.f32 %v843
    %vm850 = vmor %vm848, %vm849
    %v851 = vsel %vm850, %v843, %v847
    %v852 = vand.u32 2147483647, %v842
    %vm853 = vcmp.eq.f32.partialorder %v852, 8.507059e+37
    %v854 = vand.u32 %v842, 2147483648
    %v855 = vor.u32 1.1754944e-38, %v854
    %v856 = vsel %vm853, %v855, %v851
    %v857 = vmul.f32 %v839, %v856
    %858 = vst.msk [vmem:[#allocation5] sm:$0x3] %vm833, %v857
    // Predicated region
    $region34: #{onedconv_encoder_forward.3} parent=1 // pred_check
      _
    $region35: #{onedconv_encoder_forward.3} parent=1 // pred_check_branch
      %860 = sbr.rel (0) target = $region37
    $region36: #{onedconv_encoder_forward.3} parent=1 // pred_region
      %862 = vsyncadd [#allocation4], 0
      %s864 = sshll.u32 [#allocation5], 4
      %s865 = int_to_ptr.vmem [resolvable:$true] %s864
      %s866 = sshll.u32 %s7, 4
      %s867 = int_to_ptr.hbm [resolvable:$true] %s866
      %869 = dma.vmem_to_hbm [thread:$0]  %s865, 32, %s867, [#allocation4]
    $region37: #{onedconv_encoder_forward.3} parent=1 // pred_fallthru
      _
    // Predicated region
    $region38: #{onedconv_encoder_forward.3} parent=1 // pred_check
      _
    $region39: #{onedconv_encoder_forward.3} parent=1 // pred_check_branch
      %871 = sbr.rel (0) target = $region41
    $region40: #{onedconv_encoder_forward.3} parent=1 // pred_region
      %873 = dma.done [#allocation4], 32
    $region41: #{onedconv_encoder_forward.3} parent=1 // pred_fallthru
      _
    %874 = vsyncpa [#allocation3], 1
    %875 = vsyncpa [#allocation4], 1

// kernel: onedconv_encoder_forward.2
$region0: #{onedconv_encoder_forward.2}
  #allocation0 [shape = 'u32[]', space=smem, size = 0x4, offset = 0x4, fixed_abs, tag = 'smem constant byte address 0x4 - core index']
  #allocation1 [shape = 'u32[72,128]{1,0:T(1,128)}', space=vmem, size = 0x9000, scoped, tag = 'internal scratch']
  #allocation2 [shape = 'f32[134,16]{1,0:T(8,128)}', space=vmem, size = 0x11000, scoped, tag = 'scratch operand']
  #allocation3 [shape = 'f32[128,80]{1,0:T(8,128)}', space=vmem, size = 0x10000, scoped, tag = 'scratch operand']
  %s0 = inlined_call_operand.vmem [shape: f32[2,128,1], index: 0, kind: input, shape index: {}]
  %s1 = inlined_call_operand.vmem [shape: bf16[7,8], index: 1, kind: input, shape index: {}]
  %s2 = inlined_call_operand.vmem [shape: f32[1,8], index: 2, kind: input, shape index: {}]
  %s3 = inlined_call_operand.vmem [shape: f32[1,8], index: 3, kind: input, shape index: {}]
  %s4 = inlined_call_operand.vmem [shape: bf16[40,8], index: 4, kind: input, shape index: {}]
  %s5 = inlined_call_operand.vmem [shape: f32[1,8], index: 5, kind: input, shape index: {}]
  %s6 = inlined_call_operand.vmem [shape: f32[1,8], index: 6, kind: input, shape index: {}]
  %s7 = inlined_call_operand.vmem [shape: bf16[56,16], index: 7, kind: input, shape index: {}]
  %s8 = inlined_call_operand.vmem [shape: f32[1,16], index: 8, kind: input, shape index: {}]
  %s9 = inlined_call_operand.vmem [shape: f32[1,16], index: 9, kind: input, shape index: {}]
  %s10 = inlined_call_operand.vmem [shape: bf16[80,16], index: 10, kind: input, shape index: {}]
  %s11 = inlined_call_operand.vmem [shape: f32[1,16], index: 11, kind: input, shape index: {}]
  %s12 = inlined_call_operand.vmem [shape: f32[1,16], index: 12, kind: input, shape index: {}]
  %s13 = inlined_call_operand.vmem [shape: f32[2,64,16], index: 13, kind: output, shape index: {}]
  %s14 = sld [smem:[#allocation0]]
  $region85: #{onedconv_encoder_forward.2} parent=0
    _
  %s16 = ssub.s32 1, %s14
  %s17 = scalar_select 0, %s16, %s14
  loop: start=0, step=1, limit=4
  $region2: #{onedconv_encoder_forward.2} parent=0 // loop_pre_header
    _
  $region3: #{onedconv_encoder_forward.2} parent=0 // loop_header
    %s19 = sphi 0, %s23
    %p20 = scmp.ge.s32.totalorder %s19, 4
    %s29 = sphi 0, %s31
    %s32 = sphi 0, %s29
    %s33 = sphi 0, %s32
    %s49 = sphi 0, %s33
    %s53 = sphi 0, %s53
    %s55 = sphi 0, %s53
    %s56 = sphi 0, %s55
    %s70 = sphi 0, %s56
    %s74 = sphi 0, %s74
    %s76 = sphi 0, %s74
    %s77 = sphi 0, %s76
    %s91 = sphi 0, %s77
    %s95 = sphi 0, %s95
    %s97 = sphi 0, %s95
    %s98 = sphi 0, %s97
    %s112 = sphi 0, %s98
    %s116 = sphi 0, %s116
    %s118 = sphi 0, %s116
    %s119 = sphi 0, %s118
    %s133 = sphi 0, %s119
    %s137 = sphi 0, %s137
    %s139 = sphi 0, %s137
    %s140 = sphi 0, %s139
    %s154 = sphi 0, %s140
    %s158 = sphi 0, %s158
    %s160 = sphi 0, %s158
    %s161 = sphi 0, %s160
    %s175 = sphi 0, %s161
    %s179 = sphi 0, %s179
    %s181 = sphi 0, %s179
    %s182 = sphi 0, %s181
    %s196 = sphi 0, %s182
    %s200 = sphi 0, %s200
    %s202 = sphi 0, %s200
    %s203 = sphi 0, %s202
    %s217 = sphi 0, %s203
    %s221 = sphi 0, %s221
    %s223 = sphi 0, %s221
    %s224 = sphi 0, %s223
    %s238 = sphi 0, %s224
    %s242 = sphi 0, %s242
    %s244 = sphi 0, %s242
    %s245 = sphi 0, %s244
    %s259 = sphi 0, %s245
    %s263 = sphi 0, %s263
    %s265 = sphi 0, %s263
    %s266 = sphi 0, %s265
    %s280 = sphi 0, %s266
    %s284 = sphi 0, %s284
    %s286 = sphi 0, %s284
    %s287 = sphi 0, %s286
    %s301 = sphi 0, %s287
    %s307 = sphi 0, %s309
    %s310 = sphi 0, %s307
    %s311 = sphi 0, %s310
    %s327 = sphi 0, %s311
  $region4: #{onedconv_encoder_forward.2} parent=0 // loop_header_branch
    %22 = sbr.rel (%p20) target = $region8
  $region5: #{onedconv_encoder_forward.2} parent=0 // loop_body
    %s24 = ssub.s32 %s19, 1
    %s25 = ssub.s32 %s19, 2
    %s26 = sadd.s32 %s19, 1
    %s27 = ssub.s32 %s19, %s26
    %p28 = scmp.eq.s32.totalorder %s27, 0
    %s30 = sadd.s32 %s29, 1
    %s31 = scalar_select %p28, %s29, %s30
    %p34 = pneg %p28
    %p35 = scmp.eq.s32.totalorder %s19, 1
    %p36 = por %p34, %p35
    %p37 = scmp.ne.s32.totalorder %s29, %s32
    %p38 = scmp.eq.s32.totalorder %s19, 0
    %p39 = por %p37, %p38
    %p40 = scmp.ne.s32.totalorder %s29, %s32
    %p41 = scmp.eq.s32.totalorder %s24, 1
    %p42 = por %p40, %p41
    %p43 = scmp.ne.s32.totalorder %s32, %s33
    %p44 = scmp.eq.s32.totalorder %s24, 0
    %p45 = por %p43, %p44
    %p46 = scmp.ne.s32.totalorder %s32, %s33
    %p47 = scmp.eq.s32.totalorder %s25, 1
    %p48 = por %p46, %p47
    %p50 = scmp.ne.s32.totalorder %s33, %s49
    %p51 = scmp.eq.s32.totalorder %s25, 0
    %p52 = por %p50, %p51
    %s54 = sadd.s32 %s53, 1
    %p57 = scmp.eq.s32.totalorder %s19, 1
    %p58 = scmp.ne.s32.totalorder %s53, %s55
    %p59 = scmp.eq.s32.totalorder %s19, 0
    %p60 = por %p58, %p59
    %p61 = scmp.ne.s32.totalorder %s53, %s55
    %p62 = scmp.eq.s32.totalorder %s24, 1
    %p63 = por %p61, %p62
    %p64 = scmp.ne.s32.totalorder %s55, %s56
    %p65 = scmp.eq.s32.totalorder %s24, 0
    %p66 = por %p64, %p65
    %p67 = scmp.ne.s32.totalorder %s55, %s56
    %p68 = scmp.eq.s32.totalorder %s25, 1
    %p69 = por %p67, %p68
    %p71 = scmp.ne.s32.totalorder %s56, %s70
    %p72 = scmp.eq.s32.totalorder %s25, 0
    %p73 = por %p71, %p72
    %s75 = sadd.s32 %s74, 1
    %p78 = scmp.eq.s32.totalorder %s19, 1
    %p79 = scmp.ne.s32.totalorder %s74, %s76
    %p80 = scmp.eq.s32.totalorder %s19, 0
    %p81 = por %p79, %p80
    %p82 = scmp.ne.s32.totalorder %s74, %s76
    %p83 = scmp.eq.s32.totalorder %s24, 1
    %p84 = por %p82, %p83
    %p85 = scmp.ne.s32.totalorder %s76, %s77
    %p86 = scmp.eq.s32.totalorder %s24, 0
    %p87 = por %p85, %p86
    %p88 = scmp.ne.s32.totalorder %s76, %s77
    %p89 = scmp.eq.s32.totalorder %s25, 1
    %p90 = por %p88, %p89
    %p92 = scmp.ne.s32.totalorder %s77, %s91
    %p93 = scmp.eq.s32.totalorder %s25, 0
    %p94 = por %p92, %p93
    %s96 = sadd.s32 %s95, 1
    %p99 = scmp.eq.s32.totalorder %s19, 1
    %p100 = scmp.ne.s32.totalorder %s95, %s97
    %p101 = scmp.eq.s32.totalorder %s19, 0
    %p102 = por %p100, %p101
    %p103 = scmp.ne.s32.totalorder %s95, %s97
    %p104 = scmp.eq.s32.totalorder %s24, 1
    %p105 = por %p103, %p104
    %p106 = scmp.ne.s32.totalorder %s97, %s98
    %p107 = scmp.eq.s32.totalorder %s24, 0
    %p108 = por %p106, %p107
    %p109 = scmp.ne.s32.totalorder %s97, %s98
    %p110 = scmp.eq.s32.totalorder %s25, 1
    %p111 = por %p109, %p110
    %p113 = scmp.ne.s32.totalorder %s98, %s112
    %p114 = scmp.eq.s32.totalorder %s25, 0
    %p115 = por %p113, %p114
    %s117 = sadd.s32 %s116, 1
    %p120 = scmp.eq.s32.totalorder %s19, 1
    %p121 = scmp.ne.s32.totalorder %s116, %s118
    %p122 = scmp.eq.s32.totalorder %s19, 0
    %p123 = por %p121, %p122
    %p124 = scmp.ne.s32.totalorder %s116, %s118
    %p125 = scmp.eq.s32.totalorder %s24, 1
    %p126 = por %p124, %p125
    %p127 = scmp.ne.s32.totalorder %s118, %s119
    %p128 = scmp.eq.s32.totalorder %s24, 0
    %p129 = por %p127, %p128
    %p130 = scmp.ne.s32.totalorder %s118, %s119
    %p131 = scmp.eq.s32.totalorder %s25, 1
    %p132 = por %p130, %p131
    %p134 = scmp.ne.s32.totalorder %s119, %s133
    %p135 = scmp.eq.s32.totalorder %s25, 0
    %p136 = por %p134, %p135
    %s138 = sadd.s32 %s137, 1
    %p141 = scmp.eq.s32.totalorder %s19, 1
    %p142 = scmp.ne.s32.totalorder %s137, %s139
    %p143 = scmp.eq.s32.totalorder %s19, 0
    %p144 = por %p142, %p143
    %p145 = scmp.ne.s32.totalorder %s137, %s139
    %p146 = scmp.eq.s32.totalorder %s24, 1
    %p147 = por %p145, %p146
    %p148 = scmp.ne.s32.totalorder %s139, %s140
    %p149 = scmp.eq.s32.totalorder %s24, 0
    %p150 = por %p148, %p149
    %p151 = scmp.ne.s32.totalorder %s139, %s140
    %p152 = scmp.eq.s32.totalorder %s25, 1
    %p153 = por %p151, %p152
    %p155 = scmp.ne.s32.totalorder %s140, %s154
    %p156 = scmp.eq.s32.totalorder %s25, 0
    %p157 = por %p155, %p156
    %s159 = sadd.s32 %s158, 1
    %p162 = scmp.eq.s32.totalorder %s19, 1
    %p163 = scmp.ne.s32.totalorder %s158, %s160
    %p164 = scmp.eq.s32.totalorder %s19, 0
    %p165 = por %p163, %p164
    %p166 = scmp.ne.s32.totalorder %s158, %s160
    %p167 = scmp.eq.s32.totalorder %s24, 1
    %p168 = por %p166, %p167
    %p169 = scmp.ne.s32.totalorder %s160, %s161
    %p170 = scmp.eq.s32.totalorder %s24, 0
    %p171 = por %p169, %p170
    %p172 = scmp.ne.s32.totalorder %s160, %s161
    %p173 = scmp.eq.s32.totalorder %s25, 1
    %p174 = por %p172, %p173
    %p176 = scmp.ne.s32.totalorder %s161, %s175
    %p177 = scmp.eq.s32.totalorder %s25, 0
    %p178 = por %p176, %p177
    %s180 = sadd.s32 %s179, 1
    %p183 = scmp.eq.s32.totalorder %s19, 1
    %p184 = scmp.ne.s32.totalorder %s179, %s181
    %p185 = scmp.eq.s32.totalorder %s19, 0
    %p186 = por %p184, %p185
    %p187 = scmp.ne.s32.totalorder %s179, %s181
    %p188 = scmp.eq.s32.totalorder %s24, 1
    %p189 = por %p187, %p188
    %p190 = scmp.ne.s32.totalorder %s181, %s182
    %p191 = scmp.eq.s32.totalorder %s24, 0
    %p192 = por %p190, %p191
    %p193 = scmp.ne.s32.totalorder %s181, %s182
    %p194 = scmp.eq.s32.totalorder %s25, 1
    %p195 = por %p193, %p194
    %p197 = scmp.ne.s32.totalorder %s182, %s196
    %p198 = scmp.eq.s32.totalorder %s25, 0
    %p199 = por %p197, %p198
    %s201 = sadd.s32 %s200, 1
    %p204 = scmp.eq.s32.totalorder %s19, 1
    %p205 = scmp.ne.s32.totalorder %s200, %s202
    %p206 = scmp.eq.s32.totalorder %s19, 0
    %p207 = por %p205, %p206
    %p208 = scmp.ne.s32.totalorder %s200, %s202
    %p209 = scmp.eq.s32.totalorder %s24, 1
    %p210 = por %p208, %p209
    %p211 = scmp.ne.s32.totalorder %s202, %s203
    %p212 = scmp.eq.s32.totalorder %s24, 0
    %p213 = por %p211, %p212
    %p214 = scmp.ne.s32.totalorder %s202, %s203
    %p215 = scmp.eq.s32.totalorder %s25, 1
    %p216 = por %p214, %p215
    %p218 = scmp.ne.s32.totalorder %s203, %s217
    %p219 = scmp.eq.s32.totalorder %s25, 0
    %p220 = por %p218, %p219
    %s222 = sadd.s32 %s221, 1
    %p225 = scmp.eq.s32.totalorder %s19, 1
    %p226 = scmp.ne.s32.totalorder %s221, %s223
    %p227 = scmp.eq.s32.totalorder %s19, 0
    %p228 = por %p226, %p227
    %p229 = scmp.ne.s32.totalorder %s221, %s223
    %p230 = scmp.eq.s32.totalorder %s24, 1
    %p231 = por %p229, %p230
    %p232 = scmp.ne.s32.totalorder %s223, %s224
    %p233 = scmp.eq.s32.totalorder %s24, 0
    %p234 = por %p232, %p233
    %p235 = scmp.ne.s32.totalorder %s223, %s224
    %p236 = scmp.eq.s32.totalorder %s25, 1
    %p237 = por %p235, %p236
    %p239 = scmp.ne.s32.totalorder %s224, %s238
    %p240 = scmp.eq.s32.totalorder %s25, 0
    %p241 = por %p239, %p240
    %s243 = sadd.s32 %s242, 1
    %p246 = scmp.eq.s32.totalorder %s19, 1
    %p247 = scmp.ne.s32.totalorder %s242, %s244
    %p248 = scmp.eq.s32.totalorder %s19, 0
    %p249 = por %p247, %p248
    %p250 = scmp.ne.s32.totalorder %s242, %s244
    %p251 = scmp.eq.s32.totalorder %s24, 1
    %p252 = por %p250, %p251
    %p253 = scmp.ne.s32.totalorder %s244, %s245
    %p254 = scmp.eq.s32.totalorder %s24, 0
    %p255 = por %p253, %p254
    %p256 = scmp.ne.s32.totalorder %s244, %s245
    %p257 = scmp.eq.s32.totalorder %s25, 1
    %p258 = por %p256, %p257
    %p260 = scmp.ne.s32.totalorder %s245, %s259
    %p261 = scmp.eq.s32.totalorder %s25, 0
    %p262 = por %p260, %p261
    %s264 = sadd.s32 %s263, 1
    %p267 = scmp.eq.s32.totalorder %s19, 1
    %p268 = scmp.ne.s32.totalorder %s263, %s265
    %p269 = scmp.eq.s32.totalorder %s19, 0
    %p270 = por %p268, %p269
    %p271 = scmp.ne.s32.totalorder %s263, %s265
    %p272 = scmp.eq.s32.totalorder %s24, 1
    %p273 = por %p271, %p272
    %p274 = scmp.ne.s32.totalorder %s265, %s266
    %p275 = scmp.eq.s32.totalorder %s24, 0
    %p276 = por %p274, %p275
    %p277 = scmp.ne.s32.totalorder %s265, %s266
    %p278 = scmp.eq.s32.totalorder %s25, 1
    %p279 = por %p277, %p278
    %p281 = scmp.ne.s32.totalorder %s266, %s280
    %p282 = scmp.eq.s32.totalorder %s25, 0
    %p283 = por %p281, %p282
    %s285 = sadd.s32 %s284, 1
    %p288 = scmp.eq.s32.totalorder %s19, 1
    %p289 = scmp.ne.s32.totalorder %s284, %s286
    %p290 = scmp.eq.s32.totalorder %s19, 0
    %p291 = por %p289, %p290
    %p292 = scmp.ne.s32.totalorder %s284, %s286
    %p293 = scmp.eq.s32.totalorder %s24, 1
    %p294 = por %p292, %p293
    %p295 = scmp.ne.s32.totalorder %s286, %s287
    %p296 = scmp.eq.s32.totalorder %s24, 0
    %p297 = por %p295, %p296
    %p298 = scmp.ne.s32.totalorder %s286, %s287
    %p299 = scmp.eq.s32.totalorder %s25, 1
    %p300 = por %p298, %p299
    %p302 = scmp.ne.s32.totalorder %s287, %s301
    %p303 = scmp.eq.s32.totalorder %s25, 0
    %p304 = por %p302, %p303
    %s305 = ssub.s32 %s19, %s26
    %p306 = scmp.eq.s32.totalorder %s305, 0
    %s308 = sadd.s32 %s307, 1
    %s309 = scalar_select %p306, %s307, %s308
    %p312 = pneg %p306
    %p313 = scmp.eq.s32.totalorder %s19, 1
    %p314 = por %p312, %p313
    %p315 = scmp.ne.s32.totalorder %s307, %s310
    %p316 = scmp.eq.s32.totalorder %s19, 0
    %p317 = por %p315, %p316
    %p318 = scmp.ne.s32.totalorder %s307, %s310
    %p319 = scmp.eq.s32.totalorder %s24, 1
    %p320 = por %p318, %p319
    %p321 = scmp.ne.s32.totalorder %s310, %s311
    %p322 = scmp.eq.s32.totalorder %s24, 0
    %p323 = por %p321, %p322
    %p324 = scmp.ne.s32.totalorder %s310, %s311
    %p325 = scmp.eq.s32.totalorder %s25, 1
    %p326 = por %p324, %p325
    %p328 = scmp.ne.s32.totalorder %s311, %s327
    %p329 = scmp.eq.s32.totalorder %s25, 0
    %p330 = por %p328, %p329
    %p331 = scmp.le.s32.totalorder 1, %s19
    %p332 = scmp.lt.s32.totalorder %s19, 3
    %p333 = pnand %p331, %p332
    %p334 = pneg %p333
    // Predicated region
    $region9: #{onedconv_encoder_forward.2} parent=5 // pred_check
      _
    $region10: #{onedconv_encoder_forward.2} parent=5 // pred_check_branch
      %336 = sbr.rel (%p333) target = $region12
    $region11: #{onedconv_encoder_forward.2} parent=5 // pred_region
      %s337 = ssub.s32 %s19, 1
      // Predicated region
      $region13: #{onedconv_encoder_forward.2} parent=11 // pred_check
        %p338 = pneg %p66
      $region14: #{onedconv_encoder_forward.2} parent=11 // pred_check_branch
        %340 = sbr.rel (%p338) target = $region16
      $region15: #{onedconv_encoder_forward.2} parent=11 // pred_region
        _
      $region16: #{onedconv_encoder_forward.2} parent=11 // pred_fallthru
        _
      // Predicated region
      $region17: #{onedconv_encoder_forward.2} parent=11 // pred_check
        %p341 = pneg %p87
      $region18: #{onedconv_encoder_forward.2} parent=11 // pred_check_branch
        %343 = sbr.rel (%p341) target = $region20
      $region19: #{onedconv_encoder_forward.2} parent=11 // pred_region
        _
      $region20: #{onedconv_encoder_forward.2} parent=11 // pred_fallthru
        _
      // Predicated region
      $region21: #{onedconv_encoder_forward.2} parent=11 // pred_check
        %p344 = pneg %p108
      $region22: #{onedconv_encoder_forward.2} parent=11 // pred_check_branch
        %346 = sbr.rel (%p344) target = $region24
      $region23: #{onedconv_encoder_forward.2} parent=11 // pred_region
        _
      $region24: #{onedconv_encoder_forward.2} parent=11 // pred_fallthru
        _
      // Predicated region
      $region25: #{onedconv_encoder_forward.2} parent=11 // pred_check
        %p347 = pneg %p129
      $region26: #{onedconv_encoder_forward.2} parent=11 // pred_check_branch
        %349 = sbr.rel (%p347) target = $region28
      $region27: #{onedconv_encoder_forward.2} parent=11 // pred_region
        _
      $region28: #{onedconv_encoder_forward.2} parent=11 // pred_fallthru
        _
      // Predicated region
      $region29: #{onedconv_encoder_forward.2} parent=11 // pred_check
        %p350 = pneg %p150
      $region30: #{onedconv_encoder_forward.2} parent=11 // pred_check_branch
        %352 = sbr.rel (%p350) target = $region32
      $region31: #{onedconv_encoder_forward.2} parent=11 // pred_region
        _
      $region32: #{onedconv_encoder_forward.2} parent=11 // pred_fallthru
        _
      // Predicated region
      $region33: #{onedconv_encoder_forward.2} parent=11 // pred_check
        %p353 = pneg %p171
      $region34: #{onedconv_encoder_forward.2} parent=11 // pred_check_branch
        %355 = sbr.rel (%p353) target = $region36
      $region35: #{onedconv_encoder_forward.2} parent=11 // pred_region
        _
      $region36: #{onedconv_encoder_forward.2} parent=11 // pred_fallthru
        _
      // Predicated region
      $region37: #{onedconv_encoder_forward.2} parent=11 // pred_check
        %p356 = pneg %p192
      $region38: #{onedconv_encoder_forward.2} parent=11 // pred_check_branch
        %358 = sbr.rel (%p356) target = $region40
      $region39: #{onedconv_encoder_forward.2} parent=11 // pred_region
        _
      $region40: #{onedconv_encoder_forward.2} parent=11 // pred_fallthru
        _
      // Predicated region
      $region41: #{onedconv_encoder_forward.2} parent=11 // pred_check
        %p359 = pneg %p213
      $region42: #{onedconv_encoder_forward.2} parent=11 // pred_check_branch
        %361 = sbr.rel (%p359) target = $region44
      $region43: #{onedconv_encoder_forward.2} parent=11 // pred_region
        _
      $region44: #{onedconv_encoder_forward.2} parent=11 // pred_fallthru
        _
      // Predicated region
      $region45: #{onedconv_encoder_forward.2} parent=11 // pred_check
        %p362 = pneg %p234
      $region46: #{onedconv_encoder_forward.2} parent=11 // pred_check_branch
        %364 = sbr.rel (%p362) target = $region48
      $region47: #{onedconv_encoder_forward.2} parent=11 // pred_region
        _
      $region48: #{onedconv_encoder_forward.2} parent=11 // pred_fallthru
        _
      // Predicated region
      $region49: #{onedconv_encoder_forward.2} parent=11 // pred_check
        %p365 = pneg %p255
      $region50: #{onedconv_encoder_forward.2} parent=11 // pred_check_branch
        %367 = sbr.rel (%p365) target = $region52
      $region51: #{onedconv_encoder_forward.2} parent=11 // pred_region
        _
      $region52: #{onedconv_encoder_forward.2} parent=11 // pred_fallthru
        _
      // Predicated region
      $region53: #{onedconv_encoder_forward.2} parent=11 // pred_check
        %p368 = pneg %p276
      $region54: #{onedconv_encoder_forward.2} parent=11 // pred_check_branch
        %370 = sbr.rel (%p368) target = $region56
      $region55: #{onedconv_encoder_forward.2} parent=11 // pred_region
        _
      $region56: #{onedconv_encoder_forward.2} parent=11 // pred_fallthru
        _
      // Predicated region
      $region57: #{onedconv_encoder_forward.2} parent=11 // pred_check
        %p371 = pneg %p297
      $region58: #{onedconv_encoder_forward.2} parent=11 // pred_check_branch
        %373 = sbr.rel (%p371) target = $region60
      $region59: #{onedconv_encoder_forward.2} parent=11 // pred_region
        _
      $region60: #{onedconv_encoder_forward.2} parent=11 // pred_fallthru
        _
    $region12: #{onedconv_encoder_forward.2} parent=5 // pred_fallthru
      _
    %p374 = scmp.lt.s32.totalorder %s19, 2
    // Predicated region
    $region61: #{onedconv_encoder_forward.2} parent=5 // pred_check
      %p375 = pneg %p374
    $region62: #{onedconv_encoder_forward.2} parent=5 // pred_check_branch
      %377 = sbr.rel (%p375) target = $region64
    $region63: #{onedconv_encoder_forward.2} parent=5 // pred_region
      // Predicated region
      $region65: #{onedconv_encoder_forward.2} parent=63 // pred_check
        %p378 = pneg %p39
      $region66: #{onedconv_encoder_forward.2} parent=63 // pred_check_branch
        %380 = sbr.rel (%p378) target = $region68
      $region67: #{onedconv_encoder_forward.2} parent=63 // pred_region
        %p381 = scmp.lt.s32.totalorder %s19, 1
        %s382 = scalar_select %p381, %s19, 1
        %s383 = smul.addr %s382, 16
        %s384 = smul.addr %s383, 8
        %s385 = scalar_lea.vmem %s0, %s384
      $region68: #{onedconv_encoder_forward.2} parent=63 // pred_fallthru
        _
    $region64: #{onedconv_encoder_forward.2} parent=5 // pred_fallthru
      _
    %p386 = scmp.le.s32.totalorder 1, %s19
    %p387 = scmp.lt.s32.totalorder %s19, 3
    %p388 = pnand %p386, %p387
    %p389 = pneg %p388
    // Predicated region
    $region69: #{onedconv_encoder_forward.2} parent=5 // pred_check
      _
    $region70: #{onedconv_encoder_forward.2} parent=5 // pred_check_branch
      %391 = sbr.rel (%p388) target = $region72
    $region71: #{onedconv_encoder_forward.2} parent=5 // pred_region
      %s392 = ssub.s32 %s19, 1
      %p393 = scmp.lt.s32.totalorder %s24, 1
      %s394 = scalar_select %p393, %s24, 1
      %s395 = smul.addr %s394, 16
      %s396 = smul.addr %s395, 8
      %s397 = scalar_lea.vmem %s0, %s396
      %p398 = pneg %p45
      %p399 = pneg %p42
      %p400 = pneg %p66
      %p401 = pneg %p63
      %p402 = pneg %p87
      %p403 = pneg %p84
      %p404 = pneg %p108
      %p405 = pneg %p105
      %p406 = pneg %p129
      %p407 = pneg %p126
      %p408 = pneg %p150
      %p409 = pneg %p147
      %p410 = pneg %p171
      %p411 = pneg %p168
      %p412 = pneg %p192
      %p413 = pneg %p189
      %p414 = pneg %p213
      %p415 = pneg %p210
      %p416 = pneg %p234
      %p417 = pneg %p231
      %p418 = pneg %p255
      %p419 = pneg %p252
      %p420 = pneg %p276
      %p421 = pneg %p273
      %p422 = pneg %p297
      %p423 = pneg %p294
      %p424 = pneg %p323
      %p425 = pneg %p320
      %p426 = scmp.lt.s32.totalorder %s24, 1
      %s427 = scalar_select %p426, %s24, 1
      %s428 = smul.addr %s427, 8
      %s429 = smul.addr %s428, 8
      %s430 = scalar_lea.vmem %s13, %s429
      %p431 = scmp.lt.s32.totalorder %s24, 1
      %s432 = scalar_select %p431, %s24, 1
      %s433 = smul.addr %s432, 16
      %s434 = smul.addr %s433, 8
      %s435 = scalar_lea.vmem %s0, %s434
      %p436 = scmp.lt.s32.totalorder %s24, 1
      %s437 = scalar_select %p436, %s24, 1
      %s438 = smul.addr %s437, 8
      %s439 = smul.addr %s438, 8
      %s440 = scalar_lea.vmem %s13, %s439
      %v442 = vld [vmem:[%s435] sm:$0xff]
      %v443 = vld [vmem:[%s435 + $0x8] sm:$0xff]
      %v444 = vld [vmem:[%s435 + $0x10] sm:$0xff]
      %v445 = vld [vmem:[%s435 + $0x18] sm:$0xff]
      %v446 = vld [vmem:[%s435 + $0x20] sm:$0xff]
      %v447 = vld [vmem:[%s435 + $0x28] sm:$0xff]
      %v448 = vld [vmem:[%s435 + $0x30] sm:$0xff]
      %v449 = vld [vmem:[%s435 + $0x38] sm:$0xff]
      %v450 = vld [vmem:[%s435 + $0x40] sm:$0xff]
      %v451 = vld [vmem:[%s435 + $0x48] sm:$0xff]
      %v452 = vld [vmem:[%s435 + $0x50] sm:$0xff]
      %v453 = vld [vmem:[%s435 + $0x58] sm:$0xff]
      %v454 = vld [vmem:[%s435 + $0x60] sm:$0xff]
      %v455 = vld [vmem:[%s435 + $0x68] sm:$0xff]
      %v456 = vld [vmem:[%s435 + $0x70] sm:$0xff]
      %v457 = vld [vmem:[%s435 + $0x78] sm:$0xff]
      %vm458 = vcmask 130048
      %459 = vst.msk [vmem:[#allocation2] sm:$0xff] %vm458, 0.0
      %460 = vst.msk [vmem:[#allocation2 + $0x8] sm:$0xff] %vm458, 0.0
      %461 = vst.msk [vmem:[#allocation2 + $0x10] sm:$0xff] %vm458, 0.0
      %462 = vst.msk [vmem:[#allocation2 + $0x18] sm:$0xff] %vm458, 0.0
      %463 = vst.msk [vmem:[#allocation2 + $0x20] sm:$0xff] %vm458, 0.0
      %464 = vst.msk [vmem:[#allocation2 + $0x28] sm:$0xff] %vm458, 0.0
      %465 = vst.msk [vmem:[#allocation2 + $0x30] sm:$0xff] %vm458, 0.0
      %466 = vst.msk [vmem:[#allocation2 + $0x38] sm:$0xff] %vm458, 0.0
      %467 = vst.msk [vmem:[#allocation2 + $0x40] sm:$0xff] %vm458, 0.0
      %468 = vst.msk [vmem:[#allocation2 + $0x48] sm:$0xff] %vm458, 0.0
      %469 = vst.msk [vmem:[#allocation2 + $0x50] sm:$0xff] %vm458, 0.0
      %470 = vst.msk [vmem:[#allocation2 + $0x58] sm:$0xff] %vm458, 0.0
      %471 = vst.msk [vmem:[#allocation2 + $0x60] sm:$0xff] %vm458, 0.0
      %472 = vst.msk [vmem:[#allocation2 + $0x68] sm:$0xff] %vm458, 0.0
      %473 = vst.msk [vmem:[#allocation2 + $0x70] sm:$0xff] %vm458, 0.0
      %474 = vst.msk [vmem:[#allocation2 + $0x78] sm:$0xff] %vm458, 0.0
      %vm475 = vcmask 128000
      %476 = vst.msk [vmem:[#allocation2 + $0x80] sm:$0x3f] %vm475, 0.0
      %vm477 = vcmask 7168
      %478 = vst.msk [vmem:[#allocation2 + $0x3] sm:$0xff] %vm477, %v442
      %479 = vst.msk [vmem:[#allocation2 + $0xb] sm:$0xff] %vm477, %v443
      %480 = vst.msk [vmem:[#allocation2 + $0x13] sm:$0xff] %vm477, %v444
      %481 = vst.msk [vmem:[#allocation2 + $0x1b] sm:$0xff] %vm477, %v445
      %482 = vst.msk [vmem:[#allocation2 + $0x23] sm:$0xff] %vm477, %v446
      %483 = vst.msk [vmem:[#allocation2 + $0x2b] sm:$0xff] %vm477, %v447
      %484 = vst.msk [vmem:[#allocation2 + $0x33] sm:$0xff] %vm477, %v448
      %485 = vst.msk [vmem:[#allocation2 + $0x3b] sm:$0xff] %vm477, %v449
      %486 = vst.msk [vmem:[#allocation2 + $0x43] sm:$0xff] %vm477, %v450
      %487 = vst.msk [vmem:[#allocation2 + $0x4b] sm:$0xff] %vm477, %v451
      %488 = vst.msk [vmem:[#allocation2 + $0x53] sm:$0xff] %vm477, %v452
      %489 = vst.msk [vmem:[#allocation2 + $0x5b] sm:$0xff] %vm477, %v453
      %490 = vst.msk [vmem:[#allocation2 + $0x63] sm:$0xff] %vm477, %v454
      %491 = vst.msk [vmem:[#allocation2 + $0x6b] sm:$0xff] %vm477, %v455
      %492 = vst.msk [vmem:[#allocation2 + $0x73] sm:$0xff] %vm477, %v456
      %493 = vst.msk [vmem:[#allocation2 + $0x7b] sm:$0xff] %vm477, %v457
      %v494 = vld [vmem:[#allocation2] sm:$0xff]
      %v495 = vld [vmem:[#allocation2 + $0x8] sm:$0xff]
      %v496 = vld [vmem:[#allocation2 + $0x10] sm:$0xff]
      %v497 = vld [vmem:[#allocation2 + $0x18] sm:$0xff]
      %v498 = vld [vmem:[#allocation2 + $0x20] sm:$0xff]
      %v499 = vld [vmem:[#allocation2 + $0x28] sm:$0xff]
      %v500 = vld [vmem:[#allocation2 + $0x30] sm:$0xff]
      %v501 = vld [vmem:[#allocation2 + $0x38] sm:$0xff]
      %v502 = vld [vmem:[#allocation2 + $0x40] sm:$0xff]
      %v503 = vld [vmem:[#allocation2 + $0x48] sm:$0xff]
      %v504 = vld [vmem:[#allocation2 + $0x50] sm:$0xff]
      %v505 = vld [vmem:[#allocation2 + $0x58] sm:$0xff]
      %v506 = vld [vmem:[#allocation2 + $0x60] sm:$0xff]
      %v507 = vld [vmem:[#allocation2 + $0x68] sm:$0xff]
      %v508 = vld [vmem:[#allocation2 + $0x70] sm:$0xff]
      %v509 = vld [vmem:[#allocation2 + $0x78] sm:$0xff]
      %510 = vst.msk [vmem:[#allocation3] sm:$0xff] %vm477, %v494
      %511 = vst.msk [vmem:[#allocation3 + $0x8] sm:$0xff] %vm477, %v495
      %512 = vst.msk [vmem:[#allocation3 + $0x10] sm:$0xff] %vm477, %v496
      %513 = vst.msk [vmem:[#allocation3 + $0x18] sm:$0xff] %vm477, %v497
      %514 = vst.msk [vmem:[#allocation3 + $0x20] sm:$0xff] %vm477, %v498
      %515 = vst.msk [vmem:[#allocation3 + $0x28] sm:$0xff] %vm477, %v499
      %516 = vst.msk [vmem:[#allocation3 + $0x30] sm:$0xff] %vm477, %v500
      %517 = vst.msk [vmem:[#allocation3 + $0x38] sm:$0xff] %vm477, %v501
      %518 = vst.msk [vmem:[#allocation3 + $0x40] sm:$0xff] %vm477, %v502
      %519 = vst.msk [vmem:[#allocation3 + $0x48] sm:$0xff] %vm477, %v503
      %520 = vst.msk [vmem:[#allocation3 + $0x50] sm:$0xff] %vm477, %v504
      %521 = vst.msk [vmem:[#allocation3 + $0x58] sm:$0xff] %vm477, %v505
      %522 = vst.msk [vmem:[#allocation3 + $0x60] sm:$0xff] %vm477, %v506
      %523 = vst.msk [vmem:[#allocation3 + $0x68] sm:$0xff] %vm477, %v507
      %524 = vst.msk [vmem:[#allocation3 + $0x70] sm:$0xff] %vm477, %v508
      %525 = vst.msk [vmem:[#allocation3 + $0x78] sm:$0xff] %vm477, %v509
      %v526 = vld [vmem:[#allocation2 + $0x1] sm:$0xff]
      %v527 = vld [vmem:[#allocation2 + $0x9] sm:$0xff]
      %v528 = vld [vmem:[#allocation2 + $0x11] sm:$0xff]
      %v529 = vld [vmem:[#allocation2 + $0x19] sm:$0xff]
      %v530 = vld [vmem:[#allocation2 + $0x21] sm:$0xff]
      %v531 = vld [vmem:[#allocation2 + $0x29] sm:$0xff]
      %v532 = vld [vmem:[#allocation2 + $0x31] sm:$0xff]
      %v533 = vld [vmem:[#allocation2 + $0x39] sm:$0xff]
      %v534 = vld [vmem:[#allocation2 + $0x41] sm:$0xff]
      %v535 = vld [vmem:[#allocation2 + $0x49] sm:$0xff]
      %v536 = vld [vmem:[#allocation2 + $0x51] sm:$0xff]
      %v537 = vld [vmem:[#allocation2 + $0x59] sm:$0xff]
      %v538 = vld [vmem:[#allocation2 + $0x61] sm:$0xff]
      %v539 = vld [vmem:[#allocation2 + $0x69] sm:$0xff]
      %v540 = vld [vmem:[#allocation2 + $0x71] sm:$0xff]
      %v541 = vld [vmem:[#allocation2 + $0x79] sm:$0xff]
      %558 = vrot.lane.b32.xlu0 %v526, 1
      %v559 = vpop.permute.xlu0 %558
      %560 = vrot.lane.b32.xlu0 %v527, 1
      %v561 = vpop.permute.xlu0 %560
      %562 = vrot.lane.b32.xlu0 %v528, 1
      %v563 = vpop.permute.xlu0 %562
      %564 = vrot.lane.b32.xlu0 %v529, 1
      %v565 = vpop.permute.xlu0 %564
      %566 = vrot.lane.b32.xlu0 %v530, 1
      %v567 = vpop.permute.xlu0 %566
      %568 = vrot.lane.b32.xlu0 %v531, 1
      %v569 = vpop.permute.xlu0 %568
      %570 = vrot.lane.b32.xlu0 %v532, 1
      %v571 = vpop.permute.xlu0 %570
      %572 = vrot.lane.b32.xlu0 %v533, 1
      %v573 = vpop.permute.xlu0 %572
      %574 = vrot.lane.b32.xlu0 %v534, 1
      %v575 = vpop.permute.xlu0 %574
      %576 = vrot.lane.b32.xlu0 %v535, 1
      %v577 = vpop.permute.xlu0 %576
      %578 = vrot.lane.b32.xlu0 %v536, 1
      %v579 = vpop.permute.xlu0 %578
      %580 = vrot.lane.b32.xlu0 %v537, 1
      %v581 = vpop.permute.xlu0 %580
      %582 = vrot.lane.b32.xlu0 %v538, 1
      %v583 = vpop.permute.xlu0 %582
      %584 = vrot.lane.b32.xlu0 %v539, 1
      %v585 = vpop.permute.xlu0 %584
      %586 = vrot.lane.b32.xlu0 %v540, 1
      %v587 = vpop.permute.xlu0 %586
      %588 = vrot.lane.b32.xlu0 %v541, 1
      %v589 = vpop.permute.xlu0 %588
      %vm606 = vcmask 15368
      %607 = vst.msk [vmem:[#allocation3] sm:$0xff] %vm606, %v559
      %608 = vst.msk [vmem:[#allocation3 + $0x8] sm:$0xff] %vm606, %v561
      %609 = vst.msk [vmem:[#allocation3 + $0x10] sm:$0xff] %vm606, %v563
      %610 = vst.msk [vmem:[#allocation3 + $0x18] sm:$0xff] %vm606, %v565
      %611 = vst.msk [vmem:[#allocation3 + $0x20] sm:$0xff] %vm606, %v567
      %612 = vst.msk [vmem:[#allocation3 + $0x28] sm:$0xff] %vm606, %v569
      %613 = vst.msk [vmem:[#allocation3 + $0x30] sm:$0xff] %vm606, %v571
      %614 = vst.msk [vmem:[#allocation3 + $0x38] sm:$0xff] %vm606, %v573
      %615 = vst.msk [vmem:[#allocation3 + $0x40] sm:$0xff] %vm606, %v575
      %616 = vst.msk [vmem:[#allocation3 + $0x48] sm:$0xff] %vm606, %v577
      %617 = vst.msk [vmem:[#allocation3 + $0x50] sm:$0xff] %vm606, %v579
      %618 = vst.msk [vmem:[#allocation3 + $0x58] sm:$0xff] %vm606, %v581
      %619 = vst.msk [vmem:[#allocation3 + $0x60] sm:$0xff] %vm606, %v583
      %620 = vst.msk [vmem:[#allocation3 + $0x68] sm:$0xff] %vm606, %v585
      %621 = vst.msk [vmem:[#allocation3 + $0x70] sm:$0xff] %vm606, %v587
      %622 = vst.msk [vmem:[#allocation3 + $0x78] sm:$0xff] %vm606, %v589
      %v623 = vld [vmem:[#allocation2 + $0x2] sm:$0xff]
      %v624 = vld [vmem:[#allocation2 + $0xa] sm:$0xff]
      %v625 = vld [vmem:[#allocation2 + $0x12] sm:$0xff]
      %v626 = vld [vmem:[#allocation2 + $0x1a] sm:$0xff]
      %v627 = vld [vmem:[#allocation2 + $0x22] sm:$0xff]
      %v628 = vld [vmem:[#allocation2 + $0x2a] sm:$0xff]
      %v629 = vld [vmem:[#allocation2 + $0x32] sm:$0xff]
      %v630 = vld [vmem:[#allocation2 + $0x3a] sm:$0xff]
      %v631 = vld [vmem:[#allocation2 + $0x42] sm:$0xff]
      %v632 = vld [vmem:[#allocation2 + $0x4a] sm:$0xff]
      %v633 = vld [vmem:[#allocation2 + $0x52] sm:$0xff]
      %v634 = vld [vmem:[#allocation2 + $0x5a] sm:$0xff]
      %v635 = vld [vmem:[#allocation2 + $0x62] sm:$0xff]
      %v636 = vld [vmem:[#allocation2 + $0x6a] sm:$0xff]
      %v637 = vld [vmem:[#allocation2 + $0x72] sm:$0xff]
      %v638 = vld [vmem:[#allocation2 + $0x7a] sm:$0xff]
      %655 = vrot.lane.b32.xlu0 %v623, 2
      %v656 = vpop.permute.xlu0 %655
      %657 = vrot.lane.b32.xlu0 %v624, 2
      %v658 = vpop.permute.xlu0 %657
      %659 = vrot.lane.b32.xlu0 %v625, 2
      %v660 = vpop.permute.xlu0 %659
      %661 = vrot.lane.b32.xlu0 %v626, 2
      %v662 = vpop.permute.xlu0 %661
      %663 = vrot.lane.b32.xlu0 %v627, 2
      %v664 = vpop.permute.xlu0 %663
      %665 = vrot.lane.b32.xlu0 %v628, 2
      %v666 = vpop.permute.xlu0 %665
      %667 = vrot.lane.b32.xlu0 %v629, 2
      %v668 = vpop.permute.xlu0 %667
      %669 = vrot.lane.b32.xlu0 %v630, 2
      %v670 = vpop.permute.xlu0 %669
      %671 = vrot.lane.b32.xlu0 %v631, 2
      %v672 = vpop.permute.xlu0 %671
      %673 = vrot.lane.b32.xlu0 %v632, 2
      %v674 = vpop.permute.xlu0 %673
      %675 = vrot.lane.b32.xlu0 %v633, 2
      %v676 = vpop.permute.xlu0 %675
      %677 = vrot.lane.b32.xlu0 %v634, 2
      %v678 = vpop.permute.xlu0 %677
      %679 = vrot.lane.b32.xlu0 %v635, 2
      %v680 = vpop.permute.xlu0 %679
      %681 = vrot.lane.b32.xlu0 %v636, 2
      %v682 = vpop.permute.xlu0 %681
      %683 = vrot.lane.b32.xlu0 %v637, 2
      %v684 = vpop.permute.xlu0 %683
      %685 = vrot.lane.b32.xlu0 %v638, 2
      %v686 = vpop.permute.xlu0 %685
      %vm703 = vcmask 23568
      %704 = vst.msk [vmem:[#allocation3] sm:$0xff] %vm703, %v656
      %705 = vst.msk [vmem:[#allocation3 + $0x8] sm:$0xff] %vm703, %v658
      %706 = vst.msk [vmem:[#allocation3 + $0x10] sm:$0xff] %vm703, %v660
      %707 = vst.msk [vmem:[#allocation3 + $0x18] sm:$0xff] %vm703, %v662
      %708 = vst.msk [vmem:[#allocation3 + $0x20] sm:$0xff] %vm703, %v664
      %709 = vst.msk [vmem:[#allocation3 + $0x28] sm:$0xff] %vm703, %v666
      %710 = vst.msk [vmem:[#allocation3 + $0x30] sm:$0xff] %vm703, %v668
      %711 = vst.msk [vmem:[#allocation3 + $0x38] sm:$0xff] %vm703, %v670
      %712 = vst.msk [vmem:[#allocation3 + $0x40] sm:$0xff] %vm703, %v672
      %713 = vst.msk [vmem:[#allocation3 + $0x48] sm:$0xff] %vm703, %v674
      %714 = vst.msk [vmem:[#allocation3 + $0x50] sm:$0xff] %vm703, %v676
      %715 = vst.msk [vmem:[#allocation3 + $0x58] sm:$0xff] %vm703, %v678
      %716 = vst.msk [vmem:[#allocation3 + $0x60] sm:$0xff] %vm703, %v680
      %717 = vst.msk [vmem:[#allocation3 + $0x68] sm:$0xff] %vm703, %v682
      %718 = vst.msk [vmem:[#allocation3 + $0x70] sm:$0xff] %vm703, %v684
      %719 = vst.msk [vmem:[#allocation3 + $0x78] sm:$0xff] %vm703, %v686
      %v720 = vld [vmem:[#allocation2 + $0x3] sm:$0xff]
      %v721 = vld [vmem:[#allocation2 + $0xb] sm:$0xff]
      %v722 = vld [vmem:[#allocation2 + $0x13] sm:$0xff]
      %v723 = vld [vmem:[#allocation2 + $0x1b] sm:$0xff]
      %v724 = vld [vmem:[#allocation2 + $0x23] sm:$0xff]
      %v725 = vld [vmem:[#allocation2 + $0x2b] sm:$0xff]
      %v726 = vld [vmem:[#allocation2 + $0x33] sm:$0xff]
      %v727 = vld [vmem:[#allocation2 + $0x3b] sm:$0xff]
      %v728 = vld [vmem:[#allocation2 + $0x43] sm:$0xff]
      %v729 = vld [vmem:[#allocation2 + $0x4b] sm:$0xff]
      %v730 = vld [vmem:[#allocation2 + $0x53] sm:$0xff]
      %v731 = vld [vmem:[#allocation2 + $0x5b] sm:$0xff]
      %v732 = vld [vmem:[#allocation2 + $0x63] sm:$0xff]
      %v733 = vld [vmem:[#allocation2 + $0x6b] sm:$0xff]
      %v734 = vld [vmem:[#allocation2 + $0x73] sm:$0xff]
      %v735 = vld [vmem:[#allocation2 + $0x7b] sm:$0xff]
      %752 = vrot.lane.b32.xlu0 %v720, 3
      %v753 = vpop.permute.xlu0 %752
      %754 = vrot.lane.b32.xlu0 %v721, 3
      %v755 = vpop.permute.xlu0 %754
      %756 = vrot.lane.b32.xlu0 %v722, 3
      %v757 = vpop.permute.xlu0 %756
      %758 = vrot.lane.b32.xlu0 %v723, 3
      %v759 = vpop.permute.xlu0 %758
      %760 = vrot.lane.b32.xlu0 %v724, 3
      %v761 = vpop.permute.xlu0 %760
      %762 = vrot.lane.b32.xlu0 %v725, 3
      %v763 = vpop.permute.xlu0 %762
      %764 = vrot.lane.b32.xlu0 %v726, 3
      %v765 = vpop.permute.xlu0 %764
      %766 = vrot.lane.b32.xlu0 %v727, 3
      %v767 = vpop.permute.xlu0 %766
      %768 = vrot.lane.b32.xlu0 %v728, 3
      %v769 = vpop.permute.xlu0 %768
      %770 = vrot.lane.b32.xlu0 %v729, 3
      %v771 = vpop.permute.xlu0 %770
      %772 = vrot.lane.b32.xlu0 %v730, 3
      %v773 = vpop.permute.xlu0 %772
      %774 = vrot.lane.b32.xlu0 %v731, 3
      %v775 = vpop.permute.xlu0 %774
      %776 = vrot.lane.b32.xlu0 %v732, 3
      %v777 = vpop.permute.xlu0 %776
      %778 = vrot.lane.b32.xlu0 %v733, 3
      %v779 = vpop.permute.xlu0 %778
      %780 = vrot.lane.b32.xlu0 %v734, 3
      %v781 = vpop.permute.xlu0 %780
      %782 = vrot.lane.b32.xlu0 %v735, 3
      %v783 = vpop.permute.xlu0 %782
      %vm800 = vcmask 31768
      %801 = vst.msk [vmem:[#allocation3] sm:$0xff] %vm800, %v753
      %802 = vst.msk [vmem:[#allocation3 + $0x8] sm:$0xff] %vm800, %v755
      %803 = vst.msk [vmem:[#allocation3 + $0x10] sm:$0xff] %vm800, %v757
      %804 = vst.msk [vmem:[#allocation3 + $0x18] sm:$0xff] %vm800, %v759
      %805 = vst.msk [vmem:[#allocation3 + $0x20] sm:$0xff] %vm800, %v761
      %806 = vst.msk [vmem:[#allocation3 + $0x28] sm:$0xff] %vm800, %v763
      %807 = vst.msk [vmem:[#allocation3 + $0x30] sm:$0xff] %vm800, %v765
      %808 = vst.msk [vmem:[#allocation3 + $0x38] sm:$0xff] %vm800, %v767
      %809 = vst.msk [vmem:[#allocation3 + $0x40] sm:$0xff] %vm800, %v769
      %810 = vst.msk [vmem:[#allocation3 + $0x48] sm:$0xff] %vm800, %v771
      %811 = vst.msk [vmem:[#allocation3 + $0x50] sm:$0xff] %vm800, %v773
      %812 = vst.msk [vmem:[#allocation3 + $0x58] sm:$0xff] %vm800, %v775
      %813 = vst.msk [vmem:[#allocation3 + $0x60] sm:$0xff] %vm800, %v777
      %814 = vst.msk [vmem:[#allocation3 + $0x68] sm:$0xff] %vm800, %v779
      %815 = vst.msk [vmem:[#allocation3 + $0x70] sm:$0xff] %vm800, %v781
      %816 = vst.msk [vmem:[#allocation3 + $0x78] sm:$0xff] %vm800, %v783
      %v817 = vld [vmem:[#allocation2 + $0x4] sm:$0xff]
      %v818 = vld [vmem:[#allocation2 + $0xc] sm:$0xff]
      %v819 = vld [vmem:[#allocation2 + $0x14] sm:$0xff]
      %v820 = vld [vmem:[#allocation2 + $0x1c] sm:$0xff]
      %v821 = vld [vmem:[#allocation2 + $0x24] sm:$0xff]
      %v822 = vld [vmem:[#allocation2 + $0x2c] sm:$0xff]
      %v823 = vld [vmem:[#allocation2 + $0x34] sm:$0xff]
      %v824 = vld [vmem:[#allocation2 + $0x3c] sm:$0xff]
      %v825 = vld [vmem:[#allocation2 + $0x44] sm:$0xff]
      %v826 = vld [vmem:[#allocation2 + $0x4c] sm:$0xff]
      %v827 = vld [vmem:[#allocation2 + $0x54] sm:$0xff]
      %v828 = vld [vmem:[#allocation2 + $0x5c] sm:$0xff]
      %v829 = vld [vmem:[#allocation2 + $0x64] sm:$0xff]
      %v830 = vld [vmem:[#allocation2 + $0x6c] sm:$0xff]
      %v831 = vld [vmem:[#allocation2 + $0x74] sm:$0xff]
      %v832 = vld [vmem:[#allocation2 + $0x7c] sm:$0xff]
      %849 = vrot.lane.b32.xlu0 %v817, 4
      %v850 = vpop.permute.xlu0 %849
      %851 = vrot.lane.b32.xlu0 %v818, 4
      %v852 = vpop.permute.xlu0 %851
      %853 = vrot.lane.b32.xlu0 %v819, 4
      %v854 = vpop.permute.xlu0 %853
      %855 = vrot.lane.b32.xlu0 %v820, 4
      %v856 = vpop.permute.xlu0 %855
      %857 = vrot.lane.b32.xlu0 %v821, 4
      %v858 = vpop.permute.xlu0 %857
      %859 = vrot.lane.b32.xlu0 %v822, 4
      %v860 = vpop.permute.xlu0 %859
      %861 = vrot.lane.b32.xlu0 %v823, 4
      %v862 = vpop.permute.xlu0 %861
      %863 = vrot.lane.b32.xlu0 %v824, 4
      %v864 = vpop.permute.xlu0 %863
      %865 = vrot.lane.b32.xlu0 %v825, 4
      %v866 = vpop.permute.xlu0 %865
      %867 = vrot.lane.b32.xlu0 %v826, 4
      %v868 = vpop.permute.xlu0 %867
      %869 = vrot.lane.b32.xlu0 %v827, 4
      %v870 = vpop.permute.xlu0 %869
      %871 = vrot.lane.b32.xlu0 %v828, 4
      %v872 = vpop.permute.xlu0 %871
      %873 = vrot.lane.b32.xlu0 %v829, 4
      %v874 = vpop.permute.xlu0 %873
      %875 = vrot.lane.b32.xlu0 %v830, 4
      %v876 = vpop.permute.xlu0 %875
      %877 = vrot.lane.b32.xlu0 %v831, 4
      %v878 = vpop.permute.xlu0 %877
      %879 = vrot.lane.b32.xlu0 %v832, 4
      %v880 = vpop.permute.xlu0 %879
      %vm897 = vcmask 39968
      %898 = vst.msk [vmem:[#allocation3] sm:$0xff] %vm897, %v850
      %899 = vst.msk [vmem:[#allocation3 + $0x8] sm:$0xff] %vm897, %v852
      %900 = vst.msk [vmem:[#allocation3 + $0x10] sm:$0xff] %vm897, %v854
      %901 = vst.msk [vmem:[#allocation3 + $0x18] sm:$0xff] %vm897, %v856
      %902 = vst.msk [vmem:[#allocation3 + $0x20] sm:$0xff] %vm897, %v858
      %903 = vst.msk [vmem:[#allocation3 + $0x28] sm:$0xff] %vm897, %v860
      %904 = vst.msk [vmem:[#allocation3 + $0x30] sm:$0xff] %vm897, %v862
      %905 = vst.msk [vmem:[#allocation3 + $0x38] sm:$0xff] %vm897, %v864
      %906 = vst.msk [vmem:[#allocation3 + $0x40] sm:$0xff] %vm897, %v866
      %907 = vst.msk [vmem:[#allocation3 + $0x48] sm:$0xff] %vm897, %v868
      %908 = vst.msk [vmem:[#allocation3 + $0x50] sm:$0xff] %vm897, %v870
      %909 = vst.msk [vmem:[#allocation3 + $0x58] sm:$0xff] %vm897, %v872
      %910 = vst.msk [vmem:[#allocation3 + $0x60] sm:$0xff] %vm897, %v874
      %911 = vst.msk [vmem:[#allocation3 + $0x68] sm:$0xff] %vm897, %v876
      %912 = vst.msk [vmem:[#allocation3 + $0x70] sm:$0xff] %vm897, %v878
      %913 = vst.msk [vmem:[#allocation3 + $0x78] sm:$0xff] %vm897, %v880
      %v914 = vld [vmem:[#allocation2 + $0x5] sm:$0xff]
      %v915 = vld [vmem:[#allocation2 + $0xd] sm:$0xff]
      %v916 = vld [vmem:[#allocation2 + $0x15] sm:$0xff]
      %v917 = vld [vmem:[#allocation2 + $0x1d] sm:$0xff]
      %v918 = vld [vmem:[#allocation2 + $0x25] sm:$0xff]
      %v919 = vld [vmem:[#allocation2 + $0x2d] sm:$0xff]
      %v920 = vld [vmem:[#allocation2 + $0x35] sm:$0xff]
      %v921 = vld [vmem:[#allocation2 + $0x3d] sm:$0xff]
      %v922 = vld [vmem:[#allocation2 + $0x45] sm:$0xff]
      %v923 = vld [vmem:[#allocation2 + $0x4d] sm:$0xff]
      %v924 = vld [vmem:[#allocation2 + $0x55] sm:$0xff]
      %v925 = vld [vmem:[#allocation2 + $0x5d] sm:$0xff]
      %v926 = vld [vmem:[#allocation2 + $0x65] sm:$0xff]
      %v927 = vld [vmem:[#allocation2 + $0x6d] sm:$0xff]
      %v928 = vld [vmem:[#allocation2 + $0x75] sm:$0xff]
      %v929 = vld [vmem:[#allocation2 + $0x7d] sm:$0xff]
      %946 = vrot.lane.b32.xlu0 %v914, 5
      %v947 = vpop.permute.xlu0 %946
      %948 = vrot.lane.b32.xlu0 %v915, 5
      %v949 = vpop.permute.xlu0 %948
      %950 = vrot.lane.b32.xlu0 %v916, 5
      %v951 = vpop.permute.xlu0 %950
      %952 = vrot.lane.b32.xlu0 %v917, 5
      %v953 = vpop.permute.xlu0 %952
      %954 = vrot.lane.b32.xlu0 %v918, 5
      %v955 = vpop.permute.xlu0 %954
      %956 = vrot.lane.b32.xlu0 %v919, 5
      %v957 = vpop.permute.xlu0 %956
      %958 = vrot.lane.b32.xlu0 %v920, 5
      %v959 = vpop.permute.xlu0 %958
      %960 = vrot.lane.b32.xlu0 %v921, 5
      %v961 = vpop.permute.xlu0 %960
      %962 = vrot.lane.b32.xlu0 %v922, 5
      %v963 = vpop.permute.xlu0 %962
      %964 = vrot.lane.b32.xlu0 %v923, 5
      %v965 = vpop.permute.xlu0 %964
      %966 = vrot.lane.b32.xlu0 %v924, 5
      %v967 = vpop.permute.xlu0 %966
      %968 = vrot.lane.b32.xlu0 %v925, 5
      %v969 = vpop.permute.xlu0 %968
      %970 = vrot.lane.b32.xlu0 %v926, 5
      %v971 = vpop.permute.xlu0 %970
      %972 = vrot.lane.b32.xlu0 %v927, 5
      %v973 = vpop.permute.xlu0 %972
      %974 = vrot.lane.b32.xlu0 %v928, 5
      %v975 = vpop.permute.xlu0 %974
      %976 = vrot.lane.b32.xlu0 %v929, 5
      %v977 = vpop.permute.xlu0 %976
      %vm994 = vcmask 48168
      %995 = vst.msk [vmem:[#allocation3] sm:$0xff] %vm994, %v947
      %996 = vst.msk [vmem:[#allocation3 + $0x8] sm:$0xff] %vm994, %v949
      %997 = vst.msk [vmem:[#allocation3 + $0x10] sm:$0xff] %vm994, %v951
      %998 = vst.msk [vmem:[#allocation3 + $0x18] sm:$0xff] %vm994, %v953
      %999 = vst.msk [vmem:[#allocation3 + $0x20] sm:$0xff] %vm994, %v955
      %1000 = vst.msk [vmem:[#allocation3 + $0x28] sm:$0xff] %vm994, %v957
      %1001 = vst.msk [vmem:[#allocation3 + $0x30] sm:$0xff] %vm994, %v959
      %1002 = vst.msk [vmem:[#allocation3 + $0x38] sm:$0xff] %vm994, %v961
      %1003 = vst.msk [vmem:[#allocation3 + $0x40] sm:$0xff] %vm994, %v963
      %1004 = vst.msk [vmem:[#allocation3 + $0x48] sm:$0xff] %vm994, %v965
      %1005 = vst.msk [vmem:[#allocation3 + $0x50] sm:$0xff] %vm994, %v967
      %1006 = vst.msk [vmem:[#allocation3 + $0x58] sm:$0xff] %vm994, %v969
      %1007 = vst.msk [vmem:[#allocation3 + $0x60] sm:$0xff] %vm994, %v971
      %1008 = vst.msk [vmem:[#allocation3 + $0x68] sm:$0xff] %vm994, %v973
      %1009 = vst.msk [vmem:[#allocation3 + $0x70] sm:$0xff] %vm994, %v975
      %1010 = vst.msk [vmem:[#allocation3 + $0x78] sm:$0xff] %vm994, %v977
      %v1011 = vld [vmem:[#allocation2 + $0x6] sm:$0xff]
      %v1012 = vld [vmem:[#allocation2 + $0xe] sm:$0xff]
      %v1013 = vld [vmem:[#allocation2 + $0x16] sm:$0xff]
      %v1014 = vld [vmem:[#allocation2 + $0x1e] sm:$0xff]
      %v1015 = vld [vmem:[#allocation2 + $0x26] sm:$0xff]
      %v1016 = vld [vmem:[#allocation2 + $0x2e] sm:$0xff]
      %v1017 = vld [vmem:[#allocation2 + $0x36] sm:$0xff]
      %v1018 = vld [vmem:[#allocation2 + $0x3e] sm:$0xff]
      %v1019 = vld [vmem:[#allocation2 + $0x46] sm:$0xff]
      %v1020 = vld [vmem:[#allocation2 + $0x4e] sm:$0xff]
      %v1021 = vld [vmem:[#allocation2 + $0x56] sm:$0xff]
      %v1022 = vld [vmem:[#allocation2 + $0x5e] sm:$0xff]
      %v1023 = vld [vmem:[#allocation2 + $0x66] sm:$0xff]
      %v1024 = vld [vmem:[#allocation2 + $0x6e] sm:$0xff]
      %v1025 = vld [vmem:[#allocation2 + $0x76] sm:$0xff]
      %v1026 = vld [vmem:[#allocation2 + $0x7e] sm:$0xff]
      %1043 = vrot.lane.b32.xlu0 %v1011, 6
      %v1044 = vpop.permute.xlu0 %1043
      %1045 = vrot.lane.b32.xlu0 %v1012, 6
      %v1046 = vpop.permute.xlu0 %1045
      %1047 = vrot.lane.b32.xlu0 %v1013, 6
      %v1048 = vpop.permute.xlu0 %1047
      %1049 = vrot.lane.b32.xlu0 %v1014, 6
      %v1050 = vpop.permute.xlu0 %1049
      %1051 = vrot.lane.b32.xlu0 %v1015, 6
      %v1052 = vpop.permute.xlu0 %1051
      %1053 = vrot.lane.b32.xlu0 %v1016, 6
      %v1054 = vpop.permute.xlu0 %1053
      %1055 = vrot.lane.b32.xlu0 %v1017, 6
      %v1056 = vpop.permute.xlu0 %1055
      %1057 = vrot.lane.b32.xlu0 %v1018, 6
      %v1058 = vpop.permute.xlu0 %1057
      %1059 = vrot.lane.b32.xlu0 %v1019, 6
      %v1060 = vpop.permute.xlu0 %1059
      %1061 = vrot.lane.b32.xlu0 %v1020, 6
      %v1062 = vpop.permute.xlu0 %1061
      %1063 = vrot.lane.b32.xlu0 %v1021, 6
      %v1064 = vpop.permute.xlu0 %1063
      %1065 = vrot.lane.b32.xlu0 %v1022, 6
      %v1066 = vpop.permute.xlu0 %1065
      %1067 = vrot.lane.b32.xlu0 %v1023, 6
      %v1068 = vpop.permute.xlu0 %1067
      %1069 = vrot.lane.b32.xlu0 %v1024, 6
      %v1070 = vpop.permute.xlu0 %1069
      %1071 = vrot.lane.b32.xlu0 %v1025, 6
      %v1072 = vpop.permute.xlu0 %1071
      %1073 = vrot.lane.b32.xlu0 %v1026, 6
      %v1074 = vpop.permute.xlu0 %1073
      %vm1091 = vcmask 56368
      %1092 = vst.msk [vmem:[#allocation3] sm:$0xff] %vm1091, %v1044
      %1093 = vst.msk [vmem:[#allocation3 + $0x8] sm:$0xff] %vm1091, %v1046
      %1094 = vst.msk [vmem:[#allocation3 + $0x10] sm:$0xff] %vm1091, %v1048
      %1095 = vst.msk [vmem:[#allocation3 + $0x18] sm:$0xff] %vm1091, %v1050
      %1096 = vst.msk [vmem:[#allocation3 + $0x20] sm:$0xff] %vm1091, %v1052
      %1097 = vst.msk [vmem:[#allocation3 + $0x28] sm:$0xff] %vm1091, %v1054
      %1098 = vst.msk [vmem:[#allocation3 + $0x30] sm:$0xff] %vm1091, %v1056
      %1099 = vst.msk [vmem:[#allocation3 + $0x38] sm:$0xff] %vm1091, %v1058
      %1100 = vst.msk [vmem:[#allocation3 + $0x40] sm:$0xff] %vm1091, %v1060
      %1101 = vst.msk [vmem:[#allocation3 + $0x48] sm:$0xff] %vm1091, %v1062
      %1102 = vst.msk [vmem:[#allocation3 + $0x50] sm:$0xff] %vm1091, %v1064
      %1103 = vst.msk [vmem:[#allocation3 + $0x58] sm:$0xff] %vm1091, %v1066
      %1104 = vst.msk [vmem:[#allocation3 + $0x60] sm:$0xff] %vm1091, %v1068
      %1105 = vst.msk [vmem:[#allocation3 + $0x68] sm:$0xff] %vm1091, %v1070
      %1106 = vst.msk [vmem:[#allocation3 + $0x70] sm:$0xff] %vm1091, %v1072
      %1107 = vst.msk [vmem:[#allocation3 + $0x78] sm:$0xff] %vm1091, %v1074
      %v1108 = vld [vmem:[#allocation3] sm:$0xff]
      %v1109 = vld [vmem:[#allocation3 + $0x8] sm:$0xff]
      %v1110 = vld [vmem:[#allocation3 + $0x10] sm:$0xff]
      %v1111 = vld [vmem:[#allocation3 + $0x18] sm:$0xff]
      %v1112 = vld [vmem:[#allocation3 + $0x20] sm:$0xff]
      %v1113 = vld [vmem:[#allocation3 + $0x28] sm:$0xff]
      %v1114 = vld [vmem:[#allocation3 + $0x30] sm:$0xff]
      %v1115 = vld [vmem:[#allocation3 + $0x38] sm:$0xff]
      %v1116 = vld [vmem:[#allocation3 + $0x40] sm:$0xff]
      %v1117 = vld [vmem:[#allocation3 + $0x48] sm:$0xff]
      %v1118 = vld [vmem:[#allocation3 + $0x50] sm:$0xff]
      %v1119 = vld [vmem:[#allocation3 + $0x58] sm:$0xff]
      %v1120 = vld [vmem:[#allocation3 + $0x60] sm:$0xff]
      %v1121 = vld [vmem:[#allocation3 + $0x68] sm:$0xff]
      %v1122 = vld [vmem:[#allocation3 + $0x70] sm:$0xff]
      %v1123 = vld [vmem:[#allocation3 + $0x78] sm:$0xff]
      %v1124 = vpack.c.bf16 %v1109, %v1108
      %v1125 = vpack.c.bf16 %v1111, %v1110
      %v1126 = vpack.c.bf16 %v1113, %v1112
      %v1127 = vpack.c.bf16 %v1115, %v1114
      %v1128 = vpack.c.bf16 %v1117, %v1116
      %v1129 = vpack.c.bf16 %v1119, %v1118
      %v1130 = vpack.c.bf16 %v1121, %v1120
      %v1131 = vpack.c.bf16 %v1123, %v1122
      %v1132 = vld [vmem:[%s1] sm:$0xf]
      %vm1133 = vcmask 56320
      %v1135 = vsel %vm1133, %v1124, 0
      %v1138 = vsel %vm1133, %v1125, 0
      %v1141 = vsel %vm1133, %v1126, 0
      %v1144 = vsel %vm1133, %v1127, 0
      %v1147 = vsel %vm1133, %v1128, 0
      %v1150 = vsel %vm1133, %v1129, 0
      %v1153 = vsel %vm1133, %v1130, 0
      %v1156 = vsel %vm1133, %v1131, 0
      %vm1158 = vcmask 1042432
      %vm1159 = vcmask 1043456
      %v1160 = vsel %vm1158, 4294967295, 65535
      %v1161 = vsel %vm1159, %v1160, 0
      %v1163 = vand.u32 %v1132, %v1161
      %1165 = vmatpush.bf16.msra.mxu0 0
      %1166 = vmatpush.bf16.msra.mxu0 0
      %1167 = vmatpush.bf16.msra.mxu0 0
      %1168 = vmatpush.bf16.msra.mxu0 0
      %1169 = vmatpush.bf16.msra.mxu0 0
      %1170 = vmatpush.bf16.msra.mxu0 0
      %1171 = vmatpush.bf16.msra.mxu0 0
      %1172 = vmatpush.bf16.msra.mxu0 %v1163
      %1173 = vmatmul.bf16.gmra.mxu0 %v1135
      %v1174 = vpop.f32.mrf.mxu0
      %v1175 = vadd.f32 0.0, %v1174
      %v1176 = vpop.f32.mrf.mxu0
      %v1177 = vadd.f32 0.0, %v1176
      %1178 = vmatmul.bf16.gmra.mxu0 %v1138
      %v1179 = vpop.f32.mrf.mxu0
      %v1180 = vadd.f32 0.0, %v1179
      %v1181 = vpop.f32.mrf.mxu0
      %v1182 = vadd.f32 0.0, %v1181
      %1183 = vmatmul.bf16.gmra.mxu0 %v1141
      %v1184 = vpop.f32.mrf.mxu0
      %v1185 = vadd.f32 0.0, %v1184
      %v1186 = vpop.f32.mrf.mxu0
      %v1187 = vadd.f32 0.0, %v1186
      %1188 = vmatmul.bf16.gmra.mxu0 %v1144
      %v1189 = vpop.f32.mrf.mxu0
      %v1190 = vadd.f32 0.0, %v1189
      %v1191 = vpop.f32.mrf.mxu0
      %v1192 = vadd.f32 0.0, %v1191
      %1193 = vmatmul.bf16.gmra.mxu0 %v1147
      %v1194 = vpop.f32.mrf.mxu0
      %v1195 = vadd.f32 0.0, %v1194
      %v1196 = vpop.f32.mrf.mxu0
      %v1197 = vadd.f32 0.0, %v1196
      %1198 = vmatmul.bf16.gmra.mxu0 %v1150
      %v1199 = vpop.f32.mrf.mxu0
      %v1200 = vadd.f32 0.0, %v1199
      %v1201 = vpop.f32.mrf.mxu0
      %v1202 = vadd.f32 0.0, %v1201
      %1203 = vmatmul.bf16.gmra.mxu0 %v1153
      %v1204 = vpop.f32.mrf.mxu0
      %v1205 = vadd.f32 0.0, %v1204
      %v1206 = vpop.f32.mrf.mxu0
      %v1207 = vadd.f32 0.0, %v1206
      %1208 = vmatmul.bf16.gmra.mxu0 %v1156
      %v1209 = vpop.f32.mrf.mxu0
      %v1210 = vadd.f32 0.0, %v1209
      %v1211 = vpop.f32.mrf.mxu0
      %v1212 = vadd.f32 0.0, %v1211
      %1213 = vdwg.mxu0
      %v1214 = vld [vmem:[%s2] sm:$0x1]
      %v1216 = vperm.slane %v1214, 0
      %v1218 = vmul.f32 %v1175, %v1216
      %v1219 = vmul.f32 %v1177, %v1216
      %v1220 = vmul.f32 %v1180, %v1216
      %v1221 = vmul.f32 %v1182, %v1216
      %v1222 = vmul.f32 %v1185, %v1216
      %v1223 = vmul.f32 %v1187, %v1216
      %v1224 = vmul.f32 %v1190, %v1216
      %v1225 = vmul.f32 %v1192, %v1216
      %v1226 = vmul.f32 %v1195, %v1216
      %v1227 = vmul.f32 %v1197, %v1216
      %v1228 = vmul.f32 %v1200, %v1216
      %v1229 = vmul.f32 %v1202, %v1216
      %v1230 = vmul.f32 %v1205, %v1216
      %v1231 = vmul.f32 %v1207, %v1216
      %v1232 = vmul.f32 %v1210, %v1216
      %v1233 = vmul.f32 %v1212, %v1216
      %v1234 = vld [vmem:[%s3] sm:$0x1]
      %v1236 = vperm.slane %v1234, 0
      %v1238 = vadd.f32 %v1218, %v1236
      %v1239 = vadd.f32 %v1219, %v1236
      %v1240 = vadd.f32 %v1220, %v1236
      %v1241 = vadd.f32 %v1221, %v1236
      %v1242 = vadd.f32 %v1222, %v1236
      %v1243 = vadd.f32 %v1223, %v1236
      %v1244 = vadd.f32 %v1224, %v1236
      %v1245 = vadd.f32 %v1225, %v1236
      %v1246 = vadd.f32 %v1226, %v1236
      %v1247 = vadd.f32 %v1227, %v1236
      %v1248 = vadd.f32 %v1228, %v1236
      %v1249 = vadd.f32 %v1229, %v1236
      %v1250 = vadd.f32 %v1230, %v1236
      %v1251 = vadd.f32 %v1231, %v1236
      %v1252 = vadd.f32 %v1232, %v1236
      %v1253 = vadd.f32 %v1233, %v1236
      %v1254 = vmax.f32 %v1238, 0.0
      %v1255 = vmax.f32 %v1239, 0.0
      %v1256 = vmax.f32 %v1240, 0.0
      %v1257 = vmax.f32 %v1241, 0.0
      %v1258 = vmax.f32 %v1242, 0.0
      %v1259 = vmax.f32 %v1243, 0.0
      %v1260 = vmax.f32 %v1244, 0.0
      %v1261 = vmax.f32 %v1245, 0.0
      %v1262 = vmax.f32 %v1246, 0.0
      %v1263 = vmax.f32 %v1247, 0.0
      %v1264 = vmax.f32 %v1248, 0.0
      %v1265 = vmax.f32 %v1249, 0.0
      %v1266 = vmax.f32 %v1250, 0.0
      %v1267 = vmax.f32 %v1251, 0.0
      %v1268 = vmax.f32 %v1252, 0.0
      %v1269 = vmax.f32 %v1253, 0.0
      %1270 = vst.msk [vmem:[#allocation2] sm:$0xff] %vm458, 0.0
      %1271 = vst.msk [vmem:[#allocation2 + $0x8] sm:$0xff] %vm458, 0.0
      %1272 = vst.msk [vmem:[#allocation2 + $0x10] sm:$0xff] %vm458, 0.0
      %1273 = vst.msk [vmem:[#allocation2 + $0x18] sm:$0xff] %vm458, 0.0
      %1274 = vst.msk [vmem:[#allocation2 + $0x20] sm:$0xff] %vm458, 0.0
      %1275 = vst.msk [vmem:[#allocation2 + $0x28] sm:$0xff] %vm458, 0.0
      %1276 = vst.msk [vmem:[#allocation2 + $0x30] sm:$0xff] %vm458, 0.0
      %1277 = vst.msk [vmem:[#allocation2 + $0x38] sm:$0xff] %vm458, 0.0
      %1278 = vst.msk [vmem:[#allocation2 + $0x40] sm:$0xff] %vm458, 0.0
      %1279 = vst.msk [vmem:[#allocation2 + $0x48] sm:$0xff] %vm458, 0.0
      %1280 = vst.msk [vmem:[#allocation2 + $0x50] sm:$0xff] %vm458, 0.0
      %1281 = vst.msk [vmem:[#allocation2 + $0x58] sm:$0xff] %vm458, 0.0
      %1282 = vst.msk [vmem:[#allocation2 + $0x60] sm:$0xff] %vm458, 0.0
      %1283 = vst.msk [vmem:[#allocation2 + $0x68] sm:$0xff] %vm458, 0.0
      %1284 = vst.msk [vmem:[#allocation2 + $0x70] sm:$0xff] %vm458, 0.0
      %1285 = vst.msk [vmem:[#allocation2 + $0x78] sm:$0xff] %vm458, 0.0
      %1286 = vst.msk [vmem:[#allocation2 + $0x80] sm:$0x3f] %vm475, 0.0
      %vm1287 = vcmask 64512
      %1288 = vst.msk [vmem:[#allocation2 + $0x2] sm:$0xff] %vm1287, %v1254
      %1289 = vst.msk [vmem:[#allocation2 + $0xa] sm:$0xff] %vm1287, %v1255
      %1290 = vst.msk [vmem:[#allocation2 + $0x12] sm:$0xff] %vm1287, %v1256
      %1291 = vst.msk [vmem:[#allocation2 + $0x1a] sm:$0xff] %vm1287, %v1257
      %1292 = vst.msk [vmem:[#allocation2 + $0x22] sm:$0xff] %vm1287, %v1258
      %1293 = vst.msk [vmem:[#allocation2 + $0x2a] sm:$0xff] %vm1287, %v1259
      %1294 = vst.msk [vmem:[#allocation2 + $0x32] sm:$0xff] %vm1287, %v1260
      %1295 = vst.msk [vmem:[#allocation2 + $0x3a] sm:$0xff] %vm1287, %v1261
      %1296 = vst.msk [vmem:[#allocation2 + $0x42] sm:$0xff] %vm1287, %v1262
      %1297 = vst.msk [vmem:[#allocation2 + $0x4a] sm:$0xff] %vm1287, %v1263
      %1298 = vst.msk [vmem:[#allocation2 + $0x52] sm:$0xff] %vm1287, %v1264
      %1299 = vst.msk [vmem:[#allocation2 + $0x5a] sm:$0xff] %vm1287, %v1265
      %1300 = vst.msk [vmem:[#allocation2 + $0x62] sm:$0xff] %vm1287, %v1266
      %1301 = vst.msk [vmem:[#allocation2 + $0x6a] sm:$0xff] %vm1287, %v1267
      %1302 = vst.msk [vmem:[#allocation2 + $0x72] sm:$0xff] %vm1287, %v1268
      %1303 = vst.msk [vmem:[#allocation2 + $0x7a] sm:$0xff] %vm1287, %v1269
      %v1304 = vld [vmem:[#allocation2] sm:$0xff]
      %v1305 = vld [vmem:[#allocation2 + $0x8] sm:$0xff]
      %v1306 = vld [vmem:[#allocation2 + $0x10] sm:$0xff]
      %v1307 = vld [vmem:[#allocation2 + $0x18] sm:$0xff]
      %v1308 = vld [vmem:[#allocation2 + $0x20] sm:$0xff]
      %v1309 = vld [vmem:[#allocation2 + $0x28] sm:$0xff]
      %v1310 = vld [vmem:[#allocation2 + $0x30] sm:$0xff]
      %v1311 = vld [vmem:[#allocation2 + $0x38] sm:$0xff]
      %v1312 = vld [vmem:[#allocation2 + $0x40] sm:$0xff]
      %v1313 = vld [vmem:[#allocation2 + $0x48] sm:$0xff]
      %v1314 = vld [vmem:[#allocation2 + $0x50] sm:$0xff]
      %v1315 = vld [vmem:[#allocation2 + $0x58] sm:$0xff]
      %v1316 = vld [vmem:[#allocation2 + $0x60] sm:$0xff]
      %v1317 = vld [vmem:[#allocation2 + $0x68] sm:$0xff]
      %v1318 = vld [vmem:[#allocation2 + $0x70] sm:$0xff]
      %v1319 = vld [vmem:[#allocation2 + $0x78] sm:$0xff]
      %1320 = vst.msk [vmem:[#allocation3] sm:$0xff] %vm1287, %v1304
      %1321 = vst.msk [vmem:[#allocation3 + $0x8] sm:$0xff] %vm1287, %v1305
      %1322 = vst.msk [vmem:[#allocation3 + $0x10] sm:$0xff] %vm1287, %v1306
      %1323 = vst.msk [vmem:[#allocation3 + $0x18] sm:$0xff] %vm1287, %v1307
      %1324 = vst.msk [vmem:[#allocation3 + $0x20] sm:$0xff] %vm1287, %v1308
      %1325 = vst.msk [vmem:[#allocation3 + $0x28] sm:$0xff] %vm1287, %v1309
      %1326 = vst.msk [vmem:[#allocation3 + $0x30] sm:$0xff] %vm1287, %v1310
      %1327 = vst.msk [vmem:[#allocation3 + $0x38] sm:$0xff] %vm1287, %v1311
      %1328 = vst.msk [vmem:[#allocation3 + $0x40] sm:$0xff] %vm1287, %v1312
      %1329 = vst.msk [vmem:[#allocation3 + $0x48] sm:$0xff] %vm1287, %v1313
      %1330 = vst.msk [vmem:[#allocation3 + $0x50] sm:$0xff] %vm1287, %v1314
      %1331 = vst.msk [vmem:[#allocation3 + $0x58] sm:$0xff] %vm1287, %v1315
      %1332 = vst.msk [vmem:[#allocation3 + $0x60] sm:$0xff] %vm1287, %v1316
      %1333 = vst.msk [vmem:[#allocation3 + $0x68] sm:$0xff] %vm1287, %v1317
      %1334 = vst.msk [vmem:[#allocation3 + $0x70] sm:$0xff] %vm1287, %v1318
      %1335 = vst.msk [vmem:[#allocation3 + $0x78] sm:$0xff] %vm1287, %v1319
      %v1336 = vld [vmem:[#allocation2 + $0x1] sm:$0xff]
      %v1337 = vld [vmem:[#allocation2 + $0x9] sm:$0xff]
      %v1338 = vld [vmem:[#allocation2 + $0x11] sm:$0xff]
      %v1339 = vld [vmem:[#allocation2 + $0x19] sm:$0xff]
      %v1340 = vld [vmem:[#allocation2 + $0x21] sm:$0xff]
      %v1341 = vld [vmem:[#allocation2 + $0x29] sm:$0xff]
      %v1342 = vld [vmem:[#allocation2 + $0x31] sm:$0xff]
      %v1343 = vld [vmem:[#allocation2 + $0x39] sm:$0xff]
      %v1344 = vld [vmem:[#allocation2 + $0x41] sm:$0xff]
      %v1345 = vld [vmem:[#allocation2 + $0x49] sm:$0xff]
      %v1346 = vld [vmem:[#allocation2 + $0x51] sm:$0xff]
      %v1347 = vld [vmem:[#allocation2 + $0x59] sm:$0xff]
      %v1348 = vld [vmem:[#allocation2 + $0x61] sm:$0xff]
      %v1349 = vld [vmem:[#allocation2 + $0x69] sm:$0xff]
      %v1350 = vld [vmem:[#allocation2 + $0x71] sm:$0xff]
      %v1351 = vld [vmem:[#allocation2 + $0x79] sm:$0xff]
      %1368 = vrot.lane.b32.xlu0 %v1336, 8
      %v1369 = vpop.permute.xlu0 %1368
      %1370 = vrot.lane.b32.xlu0 %v1337, 8
      %v1371 = vpop.permute.xlu0 %1370
      %1372 = vrot.lane.b32.xlu0 %v1338, 8
      %v1373 = vpop.permute.xlu0 %1372
      %1374 = vrot.lane.b32.xlu0 %v1339, 8
      %v1375 = vpop.permute.xlu0 %1374
      %1376 = vrot.lane.b32.xlu0 %v1340, 8
      %v1377 = vpop.permute.xlu0 %1376
      %1378 = vrot.lane.b32.xlu0 %v1341, 8
      %v1379 = vpop.permute.xlu0 %1378
      %1380 = vrot.lane.b32.xlu0 %v1342, 8
      %v1381 = vpop.permute.xlu0 %1380
      %1382 = vrot.lane.b32.xlu0 %v1343, 8
      %v1383 = vpop.permute.xlu0 %1382
      %1384 = vrot.lane.b32.xlu0 %v1344, 8
      %v1385 = vpop.permute.xlu0 %1384
      %1386 = vrot.lane.b32.xlu0 %v1345, 8
      %v1387 = vpop.permute.xlu0 %1386
      %1388 = vrot.lane.b32.xlu0 %v1346, 8
      %v1389 = vpop.permute.xlu0 %1388
      %1390 = vrot.lane.b32.xlu0 %v1347, 8
      %v1391 = vpop.permute.xlu0 %1390
      %1392 = vrot.lane.b32.xlu0 %v1348, 8
      %v1393 = vpop.permute.xlu0 %1392
      %1394 = vrot.lane.b32.xlu0 %v1349, 8
      %v1395 = vpop.permute.xlu0 %1394
      %1396 = vrot.lane.b32.xlu0 %v1350, 8
      %v1397 = vpop.permute.xlu0 %1396
      %1398 = vrot.lane.b32.xlu0 %v1351, 8
      %v1399 = vpop.permute.xlu0 %1398
      %vm1416 = vcmask 130112
      %1417 = vst.msk [vmem:[#allocation3] sm:$0xff] %vm1416, %v1369
      %1418 = vst.msk [vmem:[#allocation3 + $0x8] sm:$0xff] %vm1416, %v1371
      %1419 = vst.msk [vmem:[#allocation3 + $0x10] sm:$0xff] %vm1416, %v1373
      %1420 = vst.msk [vmem:[#allocation3 + $0x18] sm:$0xff] %vm1416, %v1375
      %1421 = vst.msk [vmem:[#allocation3 + $0x20] sm:$0xff] %vm1416, %v1377
      %1422 = vst.msk [vmem:[#allocation3 + $0x28] sm:$0xff] %vm1416, %v1379
      %1423 = vst.msk [vmem:[#allocation3 + $0x30] sm:$0xff] %vm1416, %v1381
      %1424 = vst.msk [vmem:[#allocation3 + $0x38] sm:$0xff] %vm1416, %v1383
      %1425 = vst.msk [vmem:[#allocation3 + $0x40] sm:$0xff] %vm1416, %v1385
      %1426 = vst.msk [vmem:[#allocation3 + $0x48] sm:$0xff] %vm1416, %v1387
      %1427 = vst.msk [vmem:[#allocation3 + $0x50] sm:$0xff] %vm1416, %v1389
      %1428 = vst.msk [vmem:[#allocation3 + $0x58] sm:$0xff] %vm1416, %v1391
      %1429 = vst.msk [vmem:[#allocation3 + $0x60] sm:$0xff] %vm1416, %v1393
      %1430 = vst.msk [vmem:[#allocation3 + $0x68] sm:$0xff] %vm1416, %v1395
      %1431 = vst.msk [vmem:[#allocation3 + $0x70] sm:$0xff] %vm1416, %v1397
      %1432 = vst.msk [vmem:[#allocation3 + $0x78] sm:$0xff] %vm1416, %v1399
      %v1433 = vld [vmem:[#allocation2 + $0x2] sm:$0xff]
      %v1434 = vld [vmem:[#allocation2 + $0xa] sm:$0xff]
      %v1435 = vld [vmem:[#allocation2 + $0x12] sm:$0xff]
      %v1436 = vld [vmem:[#allocation2 + $0x1a] sm:$0xff]
      %v1437 = vld [vmem:[#allocation2 + $0x22] sm:$0xff]
      %v1438 = vld [vmem:[#allocation2 + $0x2a] sm:$0xff]
      %v1439 = vld [vmem:[#allocation2 + $0x32] sm:$0xff]
      %v1440 = vld [vmem:[#allocation2 + $0x3a] sm:$0xff]
      %v1441 = vld [vmem:[#allocation2 + $0x42] sm:$0xff]
      %v1442 = vld [vmem:[#allocation2 + $0x4a] sm:$0xff]
      %v1443 = vld [vmem:[#allocation2 + $0x52] sm:$0xff]
      %v1444 = vld [vmem:[#allocation2 + $0x5a] sm:$0xff]
      %v1445 = vld [vmem:[#allocation2 + $0x62] sm:$0xff]
      %v1446 = vld [vmem:[#allocation2 + $0x6a] sm:$0xff]
      %v1447 = vld [vmem:[#allocation2 + $0x72] sm:$0xff]
      %v1448 = vld [vmem:[#allocation2 + $0x7a] sm:$0xff]
      %1465 = vrot.lane.b32.xlu0 %v1433, 16
      %v1466 = vpop.permute.xlu0 %1465
      %1467 = vrot.lane.b32.xlu0 %v1434, 16
      %v1468 = vpop.permute.xlu0 %1467
      %1469 = vrot.lane.b32.xlu0 %v1435, 16
      %v1470 = vpop.permute.xlu0 %1469
      %1471 = vrot.lane.b32.xlu0 %v1436, 16
      %v1472 = vpop.permute.xlu0 %1471
      %1473 = vrot.lane.b32.xlu0 %v1437, 16
      %v1474 = vpop.permute.xlu0 %1473
      %1475 = vrot.lane.b32.xlu0 %v1438, 16
      %v1476 = vpop.permute.xlu0 %1475
      %1477 = vrot.lane.b32.xlu0 %v1439, 16
      %v1478 = vpop.permute.xlu0 %1477
      %1479 = vrot.lane.b32.xlu0 %v1440, 16
      %v1480 = vpop.permute.xlu0 %1479
      %1481 = vrot.lane.b32.xlu0 %v1441, 16
      %v1482 = vpop.permute.xlu0 %1481
      %1483 = vrot.lane.b32.xlu0 %v1442, 16
      %v1484 = vpop.permute.xlu0 %1483
      %1485 = vrot.lane.b32.xlu0 %v1443, 16
      %v1486 = vpop.permute.xlu0 %1485
      %1487 = vrot.lane.b32.xlu0 %v1444, 16
      %v1488 = vpop.permute.xlu0 %1487
      %1489 = vrot.lane.b32.xlu0 %v1445, 16
      %v1490 = vpop.permute.xlu0 %1489
      %1491 = vrot.lane.b32.xlu0 %v1446, 16
      %v1492 = vpop.permute.xlu0 %1491
      %1493 = vrot.lane.b32.xlu0 %v1447, 16
      %v1494 = vpop.permute.xlu0 %1493
      %1495 = vrot.lane.b32.xlu0 %v1448, 16
      %v1496 = vpop.permute.xlu0 %1495
      %vm1513 = vcmask 195712
      %1514 = vst.msk [vmem:[#allocation3] sm:$0xff] %vm1513, %v1466
      %1515 = vst.msk [vmem:[#allocation3 + $0x8] sm:$0xff] %vm1513, %v1468
      %1516 = vst.msk [vmem:[#allocation3 + $0x10] sm:$0xff] %vm1513, %v1470
      %1517 = vst.msk [vmem:[#allocation3 + $0x18] sm:$0xff] %vm1513, %v1472
      %1518 = vst.msk [vmem:[#allocation3 + $0x20] sm:$0xff] %vm1513, %v1474
      %1519 = vst.msk [vmem:[#allocation3 + $0x28] sm:$0xff] %vm1513, %v1476
      %1520 = vst.msk [vmem:[#allocation3 + $0x30] sm:$0xff] %vm1513, %v1478
      %1521 = vst.msk [vmem:[#allocation3 + $0x38] sm:$0xff] %vm1513, %v1480
      %1522 = vst.msk [vmem:[#allocation3 + $0x40] sm:$0xff] %vm1513, %v1482
      %1523 = vst.msk [vmem:[#allocation3 + $0x48] sm:$0xff] %vm1513, %v1484
      %1524 = vst.msk [vmem:[#allocation3 + $0x50] sm:$0xff] %vm1513, %v1486
      %1525 = vst.msk [vmem:[#allocation3 + $0x58] sm:$0xff] %vm1513, %v1488
      %1526 = vst.msk [vmem:[#allocation3 + $0x60] sm:$0xff] %vm1513, %v1490
      %1527 = vst.msk [vmem:[#allocation3 + $0x68] sm:$0xff] %vm1513, %v1492
      %1528 = vst.msk [vmem:[#allocation3 + $0x70] sm:$0xff] %vm1513, %v1494
      %1529 = vst.msk [vmem:[#allocation3 + $0x78] sm:$0xff] %vm1513, %v1496
      %v1530 = vld [vmem:[#allocation2 + $0x3] sm:$0xff]
      %v1531 = vld [vmem:[#allocation2 + $0xb] sm:$0xff]
      %v1532 = vld [vmem:[#allocation2 + $0x13] sm:$0xff]
      %v1533 = vld [vmem:[#allocation2 + $0x1b] sm:$0xff]
      %v1534 = vld [vmem:[#allocation2 + $0x23] sm:$0xff]
      %v1535 = vld [vmem:[#allocation2 + $0x2b] sm:$0xff]
      %v1536 = vld [vmem:[#allocation2 + $0x33] sm:$0xff]
      %v1537 = vld [vmem:[#allocation2 + $0x3b] sm:$0xff]
      %v1538 = vld [vmem:[#allocation2 + $0x43] sm:$0xff]
      %v1539 = vld [vmem:[#allocation2 + $0x4b] sm:$0xff]
      %v1540 = vld [vmem:[#allocation2 + $0x53] sm:$0xff]
      %v1541 = vld [vmem:[#allocation2 + $0x5b] sm:$0xff]
      %v1542 = vld [vmem:[#allocation2 + $0x63] sm:$0xff]
      %v1543 = vld [vmem:[#allocation2 + $0x6b] sm:$0xff]
      %v1544 = vld [vmem:[#allocation2 + $0x73] sm:$0xff]
      %v1545 = vld [vmem:[#allocation2 + $0x7b] sm:$0xff]
      %1562 = vrot.lane.b32.xlu0 %v1530, 24
      %v1563 = vpop.permute.xlu0 %1562
      %1564 = vrot.lane.b32.xlu0 %v1531, 24
      %v1565 = vpop.permute.xlu0 %1564
      %1566 = vrot.lane.b32.xlu0 %v1532, 24
      %v1567 = vpop.permute.xlu0 %1566
      %1568 = vrot.lane.b32.xlu0 %v1533, 24
      %v1569 = vpop.permute.xlu0 %1568
      %1570 = vrot.lane.b32.xlu0 %v1534, 24
      %v1571 = vpop.permute.xlu0 %1570
      %1572 = vrot.lane.b32.xlu0 %v1535, 24
      %v1573 = vpop.permute.xlu0 %1572
      %1574 = vrot.lane.b32.xlu0 %v1536, 24
      %v1575 = vpop.permute.xlu0 %1574
      %1576 = vrot.lane.b32.xlu0 %v1537, 24
      %v1577 = vpop.permute.xlu0 %1576
      %1578 = vrot.lane.b32.xlu0 %v1538, 24
      %v1579 = vpop.permute.xlu0 %1578
      %1580 = vrot.lane.b32.xlu0 %v1539, 24
      %v1581 = vpop.permute.xlu0 %1580
      %1582 = vrot.lane.b32.xlu0 %v1540, 24
      %v1583 = vpop.permute.xlu0 %1582
      %1584 = vrot.lane.b32.xlu0 %v1541, 24
      %v1585 = vpop.permute.xlu0 %1584
      %1586 = vrot.lane.b32.xlu0 %v1542, 24
      %v1587 = vpop.permute.xlu0 %1586
      %1588 = vrot.lane.b32.xlu0 %v1543, 24
      %v1589 = vpop.permute.xlu0 %1588
      %1590 = vrot.lane.b32.xlu0 %v1544, 24
      %v1591 = vpop.permute.xlu0 %1590
      %1592 = vrot.lane.b32.xlu0 %v1545, 24
      %v1593 = vpop.permute.xlu0 %1592
      %vm1610 = vcmask 261312
      %1611 = vst.msk [vmem:[#allocation3] sm:$0xff] %vm1610, %v1563
      %1612 = vst.msk [vmem:[#allocation3 + $0x8] sm:$0xff] %vm1610, %v1565
      %1613 = vst.msk [vmem:[#allocation3 + $0x10] sm:$0xff] %vm1610, %v1567
      %1614 = vst.msk [vmem:[#allocation3 + $0x18] sm:$0xff] %vm1610, %v1569
      %1615 = vst.msk [vmem:[#allocation3 + $0x20] sm:$0xff] %vm1610, %v1571
      %1616 = vst.msk [vmem:[#allocation3 + $0x28] sm:$0xff] %vm1610, %v1573
      %1617 = vst.msk [vmem:[#allocation3 + $0x30] sm:$0xff] %vm1610, %v1575
      %1618 = vst.msk [vmem:[#allocation3 + $0x38] sm:$0xff] %vm1610, %v1577
      %1619 = vst.msk [vmem:[#allocation3 + $0x40] sm:$0xff] %vm1610, %v1579
      %1620 = vst.msk [vmem:[#allocation3 + $0x48] sm:$0xff] %vm1610, %v1581
      %1621 = vst.msk [vmem:[#allocation3 + $0x50] sm:$0xff] %vm1610, %v1583
      %1622 = vst.msk [vmem:[#allocation3 + $0x58] sm:$0xff] %vm1610, %v1585
      %1623 = vst.msk [vmem:[#allocation3 + $0x60] sm:$0xff] %vm1610, %v1587
      %1624 = vst.msk [vmem:[#allocation3 + $0x68] sm:$0xff] %vm1610, %v1589
      %1625 = vst.msk [vmem:[#allocation3 + $0x70] sm:$0xff] %vm1610, %v1591
      %1626 = vst.msk [vmem:[#allocation3 + $0x78] sm:$0xff] %vm1610, %v1593
      %v1627 = vld [vmem:[#allocation2 + $0x4] sm:$0xff]
      %v1628 = vld [vmem:[#allocation2 + $0xc] sm:$0xff]
      %v1629 = vld [vmem:[#allocation2 + $0x14] sm:$0xff]
      %v1630 = vld [vmem:[#allocation2 + $0x1c] sm:$0xff]
      %v1631 = vld [vmem:[#allocation2 + $0x24] sm:$0xff]
      %v1632 = vld [vmem:[#allocation2 + $0x2c] sm:$0xff]
      %v1633 = vld [vmem:[#allocation2 + $0x34] sm:$0xff]
      %v1634 = vld [vmem:[#allocation2 + $0x3c] sm:$0xff]
      %v1635 = vld [vmem:[#allocation2 + $0x44] sm:$0xff]
      %v1636 = vld [vmem:[#allocation2 + $0x4c] sm:$0xff]
      %v1637 = vld [vmem:[#allocation2 + $0x54] sm:$0xff]
      %v1638 = vld [vmem:[#allocation2 + $0x5c] sm:$0xff]
      %v1639 = vld [vmem:[#allocation2 + $0x64] sm:$0xff]
      %v1640 = vld [vmem:[#allocation2 + $0x6c] sm:$0xff]
      %v1641 = vld [vmem:[#allocation2 + $0x74] sm:$0xff]
      %v1642 = vld [vmem:[#allocation2 + $0x7c] sm:$0xff]
      %1659 = vrot.lane.b32.xlu0 %v1627, 32
      %v1660 = vpop.permute.xlu0 %1659
      %1661 = vrot.lane.b32.xlu0 %v1628, 32
      %v1662 = vpop.permute.xlu0 %1661
      %1663 = vrot.lane.b32.xlu0 %v1629, 32
      %v1664 = vpop.permute.xlu0 %1663
      %1665 = vrot.lane.b32.xlu0 %v1630, 32
      %v1666 = vpop.permute.xlu0 %1665
      %1667 = vrot.lane.b32.xlu0 %v1631, 32
      %v1668 = vpop.permute.xlu0 %1667
      %1669 = vrot.lane.b32.xlu0 %v1632, 32
      %v1670 = vpop.permute.xlu0 %1669
      %1671 = vrot.lane.b32.xlu0 %v1633, 32
      %v1672 = vpop.permute.xlu0 %1671
      %1673 = vrot.lane.b32.xlu0 %v1634, 32
      %v1674 = vpop.permute.xlu0 %1673
      %1675 = vrot.lane.b32.xlu0 %v1635, 32
      %v1676 = vpop.permute.xlu0 %1675
      %1677 = vrot.lane.b32.xlu0 %v1636, 32
      %v1678 = vpop.permute.xlu0 %1677
      %1679 = vrot.lane.b32.xlu0 %v1637, 32
      %v1680 = vpop.permute.xlu0 %1679
      %1681 = vrot.lane.b32.xlu0 %v1638, 32
      %v1682 = vpop.permute.xlu0 %1681
      %1683 = vrot.lane.b32.xlu0 %v1639, 32
      %v1684 = vpop.permute.xlu0 %1683
      %1685 = vrot.lane.b32.xlu0 %v1640, 32
      %v1686 = vpop.permute.xlu0 %1685
      %1687 = vrot.lane.b32.xlu0 %v1641, 32
      %v1688 = vpop.permute.xlu0 %1687
      %1689 = vrot.lane.b32.xlu0 %v1642, 32
      %v1690 = vpop.permute.xlu0 %1689
      %vm1707 = vcmask 326912
      %1708 = vst.msk [vmem:[#allocation3] sm:$0xff] %vm1707, %v1660
      %1709 = vst.msk [vmem:[#allocation3 + $0x8] sm:$0xff] %vm1707, %v1662
      %1710 = vst.msk [vmem:[#allocation3 + $0x10] sm:$0xff] %vm1707, %v1664
      %1711 = vst.msk [vmem:[#allocation3 + $0x18] sm:$0xff] %vm1707, %v1666
      %1712 = vst.msk [vmem:[#allocation3 + $0x20] sm:$0xff] %vm1707, %v1668
      %1713 = vst.msk [vmem:[#allocation3 + $0x28] sm:$0xff] %vm1707, %v1670
      %1714 = vst.msk [vmem:[#allocation3 + $0x30] sm:$0xff] %vm1707, %v1672
      %1715 = vst.msk [vmem:[#allocation3 + $0x38] sm:$0xff] %vm1707, %v1674
      %1716 = vst.msk [vmem:[#allocation3 + $0x40] sm:$0xff] %vm1707, %v1676
      %1717 = vst.msk [vmem:[#allocation3 + $0x48] sm:$0xff] %vm1707, %v1678
      %1718 = vst.msk [vmem:[#allocation3 + $0x50] sm:$0xff] %vm1707, %v1680
      %1719 = vst.msk [vmem:[#allocation3 + $0x58] sm:$0xff] %vm1707, %v1682
      %1720 = vst.msk [vmem:[#allocation3 + $0x60] sm:$0xff] %vm1707, %v1684
      %1721 = vst.msk [vmem:[#allocation3 + $0x68] sm:$0xff] %vm1707, %v1686
      %1722 = vst.msk [vmem:[#allocation3 + $0x70] sm:$0xff] %vm1707, %v1688
      %1723 = vst.msk [vmem:[#allocation3 + $0x78] sm:$0xff] %vm1707, %v1690
      %v1724 = vld [vmem:[#allocation3] sm:$0xff]
      %v1725 = vld [vmem:[#allocation3 + $0x8] sm:$0xff]
      %v1726 = vld [vmem:[#allocation3 + $0x10] sm:$0xff]
      %v1727 = vld [vmem:[#allocation3 + $0x18] sm:$0xff]
      %v1728 = vld [vmem:[#allocation3 + $0x20] sm:$0xff]
      %v1729 = vld [vmem:[#allocation3 + $0x28] sm:$0xff]
      %v1730 = vld [vmem:[#allocation3 + $0x30] sm:$0xff]
      %v1731 = vld [vmem:[#allocation3 + $0x38] sm:$0xff]
      %v1732 = vld [vmem:[#allocation3 + $0x40] sm:$0xff]
      %v1733 = vld [vmem:[#allocation3 + $0x48] sm:$0xff]
      %v1734 = vld [vmem:[#allocation3 + $0x50] sm:$0xff]
      %v1735 = vld [vmem:[#allocation3 + $0x58] sm:$0xff]
      %v1736 = vld [vmem:[#allocation3 + $0x60] sm:$0xff]
      %v1737 = vld [vmem:[#allocation3 + $0x68] sm:$0xff]
      %v1738 = vld [vmem:[#allocation3 + $0x70] sm:$0xff]
      %v1739 = vld [vmem:[#allocation3 + $0x78] sm:$0xff]
      %v1740 = vpack.c.bf16 %v1725, %v1724
      %v1741 = vpack.c.bf16 %v1727, %v1726
      %v1742 = vpack.c.bf16 %v1729, %v1728
      %v1743 = vpack.c.bf16 %v1731, %v1730
      %v1744 = vpack.c.bf16 %v1733, %v1732
      %v1745 = vpack.c.bf16 %v1735, %v1734
      %v1746 = vpack.c.bf16 %v1737, %v1736
      %v1747 = vpack.c.bf16 %v1739, %v1738
      %v1748 = vld [vmem:[%s4] sm:$0xf]
      %v1749 = vld [vmem:[%s4 + $0x4] sm:$0xf]
      %v1750 = vld [vmem:[%s4 + $0x8] sm:$0xf]
      %v1751 = vld [vmem:[%s4 + $0xc] sm:$0xf]
      %v1752 = vld [vmem:[%s4 + $0x10] sm:$0xf]
      %v1758 = vunpack.c.l.b16 %v1748
      %v1759 = vunpack.c.l.b16 %v1749
      %v1760 = vunpack.c.l.b16 %v1750
      %v1761 = vunpack.c.l.b16 %v1751
      %v1762 = vunpack.c.l.b16 %v1752
      %v1763 = vpack.c.b16 %v1759, %v1758
      %v1764 = vpack.c.b16 %v1761, %v1760
      %v1765 = vpack.c.b16 %v1762, %v1762
      %vm1768 = vcmask 326656
      %v1770 = vsel %vm1768, %v1740, 0
      %v1773 = vsel %vm1768, %v1741, 0
      %v1776 = vsel %vm1768, %v1742, 0
      %v1779 = vsel %vm1768, %v1743, 0
      %v1782 = vsel %vm1768, %v1744, 0
      %v1785 = vsel %vm1768, %v1745, 0
      %v1788 = vsel %vm1768, %v1746, 0
      %v1791 = vsel %vm1768, %v1747, 0
      %v1794 = vsel %vm1159, %v1765, 0
      %1796 = vmatpush.bf16.msra.mxu0 0
      %1797 = vmatpush.bf16.msra.mxu0 0
      %1798 = vmatpush.bf16.msra.mxu0 0
      %1799 = vmatpush.bf16.msra.mxu0 0
      %1800 = vmatpush.bf16.msra.mxu0 0
      %1801 = vmatpush.bf16.msra.mxu0 %v1794
      %1802 = vmatpush.bf16.msra.mxu0 %v1764
      %1803 = vmatpush.bf16.msra.mxu0 %v1763
      %1804 = vmatmul.bf16.gmra.mxu0 %v1770
      %v1805 = vpop.f32.mrf.mxu0
      %v1806 = vadd.f32 0.0, %v1805
      %v1807 = vpop.f32.mrf.mxu0
      %v1808 = vadd.f32 0.0, %v1807
      %1809 = vmatmul.bf16.gmra.mxu0 %v1773
      %v1810 = vpop.f32.mrf.mxu0
      %v1811 = vadd.f32 0.0, %v1810
      %v1812 = vpop.f32.mrf.mxu0
      %v1813 = vadd.f32 0.0, %v1812
      %1814 = vmatmul.bf16.gmra.mxu0 %v1776
      %v1815 = vpop.f32.mrf.mxu0
      %v1816 = vadd.f32 0.0, %v1815
      %v1817 = vpop.f32.mrf.mxu0
      %v1818 = vadd.f32 0.0, %v1817
      %1819 = vmatmul.bf16.gmra.mxu0 %v1779
      %v1820 = vpop.f32.mrf.mxu0
      %v1821 = vadd.f32 0.0, %v1820
      %v1822 = vpop.f32.mrf.mxu0
      %v1823 = vadd.f32 0.0, %v1822
      %1824 = vmatmul.bf16.gmra.mxu0 %v1782
      %v1825 = vpop.f32.mrf.mxu0
      %v1826 = vadd.f32 0.0, %v1825
      %v1827 = vpop.f32.mrf.mxu0
      %v1828 = vadd.f32 0.0, %v1827
      %1829 = vmatmul.bf16.gmra.mxu0 %v1785
      %v1830 = vpop.f32.mrf.mxu0
      %v1831 = vadd.f32 0.0, %v1830
      %v1832 = vpop.f32.mrf.mxu0
      %v1833 = vadd.f32 0.0, %v1832
      %1834 = vmatmul.bf16.gmra.mxu0 %v1788
      %v1835 = vpop.f32.mrf.mxu0
      %v1836 = vadd.f32 0.0, %v1835
      %v1837 = vpop.f32.mrf.mxu0
      %v1838 = vadd.f32 0.0, %v1837
      %1839 = vmatmul.bf16.gmra.mxu0 %v1791
      %v1840 = vpop.f32.mrf.mxu0
      %v1841 = vadd.f32 0.0, %v1840
      %v1842 = vpop.f32.mrf.mxu0
      %v1843 = vadd.f32 0.0, %v1842
      %1844 = vdwg.mxu0
      %v1845 = vld [vmem:[%s5] sm:$0x1]
      %v1847 = vperm.slane %v1845, 0
      %v1849 = vmul.f32 %v1806, %v1847
      %v1850 = vmul.f32 %v1808, %v1847
      %v1851 = vmul.f32 %v1811, %v1847
      %v1852 = vmul.f32 %v1813, %v1847
      %v1853 = vmul.f32 %v1816, %v1847
      %v1854 = vmul.f32 %v1818, %v1847
      %v1855 = vmul.f32 %v1821, %v1847
      %v1856 = vmul.f32 %v1823, %v1847
      %v1857 = vmul.f32 %v1826, %v1847
      %v1858 = vmul.f32 %v1828, %v1847
      %v1859 = vmul.f32 %v1831, %v1847
      %v1860 = vmul.f32 %v1833, %v1847
      %v1861 = vmul.f32 %v1836, %v1847
      %v1862 = vmul.f32 %v1838, %v1847
      %v1863 = vmul.f32 %v1841, %v1847
      %v1864 = vmul.f32 %v1843, %v1847
      %v1865 = vld [vmem:[%s6] sm:$0x1]
      %v1867 = vperm.slane %v1865, 0
      %v1869 = vadd.f32 %v1849, %v1867
      %v1870 = vadd.f32 %v1850, %v1867
      %v1871 = vadd.f32 %v1851, %v1867
      %v1872 = vadd.f32 %v1852, %v1867
      %v1873 = vadd.f32 %v1853, %v1867
      %v1874 = vadd.f32 %v1854, %v1867
      %v1875 = vadd.f32 %v1855, %v1867
      %v1876 = vadd.f32 %v1856, %v1867
      %v1877 = vadd.f32 %v1857, %v1867
      %v1878 = vadd.f32 %v1858, %v1867
      %v1879 = vadd.f32 %v1859, %v1867
      %v1880 = vadd.f32 %v1860, %v1867
      %v1881 = vadd.f32 %v1861, %v1867
      %v1882 = vadd.f32 %v1862, %v1867
      %v1883 = vadd.f32 %v1863, %v1867
      %v1884 = vadd.f32 %v1864, %v1867
      %v1885 = vmax.f32 %v1869, 0.0
      %v1886 = vmax.f32 %v1870, 0.0
      %v1887 = vmax.f32 %v1871, 0.0
      %v1888 = vmax.f32 %v1872, 0.0
      %v1889 = vmax.f32 %v1873, 0.0
      %v1890 = vmax.f32 %v1874, 0.0
      %v1891 = vmax.f32 %v1875, 0.0
      %v1892 = vmax.f32 %v1876, 0.0
      %v1893 = vmax.f32 %v1877, 0.0
      %v1894 = vmax.f32 %v1878, 0.0
      %v1895 = vmax.f32 %v1879, 0.0
      %v1896 = vmax.f32 %v1880, 0.0
      %v1897 = vmax.f32 %v1881, 0.0
      %v1898 = vmax.f32 %v1882, 0.0
      %v1899 = vmax.f32 %v1883, 0.0
      %v1900 = vmax.f32 %v1884, 0.0
      %v1901 = vlaneseq
      %v1902 = vshrl.u32 %v1901, 7
      %v1903 = vadd.s32 %v1902, 8
      %v1904 = vadd.s32 %v1902, 16
      %v1905 = vadd.s32 %v1902, 24
      %v1906 = vadd.s32 %v1902, 32
      %v1907 = vadd.s32 %v1902, 40
      %v1908 = vadd.s32 %v1902, 48
      %v1909 = vadd.s32 %v1902, 56
      %v1910 = vlaneseq
      %v1911 = vand.u32 %v1910, 127
      %v1912 = vmul.u32 %v1902, 2
      %v1913 = vmul.u32 %v1903, 2
      %v1914 = vmul.u32 %v1904, 2
      %v1915 = vmul.u32 %v1905, 2
      %v1916 = vmul.u32 %v1906, 2
      %v1917 = vmul.u32 %v1907, 2
      %v1918 = vmul.u32 %v1908, 2
      %v1919 = vmul.u32 %v1909, 2
      %vm1920 = vcmp.eq.s32.totalorder %v1911, %v1912
      %vm1921 = vcmp.eq.s32.totalorder %v1911, %v1913
      %vm1922 = vcmp.eq.s32.totalorder %v1911, %v1914
      %vm1923 = vcmp.eq.s32.totalorder %v1911, %v1915
      %vm1924 = vcmp.eq.s32.totalorder %v1911, %v1916
      %vm1925 = vcmp.eq.s32.totalorder %v1911, %v1917
      %vm1926 = vcmp.eq.s32.totalorder %v1911, %v1918
      %vm1927 = vcmp.eq.s32.totalorder %v1911, %v1919
      %v1928 = vsel %vm1920, 1, 0
      %v1929 = vsel %vm1921, 1, 0
      %v1930 = vsel %vm1922, 1, 0
      %v1931 = vsel %vm1923, 1, 0
      %v1932 = vsel %vm1924, 1, 0
      %v1933 = vsel %vm1925, 1, 0
      %v1934 = vsel %vm1926, 1, 0
      %v1935 = vsel %vm1927, 1, 0
      %v1936 = vcvt.s32.f32 %v1928
      %v1937 = vcvt.s32.f32 %v1929
      %v1938 = vcvt.s32.f32 %v1930
      %v1939 = vcvt.s32.f32 %v1931
      %v1940 = vcvt.s32.f32 %v1932
      %v1941 = vcvt.s32.f32 %v1933
      %v1942 = vcvt.s32.f32 %v1934
      %v1943 = vcvt.s32.f32 %v1935
      %v1944 = vadd.s32 %v1912, 1
      %v1945 = vadd.s32 %v1913, 1
      %v1946 = vadd.s32 %v1914, 1
      %v1947 = vadd.s32 %v1915, 1
      %v1948 = vadd.s32 %v1916, 1
      %v1949 = vadd.s32 %v1917, 1
      %v1950 = vadd.s32 %v1918, 1
      %v1951 = vadd.s32 %v1919, 1
      %vm1952 = vcmp.eq.s32.totalorder %v1911, %v1944
      %vm1953 = vcmp.eq.s32.totalorder %v1911, %v1945
      %vm1954 = vcmp.eq.s32.totalorder %v1911, %v1946
      %vm1955 = vcmp.eq.s32.totalorder %v1911, %v1947
      %vm1956 = vcmp.eq.s32.totalorder %v1911, %v1948
      %vm1957 = vcmp.eq.s32.totalorder %v1911, %v1949
      %vm1958 = vcmp.eq.s32.totalorder %v1911, %v1950
      %vm1959 = vcmp.eq.s32.totalorder %v1911, %v1951
      %v1960 = vsel %vm1952, 1, 0
      %v1961 = vsel %vm1953, 1, 0
      %v1962 = vsel %vm1954, 1, 0
      %v1963 = vsel %vm1955, 1, 0
      %v1964 = vsel %vm1956, 1, 0
      %v1965 = vsel %vm1957, 1, 0
      %v1966 = vsel %vm1958, 1, 0
      %v1967 = vsel %vm1959, 1, 0
      %v1968 = vcvt.s32.f32 %v1960
      %v1969 = vcvt.s32.f32 %v1961
      %v1970 = vcvt.s32.f32 %v1962
      %v1971 = vcvt.s32.f32 %v1963
      %v1972 = vcvt.s32.f32 %v1964
      %v1973 = vcvt.s32.f32 %v1965
      %v1974 = vcvt.s32.f32 %v1966
      %v1975 = vcvt.s32.f32 %v1967
      %1976 = vmatpush.msra.mxu0 %v1900
      %1977 = vmatpush.msra.mxu0 %v1899
      %1978 = vmatpush.msra.mxu0 %v1898
      %1979 = vmatpush.msra.mxu0 %v1897
      %1980 = vmatpush.msra.mxu0 %v1896
      %1981 = vmatpush.msra.mxu0 %v1895
      %1982 = vmatpush.msra.mxu0 %v1894
      %1983 = vmatpush.msra.mxu0 %v1893
      %1984 = vmatpush.msra.mxu0 %v1892
      %1985 = vmatpush.msra.mxu0 %v1891
      %1986 = vmatpush.msra.mxu0 %v1890
      %1987 = vmatpush.msra.mxu0 %v1889
      %1988 = vmatpush.msra.mxu0 %v1888
      %1989 = vmatpush.msra.mxu0 %v1887
      %1990 = vmatpush.msra.mxu0 %v1886
      %1991 = vmatpush.msra.mxu0 %v1885
      %1992 = vmatmul.f32.gmra.mxu0 %v1936
      %v1993 = vpop.f32.mrf.mxu0
      %v1994 = vadd.f32 0.0, %v1993
      %1995 = vmatmul.f32.gmra.mxu0 %v1937
      %v1996 = vpop.f32.mrf.mxu0
      %v1997 = vadd.f32 0.0, %v1996
      %1998 = vmatmul.f32.gmra.mxu0 %v1938
      %v1999 = vpop.f32.mrf.mxu0
      %v2000 = vadd.f32 0.0, %v1999
      %2001 = vmatmul.f32.gmra.mxu0 %v1939
      %v2002 = vpop.f32.mrf.mxu0
      %v2003 = vadd.f32 0.0, %v2002
      %2004 = vmatmul.f32.gmra.mxu0 %v1940
      %v2005 = vpop.f32.mrf.mxu0
      %v2006 = vadd.f32 0.0, %v2005
      %2007 = vmatmul.f32.gmra.mxu0 %v1941
      %v2008 = vpop.f32.mrf.mxu0
      %v2009 = vadd.f32 0.0, %v2008
      %2010 = vmatmul.f32.gmra.mxu0 %v1942
      %v2011 = vpop.f32.mrf.mxu0
      %v2012 = vadd.f32 0.0, %v2011
      %2013 = vmatmul.f32.gmra.mxu0 %v1943
      %v2014 = vpop.f32.mrf.mxu0
      %v2015 = vadd.f32 0.0, %v2014
      %2016 = vdwg.mxu0
      %2017 = vmatpush.msra.mxu0 %v1900
      %2018 = vmatpush.msra.mxu0 %v1899
      %2019 = vmatpush.msra.mxu0 %v1898
      %2020 = vmatpush.msra.mxu0 %v1897
      %2021 = vmatpush.msra.mxu0 %v1896
      %2022 = vmatpush.msra.mxu0 %v1895
      %2023 = vmatpush.msra.mxu0 %v1894
      %2024 = vmatpush.msra.mxu0 %v1893
      %2025 = vmatpush.msra.mxu0 %v1892
      %2026 = vmatpush.msra.mxu0 %v1891
      %2027 = vmatpush.msra.mxu0 %v1890
      %2028 = vmatpush.msra.mxu0 %v1889
      %2029 = vmatpush.msra.mxu0 %v1888
      %2030 = vmatpush.msra.mxu0 %v1887
      %2031 = vmatpush.msra.mxu0 %v1886
      %2032 = vmatpush.msra.mxu0 %v1885
      %2033 = vmatmul.f32.gmra.mxu0 %v1968
      %v2034 = vpop.f32.mrf.mxu0
      %v2035 = vadd.f32 0.0, %v2034
      %2036 = vmatmul.f32.gmra.mxu0 %v1969
      %v2037 = vpop.f32.mrf.mxu0
      %v2038 = vadd.f32 0.0, %v2037
      %2039 = vmatmul.f32.gmra.mxu0 %v1970
      %v2040 = vpop.f32.mrf.mxu0
      %v2041 = vadd.f32 0.0, %v2040
      %2042 = vmatmul.f32.gmra.mxu0 %v1971
      %v2043 = vpop.f32.mrf.mxu0
      %v2044 = vadd.f32 0.0, %v2043
      %2045 = vmatmul.f32.gmra.mxu0 %v1972
      %v2046 = vpop.f32.mrf.mxu0
      %v2047 = vadd.f32 0.0, %v2046
      %2048 = vmatmul.f32.gmra.mxu0 %v1973
      %v2049 = vpop.f32.mrf.mxu0
      %v2050 = vadd.f32 0.0, %v2049
      %2051 = vmatmul.f32.gmra.mxu0 %v1974
      %v2052 = vpop.f32.mrf.mxu0
      %v2053 = vadd.f32 0.0, %v2052
      %2054 = vmatmul.f32.gmra.mxu0 %v1975
      %v2055 = vpop.f32.mrf.mxu0
      %v2056 = vadd.f32 0.0, %v2055
      %2057 = vdwg.mxu0
      %v2058 = vmax.f32 %v1994, %v2035
      %v2059 = vmax.f32 %v1997, %v2038
      %v2060 = vmax.f32 %v2000, %v2041
      %v2061 = vmax.f32 %v2003, %v2044
      %v2062 = vmax.f32 %v2006, %v2047
      %v2063 = vmax.f32 %v2009, %v2050
      %v2064 = vmax.f32 %v2012, %v2053
      %v2065 = vmax.f32 %v2015, %v2056
      %2066 = vst.msk [vmem:[#allocation2] sm:$0xff] %vm458, 0.0
      %2067 = vst.msk [vmem:[#allocation2 + $0x8] sm:$0xff] %vm458, 0.0
      %2068 = vst.msk [vmem:[#allocation2 + $0x10] sm:$0xff] %vm458, 0.0
      %2069 = vst.msk [vmem:[#allocation2 + $0x18] sm:$0xff] %vm458, 0.0
      %2070 = vst.msk [vmem:[#allocation2 + $0x20] sm:$0xff] %vm458, 0.0
      %2071 = vst.msk [vmem:[#allocation2 + $0x28] sm:$0xff] %vm458, 0.0
      %2072 = vst.msk [vmem:[#allocation2 + $0x30] sm:$0xff] %vm458, 0.0
      %2073 = vst.msk [vmem:[#allocation2 + $0x38] sm:$0xff] %vm458, 0.0
      %2074 = vst.msk [vmem:[#allocation2 + $0x40] sm:$0xff] %vm458, 0.0
      %2075 = vst.msk [vmem:[#allocation2 + $0x48] sm:$0xff] %vm458, 0.0
      %2076 = vst.msk [vmem:[#allocation2 + $0x50] sm:$0xff] %vm458, 0.0
      %2077 = vst.msk [vmem:[#allocation2 + $0x58] sm:$0xff] %vm458, 0.0
      %2078 = vst.msk [vmem:[#allocation2 + $0x60] sm:$0xff] %vm458, 0.0
      %2079 = vst.msk [vmem:[#allocation2 + $0x68] sm:$0xff] %vm458, 0.0
      %2080 = vst.msk [vmem:[#allocation2 + $0x70] sm:$0xff] %vm458, 0.0
      %2081 = vst.msk [vmem:[#allocation2 + $0x78] sm:$0xff] %vm458, 0.0
      %2082 = vst.msk [vmem:[#allocation2 + $0x80] sm:$0x3f] %vm475, 0.0
      %2083 = vst.msk [vmem:[#allocation2 + $0x3] sm:$0xff] %vm1287, %v2058
      %2084 = vst.msk [vmem:[#allocation2 + $0xb] sm:$0xff] %vm1287, %v2059
      %2085 = vst.msk [vmem:[#allocation2 + $0x13] sm:$0xff] %vm1287, %v2060
      %2086 = vst.msk [vmem:[#allocation2 + $0x1b] sm:$0xff] %vm1287, %v2061
      %2087 = vst.msk [vmem:[#allocation2 + $0x23] sm:$0xff] %vm1287, %v2062
      %2088 = vst.msk [vmem:[#allocation2 + $0x2b] sm:$0xff] %vm1287, %v2063
      %2089 = vst.msk [vmem:[#allocation2 + $0x33] sm:$0xff] %vm1287, %v2064
      %2090 = vst.msk [vmem:[#allocation2 + $0x3b] sm:$0xff] %vm1287, %v2065
      %v2091 = vld [vmem:[#allocation2] sm:$0xff]
      %v2092 = vld [vmem:[#allocation2 + $0x8] sm:$0xff]
      %v2093 = vld [vmem:[#allocation2 + $0x10] sm:$0xff]
      %v2094 = vld [vmem:[#allocation2 + $0x18] sm:$0xff]
      %v2095 = vld [vmem:[#allocation2 + $0x20] sm:$0xff]
      %v2096 = vld [vmem:[#allocation2 + $0x28] sm:$0xff]
      %v2097 = vld [vmem:[#allocation2 + $0x30] sm:$0xff]
      %v2098 = vld [vmem:[#allocation2 + $0x38] sm:$0xff]
      %2099 = vst.msk [vmem:[#allocation3] sm:$0xff] %vm1287, %v2091
      %2100 = vst.msk [vmem:[#allocation3 + $0x8] sm:$0xff] %vm1287, %v2092
      %2101 = vst.msk [vmem:[#allocation3 + $0x10] sm:$0xff] %vm1287, %v2093
      %2102 = vst.msk [vmem:[#allocation3 + $0x18] sm:$0xff] %vm1287, %v2094
      %2103 = vst.msk [vmem:[#allocation3 + $0x20] sm:$0xff] %vm1287, %v2095
      %2104 = vst.msk [vmem:[#allocation3 + $0x28] sm:$0xff] %vm1287, %v2096
      %2105 = vst.msk [vmem:[#allocation3 + $0x30] sm:$0xff] %vm1287, %v2097
      %2106 = vst.msk [vmem:[#allocation3 + $0x38] sm:$0xff] %vm1287, %v2098
      %v2107 = vld [vmem:[#allocation2 + $0x1] sm:$0xff]
      %v2108 = vld [vmem:[#allocation2 + $0x9] sm:$0xff]
      %v2109 = vld [vmem:[#allocation2 + $0x11] sm:$0xff]
      %v2110 = vld [vmem:[#allocation2 + $0x19] sm:$0xff]
      %v2111 = vld [vmem:[#allocation2 + $0x21] sm:$0xff]
      %v2112 = vld [vmem:[#allocation2 + $0x29] sm:$0xff]
      %v2113 = vld [vmem:[#allocation2 + $0x31] sm:$0xff]
      %v2114 = vld [vmem:[#allocation2 + $0x39] sm:$0xff]
      %2123 = vrot.lane.b32.xlu0 %v2107, 8
      %v2124 = vpop.permute.xlu0 %2123
      %2125 = vrot.lane.b32.xlu0 %v2108, 8
      %v2126 = vpop.permute.xlu0 %2125
      %2127 = vrot.lane.b32.xlu0 %v2109, 8
      %v2128 = vpop.permute.xlu0 %2127
      %2129 = vrot.lane.b32.xlu0 %v2110, 8
      %v2130 = vpop.permute.xlu0 %2129
      %2131 = vrot.lane.b32.xlu0 %v2111, 8
      %v2132 = vpop.permute.xlu0 %2131
      %2133 = vrot.lane.b32.xlu0 %v2112, 8
      %v2134 = vpop.permute.xlu0 %2133
      %2135 = vrot.lane.b32.xlu0 %v2113, 8
      %v2136 = vpop.permute.xlu0 %2135
      %2137 = vrot.lane.b32.xlu0 %v2114, 8
      %v2138 = vpop.permute.xlu0 %2137
      %2147 = vst.msk [vmem:[#allocation3] sm:$0xff] %vm1416, %v2124
      %2148 = vst.msk [vmem:[#allocation3 + $0x8] sm:$0xff] %vm1416, %v2126
      %2149 = vst.msk [vmem:[#allocation3 + $0x10] sm:$0xff] %vm1416, %v2128
      %2150 = vst.msk [vmem:[#allocation3 + $0x18] sm:$0xff] %vm1416, %v2130
      %2151 = vst.msk [vmem:[#allocation3 + $0x20] sm:$0xff] %vm1416, %v2132
      %2152 = vst.msk [vmem:[#allocation3 + $0x28] sm:$0xff] %vm1416, %v2134
      %2153 = vst.msk [vmem:[#allocation3 + $0x30] sm:$0xff] %vm1416, %v2136
      %2154 = vst.msk [vmem:[#allocation3 + $0x38] sm:$0xff] %vm1416, %v2138
      %v2155 = vld [vmem:[#allocation2 + $0x2] sm:$0xff]
      %v2156 = vld [vmem:[#allocation2 + $0xa] sm:$0xff]
      %v2157 = vld [vmem:[#allocation2 + $0x12] sm:$0xff]
      %v2158 = vld [vmem:[#allocation2 + $0x1a] sm:$0xff]
      %v2159 = vld [vmem:[#allocation2 + $0x22] sm:$0xff]
      %v2160 = vld [vmem:[#allocation2 + $0x2a] sm:$0xff]
      %v2161 = vld [vmem:[#allocation2 + $0x32] sm:$0xff]
      %v2162 = vld [vmem:[#allocation2 + $0x3a] sm:$0xff]
      %2171 = vrot.lane.b32.xlu0 %v2155, 16
      %v2172 = vpop.permute.xlu0 %2171
      %2173 = vrot.lane.b32.xlu0 %v2156, 16
      %v2174 = vpop.permute.xlu0 %2173
      %2175 = vrot.lane.b32.xlu0 %v2157, 16
      %v2176 = vpop.permute.xlu0 %2175
      %2177 = vrot.lane.b32.xlu0 %v2158, 16
      %v2178 = vpop.permute.xlu0 %2177
      %2179 = vrot.lane.b32.xlu0 %v2159, 16
      %v2180 = vpop.permute.xlu0 %2179
      %2181 = vrot.lane.b32.xlu0 %v2160, 16
      %v2182 = vpop.permute.xlu0 %2181
      %2183 = vrot.lane.b32.xlu0 %v2161, 16
      %v2184 = vpop.permute.xlu0 %2183
      %2185 = vrot.lane.b32.xlu0 %v2162, 16
      %v2186 = vpop.permute.xlu0 %2185
      %2195 = vst.msk [vmem:[#allocation3] sm:$0xff] %vm1513, %v2172
      %2196 = vst.msk [vmem:[#allocation3 + $0x8] sm:$0xff] %vm1513, %v2174
      %2197 = vst.msk [vmem:[#allocation3 + $0x10] sm:$0xff] %vm1513, %v2176
      %2198 = vst.msk [vmem:[#allocation3 + $0x18] sm:$0xff] %vm1513, %v2178
      %2199 = vst.msk [vmem:[#allocation3 + $0x20] sm:$0xff] %vm1513, %v2180
      %2200 = vst.msk [vmem:[#allocation3 + $0x28] sm:$0xff] %vm1513, %v2182
      %2201 = vst.msk [vmem:[#allocation3 + $0x30] sm:$0xff] %vm1513, %v2184
      %2202 = vst.msk [vmem:[#allocation3 + $0x38] sm:$0xff] %vm1513, %v2186
      %v2203 = vld [vmem:[#allocation2 + $0x3] sm:$0xff]
      %v2204 = vld [vmem:[#allocation2 + $0xb] sm:$0xff]
      %v2205 = vld [vmem:[#allocation2 + $0x13] sm:$0xff]
      %v2206 = vld [vmem:[#allocation2 + $0x1b] sm:$0xff]
      %v2207 = vld [vmem:[#allocation2 + $0x23] sm:$0xff]
      %v2208 = vld [vmem:[#allocation2 + $0x2b] sm:$0xff]
      %v2209 = vld [vmem:[#allocation2 + $0x33] sm:$0xff]
      %v2210 = vld [vmem:[#allocation2 + $0x3b] sm:$0xff]
      %2219 = vrot.lane.b32.xlu0 %v2203, 24
      %v2220 = vpop.permute.xlu0 %2219
      %2221 = vrot.lane.b32.xlu0 %v2204, 24
      %v2222 = vpop.permute.xlu0 %2221
      %2223 = vrot.lane.b32.xlu0 %v2205, 24
      %v2224 = vpop.permute.xlu0 %2223
      %2225 = vrot.lane.b32.xlu0 %v2206, 24
      %v2226 = vpop.permute.xlu0 %2225
      %2227 = vrot.lane.b32.xlu0 %v2207, 24
      %v2228 = vpop.permute.xlu0 %2227
      %2229 = vrot.lane.b32.xlu0 %v2208, 24
      %v2230 = vpop.permute.xlu0 %2229
      %2231 = vrot.lane.b32.xlu0 %v2209, 24
      %v2232 = vpop.permute.xlu0 %2231
      %2233 = vrot.lane.b32.xlu0 %v2210, 24
      %v2234 = vpop.permute.xlu0 %2233
      %2243 = vst.msk [vmem:[#allocation3] sm:$0xff] %vm1610, %v2220
      %2244 = vst.msk [vmem:[#allocation3 + $0x8] sm:$0xff] %vm1610, %v2222
      %2245 = vst.msk [vmem:[#allocation3 + $0x10] sm:$0xff] %vm1610, %v2224
      %2246 = vst.msk [vmem:[#allocation3 + $0x18] sm:$0xff] %vm1610, %v2226
      %2247 = vst.msk [vmem:[#allocation3 + $0x20] sm:$0xff] %vm1610, %v2228
      %2248 = vst.msk [vmem:[#allocation3 + $0x28] sm:$0xff] %vm1610, %v2230
      %2249 = vst.msk [vmem:[#allocation3 + $0x30] sm:$0xff] %vm1610, %v2232
      %2250 = vst.msk [vmem:[#allocation3 + $0x38] sm:$0xff] %vm1610, %v2234
      %v2251 = vld [vmem:[#allocation2 + $0x4] sm:$0xff]
      %v2252 = vld [vmem:[#allocation2 + $0xc] sm:$0xff]
      %v2253 = vld [vmem:[#allocation2 + $0x14] sm:$0xff]
      %v2254 = vld [vmem:[#allocation2 + $0x1c] sm:$0xff]
      %v2255 = vld [vmem:[#allocation2 + $0x24] sm:$0xff]
      %v2256 = vld [vmem:[#allocation2 + $0x2c] sm:$0xff]
      %v2257 = vld [vmem:[#allocation2 + $0x34] sm:$0xff]
      %v2258 = vld [vmem:[#allocation2 + $0x3c] sm:$0xff]
      %2267 = vrot.lane.b32.xlu0 %v2251, 32
      %v2268 = vpop.permute.xlu0 %2267
      %2269 = vrot.lane.b32.xlu0 %v2252, 32
      %v2270 = vpop.permute.xlu0 %2269
      %2271 = vrot.lane.b32.xlu0 %v2253, 32
      %v2272 = vpop.permute.xlu0 %2271
      %2273 = vrot.lane.b32.xlu0 %v2254, 32
      %v2274 = vpop.permute.xlu0 %2273
      %2275 = vrot.lane.b32.xlu0 %v2255, 32
      %v2276 = vpop.permute.xlu0 %2275
      %2277 = vrot.lane.b32.xlu0 %v2256, 32
      %v2278 = vpop.permute.xlu0 %2277
      %2279 = vrot.lane.b32.xlu0 %v2257, 32
      %v2280 = vpop.permute.xlu0 %2279
      %2281 = vrot.lane.b32.xlu0 %v2258, 32
      %v2282 = vpop.permute.xlu0 %2281
      %2291 = vst.msk [vmem:[#allocation3] sm:$0xff] %vm1707, %v2268
      %2292 = vst.msk [vmem:[#allocation3 + $0x8] sm:$0xff] %vm1707, %v2270
      %2293 = vst.msk [vmem:[#allocation3 + $0x10] sm:$0xff] %vm1707, %v2272
      %2294 = vst.msk [vmem:[#allocation3 + $0x18] sm:$0xff] %vm1707, %v2274
      %2295 = vst.msk [vmem:[#allocation3 + $0x20] sm:$0xff] %vm1707, %v2276
      %2296 = vst.msk [vmem:[#allocation3 + $0x28] sm:$0xff] %vm1707, %v2278
      %2297 = vst.msk [vmem:[#allocation3 + $0x30] sm:$0xff] %vm1707, %v2280
      %2298 = vst.msk [vmem:[#allocation3 + $0x38] sm:$0xff] %vm1707, %v2282
      %v2299 = vld [vmem:[#allocation2 + $0x5] sm:$0xff]
      %v2300 = vld [vmem:[#allocation2 + $0xd] sm:$0xff]
      %v2301 = vld [vmem:[#allocation2 + $0x15] sm:$0xff]
      %v2302 = vld [vmem:[#allocation2 + $0x1d] sm:$0xff]
      %v2303 = vld [vmem:[#allocation2 + $0x25] sm:$0xff]
      %v2304 = vld [vmem:[#allocation2 + $0x2d] sm:$0xff]
      %v2305 = vld [vmem:[#allocation2 + $0x35] sm:$0xff]
      %v2306 = vld [vmem:[#allocation2 + $0x3d] sm:$0xff]
      %2315 = vrot.lane.b32.xlu0 %v2299, 40
      %v2316 = vpop.permute.xlu0 %2315
      %2317 = vrot.lane.b32.xlu0 %v2300, 40
      %v2318 = vpop.permute.xlu0 %2317
      %2319 = vrot.lane.b32.xlu0 %v2301, 40
      %v2320 = vpop.permute.xlu0 %2319
      %2321 = vrot.lane.b32.xlu0 %v2302, 40
      %v2322 = vpop.permute.xlu0 %2321
      %2323 = vrot.lane.b32.xlu0 %v2303, 40
      %v2324 = vpop.permute.xlu0 %2323
      %2325 = vrot.lane.b32.xlu0 %v2304, 40
      %v2326 = vpop.permute.xlu0 %2325
      %2327 = vrot.lane.b32.xlu0 %v2305, 40
      %v2328 = vpop.permute.xlu0 %2327
      %2329 = vrot.lane.b32.xlu0 %v2306, 40
      %v2330 = vpop.permute.xlu0 %2329
      %vm2339 = vcmask 392512
      %2340 = vst.msk [vmem:[#allocation3] sm:$0xff] %vm2339, %v2316
      %2341 = vst.msk [vmem:[#allocation3 + $0x8] sm:$0xff] %vm2339, %v2318
      %2342 = vst.msk [vmem:[#allocation3 + $0x10] sm:$0xff] %vm2339, %v2320
      %2343 = vst.msk [vmem:[#allocation3 + $0x18] sm:$0xff] %vm2339, %v2322
      %2344 = vst.msk [vmem:[#allocation3 + $0x20] sm:$0xff] %vm2339, %v2324
      %2345 = vst.msk [vmem:[#allocation3 + $0x28] sm:$0xff] %vm2339, %v2326
      %2346 = vst.msk [vmem:[#allocation3 + $0x30] sm:$0xff] %vm2339, %v2328
      %2347 = vst.msk [vmem:[#allocation3 + $0x38] sm:$0xff] %vm2339, %v2330
      %v2348 = vld [vmem:[#allocation2 + $0x6] sm:$0xff]
      %v2349 = vld [vmem:[#allocation2 + $0xe] sm:$0xff]
      %v2350 = vld [vmem:[#allocation2 + $0x16] sm:$0xff]
      %v2351 = vld [vmem:[#allocation2 + $0x1e] sm:$0xff]
      %v2352 = vld [vmem:[#allocation2 + $0x26] sm:$0xff]
      %v2353 = vld [vmem:[#allocation2 + $0x2e] sm:$0xff]
      %v2354 = vld [vmem:[#allocation2 + $0x36] sm:$0xff]
      %v2355 = vld [vmem:[#allocation2 + $0x3e] sm:$0xff]
      %2364 = vrot.lane.b32.xlu0 %v2348, 48
      %v2365 = vpop.permute.xlu0 %2364
      %2366 = vrot.lane.b32.xlu0 %v2349, 48
      %v2367 = vpop.permute.xlu0 %2366
      %2368 = vrot.lane.b32.xlu0 %v2350, 48
      %v2369 = vpop.permute.xlu0 %2368
      %2370 = vrot.lane.b32.xlu0 %v2351, 48
      %v2371 = vpop.permute.xlu0 %2370
      %2372 = vrot.lane.b32.xlu0 %v2352, 48
      %v2373 = vpop.permute.xlu0 %2372
      %2374 = vrot.lane.b32.xlu0 %v2353, 48
      %v2375 = vpop.permute.xlu0 %2374
      %2376 = vrot.lane.b32.xlu0 %v2354, 48
      %v2377 = vpop.permute.xlu0 %2376
      %2378 = vrot.lane.b32.xlu0 %v2355, 48
      %v2379 = vpop.permute.xlu0 %2378
      %vm2388 = vcmask 458112
      %2389 = vst.msk [vmem:[#allocation3] sm:$0xff] %vm2388, %v2365
      %2390 = vst.msk [vmem:[#allocation3 + $0x8] sm:$0xff] %vm2388, %v2367
      %2391 = vst.msk [vmem:[#allocation3 + $0x10] sm:$0xff] %vm2388, %v2369
      %2392 = vst.msk [vmem:[#allocation3 + $0x18] sm:$0xff] %vm2388, %v2371
      %2393 = vst.msk [vmem:[#allocation3 + $0x20] sm:$0xff] %vm2388, %v2373
      %2394 = vst.msk [vmem:[#allocation3 + $0x28] sm:$0xff] %vm2388, %v2375
      %2395 = vst.msk [vmem:[#allocation3 + $0x30] sm:$0xff] %vm2388, %v2377
      %2396 = vst.msk [vmem:[#allocation3 + $0x38] sm:$0xff] %vm2388, %v2379
      %v2397 = vld [vmem:[#allocation3] sm:$0xff]
      %v2398 = vld [vmem:[#allocation3 + $0x8] sm:$0xff]
      %v2399 = vld [vmem:[#allocation3 + $0x10] sm:$0xff]
      %v2400 = vld [vmem:[#allocation3 + $0x18] sm:$0xff]
      %v2401 = vld [vmem:[#allocation3 + $0x20] sm:$0xff]
      %v2402 = vld [vmem:[#allocation3 + $0x28] sm:$0xff]
      %v2403 = vld [vmem:[#allocation3 + $0x30] sm:$0xff]
      %v2404 = vld [vmem:[#allocation3 + $0x38] sm:$0xff]
      %v2405 = vpack.c.bf16 %v2398, %v2397
      %v2406 = vpack.c.bf16 %v2400, %v2399
      %v2407 = vpack.c.bf16 %v2402, %v2401
      %v2408 = vpack.c.bf16 %v2404, %v2403
      %v2409 = vld [vmem:[%s7] sm:$0xf]
      %v2410 = vld [vmem:[%s7 + $0x4] sm:$0xf]
      %v2411 = vld [vmem:[%s7 + $0x8] sm:$0xf]
      %v2412 = vld [vmem:[%s7 + $0xc] sm:$0xf]
      %v2413 = vld [vmem:[%s7 + $0x10] sm:$0xf]
      %v2414 = vld [vmem:[%s7 + $0x14] sm:$0xf]
      %v2415 = vld [vmem:[%s7 + $0x18] sm:$0xf]
      %v2423 = vunpack.c.l.b16 %v2409
      %v2424 = vunpack.c.l.b16 %v2410
      %v2425 = vunpack.c.l.b16 %v2411
      %v2426 = vunpack.c.l.b16 %v2412
      %v2427 = vunpack.c.l.b16 %v2413
      %v2428 = vunpack.c.l.b16 %v2414
      %v2429 = vunpack.c.l.b16 %v2415
      %v2430 = vpack.c.b16 %v2424, %v2423
      %v2431 = vpack.c.b16 %v2426, %v2425
      %v2432 = vpack.c.b16 %v2428, %v2427
      %v2433 = vpack.c.b16 %v2429, %v2429
      %vm2437 = vcmask 457728
      %v2439 = vsel %vm2437, %v2405, 0
      %v2442 = vsel %vm2437, %v2406, 0
      %v2445 = vsel %vm2437, %v2407, 0
      %v2448 = vsel %vm2437, %v2408, 0
      %v2451 = vsel %vm1159, %v2433, 0
      %2453 = vmatpush.bf16.msra.mxu0 0
      %2454 = vmatpush.bf16.msra.mxu0 0
      %2455 = vmatpush.bf16.msra.mxu0 0
      %2456 = vmatpush.bf16.msra.mxu0 0
      %2457 = vmatpush.bf16.msra.mxu0 %v2451
      %2458 = vmatpush.bf16.msra.mxu0 %v2432
      %2459 = vmatpush.bf16.msra.mxu0 %v2431
      %2460 = vmatpush.bf16.msra.mxu0 %v2430
      %2461 = vmatmul.bf16.gmra.mxu0 %v2439
      %v2462 = vpop.f32.mrf.mxu0
      %v2463 = vadd.f32 0.0, %v2462
      %v2464 = vpop.f32.mrf.mxu0
      %v2465 = vadd.f32 0.0, %v2464
      %2466 = vmatmul.bf16.gmra.mxu0 %v2442
      %v2467 = vpop.f32.mrf.mxu0
      %v2468 = vadd.f32 0.0, %v2467
      %v2469 = vpop.f32.mrf.mxu0
      %v2470 = vadd.f32 0.0, %v2469
      %2471 = vmatmul.bf16.gmra.mxu0 %v2445
      %v2472 = vpop.f32.mrf.mxu0
      %v2473 = vadd.f32 0.0, %v2472
      %v2474 = vpop.f32.mrf.mxu0
      %v2475 = vadd.f32 0.0, %v2474
      %2476 = vmatmul.bf16.gmra.mxu0 %v2448
      %v2477 = vpop.f32.mrf.mxu0
      %v2478 = vadd.f32 0.0, %v2477
      %v2479 = vpop.f32.mrf.mxu0
      %v2480 = vadd.f32 0.0, %v2479
      %2481 = vdwg.mxu0
      %v2482 = vld [vmem:[%s8] sm:$0x1]
      %v2484 = vperm.slane %v2482, 0
      %v2486 = vmul.f32 %v2463, %v2484
      %v2487 = vmul.f32 %v2465, %v2484
      %v2488 = vmul.f32 %v2468, %v2484
      %v2489 = vmul.f32 %v2470, %v2484
      %v2490 = vmul.f32 %v2473, %v2484
      %v2491 = vmul.f32 %v2475, %v2484
      %v2492 = vmul.f32 %v2478, %v2484
      %v2493 = vmul.f32 %v2480, %v2484
      %v2494 = vld [vmem:[%s9] sm:$0x1]
      %v2496 = vperm.slane %v2494, 0
      %v2498 = vadd.f32 %v2486, %v2496
      %v2499 = vadd.f32 %v2487, %v2496
      %v2500 = vadd.f32 %v2488, %v2496
      %v2501 = vadd.f32 %v2489, %v2496
      %v2502 = vadd.f32 %v2490, %v2496
      %v2503 = vadd.f32 %v2491, %v2496
      %v2504 = vadd.f32 %v2492, %v2496
      %v2505 = vadd.f32 %v2493, %v2496
      %v2506 = vmax.f32 %v2498, 0.0
      %v2507 = vmax.f32 %v2499, 0.0
      %v2508 = vmax.f32 %v2500, 0.0
      %v2509 = vmax.f32 %v2501, 0.0
      %v2510 = vmax.f32 %v2502, 0.0
      %v2511 = vmax.f32 %v2503, 0.0
      %v2512 = vmax.f32 %v2504, 0.0
      %v2513 = vmax.f32 %v2505, 0.0
      %2514 = vst.msk [vmem:[#allocation2] sm:$0xff] %vm458, 0.0
      %2515 = vst.msk [vmem:[#allocation2 + $0x8] sm:$0xff] %vm458, 0.0
      %2516 = vst.msk [vmem:[#allocation2 + $0x10] sm:$0xff] %vm458, 0.0
      %2517 = vst.msk [vmem:[#allocation2 + $0x18] sm:$0xff] %vm458, 0.0
      %2518 = vst.msk [vmem:[#allocation2 + $0x20] sm:$0xff] %vm458, 0.0
      %2519 = vst.msk [vmem:[#allocation2 + $0x28] sm:$0xff] %vm458, 0.0
      %2520 = vst.msk [vmem:[#allocation2 + $0x30] sm:$0xff] %vm458, 0.0
      %2521 = vst.msk [vmem:[#allocation2 + $0x38] sm:$0xff] %vm458, 0.0
      %2522 = vst.msk [vmem:[#allocation2 + $0x40] sm:$0xff] %vm458, 0.0
      %2523 = vst.msk [vmem:[#allocation2 + $0x48] sm:$0xff] %vm458, 0.0
      %2524 = vst.msk [vmem:[#allocation2 + $0x50] sm:$0xff] %vm458, 0.0
      %2525 = vst.msk [vmem:[#allocation2 + $0x58] sm:$0xff] %vm458, 0.0
      %2526 = vst.msk [vmem:[#allocation2 + $0x60] sm:$0xff] %vm458, 0.0
      %2527 = vst.msk [vmem:[#allocation2 + $0x68] sm:$0xff] %vm458, 0.0
      %2528 = vst.msk [vmem:[#allocation2 + $0x70] sm:$0xff] %vm458, 0.0
      %2529 = vst.msk [vmem:[#allocation2 + $0x78] sm:$0xff] %vm458, 0.0
      %2530 = vst.msk [vmem:[#allocation2 + $0x80] sm:$0x3f] %vm475, 0.0
      %2531 = vst.msk [vmem:[#allocation2 + $0x2] sm:$0xff] %vm458, %v2506
      %2532 = vst.msk [vmem:[#allocation2 + $0xa] sm:$0xff] %vm458, %v2507
      %2533 = vst.msk [vmem:[#allocation2 + $0x12] sm:$0xff] %vm458, %v2508
      %2534 = vst.msk [vmem:[#allocation2 + $0x1a] sm:$0xff] %vm458, %v2509
      %2535 = vst.msk [vmem:[#allocation2 + $0x22] sm:$0xff] %vm458, %v2510
      %2536 = vst.msk [vmem:[#allocation2 + $0x2a] sm:$0xff] %vm458, %v2511
      %2537 = vst.msk [vmem:[#allocation2 + $0x32] sm:$0xff] %vm458, %v2512
      %2538 = vst.msk [vmem:[#allocation2 + $0x3a] sm:$0xff] %vm458, %v2513
      %v2539 = vld [vmem:[#allocation2] sm:$0xff]
      %v2540 = vld [vmem:[#allocation2 + $0x8] sm:$0xff]
      %v2541 = vld [vmem:[#allocation2 + $0x10] sm:$0xff]
      %v2542 = vld [vmem:[#allocation2 + $0x18] sm:$0xff]
      %v2543 = vld [vmem:[#allocation2 + $0x20] sm:$0xff]
      %v2544 = vld [vmem:[#allocation2 + $0x28] sm:$0xff]
      %v2545 = vld [vmem:[#allocation2 + $0x30] sm:$0xff]
      %v2546 = vld [vmem:[#allocation2 + $0x38] sm:$0xff]
      %2547 = vst.msk [vmem:[#allocation3] sm:$0xff] %vm458, %v2539
      %2548 = vst.msk [vmem:[#allocation3 + $0x8] sm:$0xff] %vm458, %v2540
      %2549 = vst.msk [vmem:[#allocation3 + $0x10] sm:$0xff] %vm458, %v2541
      %2550 = vst.msk [vmem:[#allocation3 + $0x18] sm:$0xff] %vm458, %v2542
      %2551 = vst.msk [vmem:[#allocation3 + $0x20] sm:$0xff] %vm458, %v2543
      %2552 = vst.msk [vmem:[#allocation3 + $0x28] sm:$0xff] %vm458, %v2544
      %2553 = vst.msk [vmem:[#allocation3 + $0x30] sm:$0xff] %vm458, %v2545
      %2554 = vst.msk [vmem:[#allocation3 + $0x38] sm:$0xff] %vm458, %v2546
      %v2555 = vld [vmem:[#allocation2 + $0x1] sm:$0xff]
      %v2556 = vld [vmem:[#allocation2 + $0x9] sm:$0xff]
      %v2557 = vld [vmem:[#allocation2 + $0x11] sm:$0xff]
      %v2558 = vld [vmem:[#allocation2 + $0x19] sm:$0xff]
      %v2559 = vld [vmem:[#allocation2 + $0x21] sm:$0xff]
      %v2560 = vld [vmem:[#allocation2 + $0x29] sm:$0xff]
      %v2561 = vld [vmem:[#allocation2 + $0x31] sm:$0xff]
      %v2562 = vld [vmem:[#allocation2 + $0x39] sm:$0xff]
      %2571 = vrot.lane.b32.xlu0 %v2555, 16
      %v2572 = vpop.permute.xlu0 %2571
      %2573 = vrot.lane.b32.xlu0 %v2556, 16
      %v2574 = vpop.permute.xlu0 %2573
      %2575 = vrot.lane.b32.xlu0 %v2557, 16
      %v2576 = vpop.permute.xlu0 %2575
      %2577 = vrot.lane.b32.xlu0 %v2558, 16
      %v2578 = vpop.permute.xlu0 %2577
      %2579 = vrot.lane.b32.xlu0 %v2559, 16
      %v2580 = vpop.permute.xlu0 %2579
      %2581 = vrot.lane.b32.xlu0 %v2560, 16
      %v2582 = vpop.permute.xlu0 %2581
      %2583 = vrot.lane.b32.xlu0 %v2561, 16
      %v2584 = vpop.permute.xlu0 %2583
      %2585 = vrot.lane.b32.xlu0 %v2562, 16
      %v2586 = vpop.permute.xlu0 %2585
      %vm2595 = vcmask 261248
      %2596 = vst.msk [vmem:[#allocation3] sm:$0xff] %vm2595, %v2572
      %2597 = vst.msk [vmem:[#allocation3 + $0x8] sm:$0xff] %vm2595, %v2574
      %2598 = vst.msk [vmem:[#allocation3 + $0x10] sm:$0xff] %vm2595, %v2576
      %2599 = vst.msk [vmem:[#allocation3 + $0x18] sm:$0xff] %vm2595, %v2578
      %2600 = vst.msk [vmem:[#allocation3 + $0x20] sm:$0xff] %vm2595, %v2580
      %2601 = vst.msk [vmem:[#allocation3 + $0x28] sm:$0xff] %vm2595, %v2582
      %2602 = vst.msk [vmem:[#allocation3 + $0x30] sm:$0xff] %vm2595, %v2584
      %2603 = vst.msk [vmem:[#allocation3 + $0x38] sm:$0xff] %vm2595, %v2586
      %v2604 = vld [vmem:[#allocation2 + $0x2] sm:$0xff]
      %v2605 = vld [vmem:[#allocation2 + $0xa] sm:$0xff]
      %v2606 = vld [vmem:[#allocation2 + $0x12] sm:$0xff]
      %v2607 = vld [vmem:[#allocation2 + $0x1a] sm:$0xff]
      %v2608 = vld [vmem:[#allocation2 + $0x22] sm:$0xff]
      %v2609 = vld [vmem:[#allocation2 + $0x2a] sm:$0xff]
      %v2610 = vld [vmem:[#allocation2 + $0x32] sm:$0xff]
      %v2611 = vld [vmem:[#allocation2 + $0x3a] sm:$0xff]
      %2620 = vrot.lane.b32.xlu0 %v2604, 32
      %v2621 = vpop.permute.xlu0 %2620
      %2622 = vrot.lane.b32.xlu0 %v2605, 32
      %v2623 = vpop.permute.xlu0 %2622
      %2624 = vrot.lane.b32.xlu0 %v2606, 32
      %v2625 = vpop.permute.xlu0 %2624
      %2626 = vrot.lane.b32.xlu0 %v2607, 32
      %v2627 = vpop.permute.xlu0 %2626
      %2628 = vrot.lane.b32.xlu0 %v2608, 32
      %v2629 = vpop.permute.xlu0 %2628
      %2630 = vrot.lane.b32.xlu0 %v2609, 32
      %v2631 = vpop.permute.xlu0 %2630
      %2632 = vrot.lane.b32.xlu0 %v2610, 32
      %v2633 = vpop.permute.xlu0 %2632
      %2634 = vrot.lane.b32.xlu0 %v2611, 32
      %v2635 = vpop.permute.xlu0 %2634
      %vm2644 = vcmask 392448
      %2645 = vst.msk [vmem:[#allocation3] sm:$0xff] %vm2644, %v2621
      %2646 = vst.msk [vmem:[#allocation3 + $0x8] sm:$0xff] %vm2644, %v2623
      %2647 = vst.msk [vmem:[#allocation3 + $0x10] sm:$0xff] %vm2644, %v2625
      %2648 = vst.msk [vmem:[#allocation3 + $0x18] sm:$0xff] %vm2644, %v2627
      %2649 = vst.msk [vmem:[#allocation3 + $0x20] sm:$0xff] %vm2644, %v2629
      %2650 = vst.msk [vmem:[#allocation3 + $0x28] sm:$0xff] %vm2644, %v2631
      %2651 = vst.msk [vmem:[#allocation3 + $0x30] sm:$0xff] %vm2644, %v2633
      %2652 = vst.msk [vmem:[#allocation3 + $0x38] sm:$0xff] %vm2644, %v2635
      %v2653 = vld [vmem:[#allocation2 + $0x3] sm:$0xff]
      %v2654 = vld [vmem:[#allocation2 + $0xb] sm:$0xff]
      %v2655 = vld [vmem:[#allocation2 + $0x13] sm:$0xff]
      %v2656 = vld [vmem:[#allocation2 + $0x1b] sm:$0xff]
      %v2657 = vld [vmem:[#allocation2 + $0x23] sm:$0xff]
      %v2658 = vld [vmem:[#allocation2 + $0x2b] sm:$0xff]
      %v2659 = vld [vmem:[#allocation2 + $0x33] sm:$0xff]
      %v2660 = vld [vmem:[#allocation2 + $0x3b] sm:$0xff]
      %2669 = vrot.lane.b32.xlu0 %v2653, 48
      %v2670 = vpop.permute.xlu0 %2669
      %2671 = vrot.lane.b32.xlu0 %v2654, 48
      %v2672 = vpop.permute.xlu0 %2671
      %2673 = vrot.lane.b32.xlu0 %v2655, 48
      %v2674 = vpop.permute.xlu0 %2673
      %2675 = vrot.lane.b32.xlu0 %v2656, 48
      %v2676 = vpop.permute.xlu0 %2675
      %2677 = vrot.lane.b32.xlu0 %v2657, 48
      %v2678 = vpop.permute.xlu0 %2677
      %2679 = vrot.lane.b32.xlu0 %v2658, 48
      %v2680 = vpop.permute.xlu0 %2679
      %2681 = vrot.lane.b32.xlu0 %v2659, 48
      %v2682 = vpop.permute.xlu0 %2681
      %2683 = vrot.lane.b32.xlu0 %v2660, 48
      %v2684 = vpop.permute.xlu0 %2683
      %vm2693 = vcmask 523648
      %2694 = vst.msk [vmem:[#allocation3] sm:$0xff] %vm2693, %v2670
      %2695 = vst.msk [vmem:[#allocation3 + $0x8] sm:$0xff] %vm2693, %v2672
      %2696 = vst.msk [vmem:[#allocation3 + $0x10] sm:$0xff] %vm2693, %v2674
      %2697 = vst.msk [vmem:[#allocation3 + $0x18] sm:$0xff] %vm2693, %v2676
      %2698 = vst.msk [vmem:[#allocation3 + $0x20] sm:$0xff] %vm2693, %v2678
      %2699 = vst.msk [vmem:[#allocation3 + $0x28] sm:$0xff] %vm2693, %v2680
      %2700 = vst.msk [vmem:[#allocation3 + $0x30] sm:$0xff] %vm2693, %v2682
      %2701 = vst.msk [vmem:[#allocation3 + $0x38] sm:$0xff] %vm2693, %v2684
      %v2702 = vld [vmem:[#allocation2 + $0x4] sm:$0xff]
      %v2703 = vld [vmem:[#allocation2 + $0xc] sm:$0xff]
      %v2704 = vld [vmem:[#allocation2 + $0x14] sm:$0xff]
      %v2705 = vld [vmem:[#allocation2 + $0x1c] sm:$0xff]
      %v2706 = vld [vmem:[#allocation2 + $0x24] sm:$0xff]
      %v2707 = vld [vmem:[#allocation2 + $0x2c] sm:$0xff]
      %v2708 = vld [vmem:[#allocation2 + $0x34] sm:$0xff]
      %v2709 = vld [vmem:[#allocation2 + $0x3c] sm:$0xff]
      %2718 = vrot.lane.b32.xlu0 %v2702, 64
      %v2719 = vpop.permute.xlu0 %2718
      %2720 = vrot.lane.b32.xlu0 %v2703, 64
      %v2721 = vpop.permute.xlu0 %2720
      %2722 = vrot.lane.b32.xlu0 %v2704, 64
      %v2723 = vpop.permute.xlu0 %2722
      %2724 = vrot.lane.b32.xlu0 %v2705, 64
      %v2725 = vpop.permute.xlu0 %2724
      %2726 = vrot.lane.b32.xlu0 %v2706, 64
      %v2727 = vpop.permute.xlu0 %2726
      %2728 = vrot.lane.b32.xlu0 %v2707, 64
      %v2729 = vpop.permute.xlu0 %2728
      %2730 = vrot.lane.b32.xlu0 %v2708, 64
      %v2731 = vpop.permute.xlu0 %2730
      %2732 = vrot.lane.b32.xlu0 %v2709, 64
      %v2733 = vpop.permute.xlu0 %2732
      %vm2742 = vcmask 654848
      %2743 = vst.msk [vmem:[#allocation3] sm:$0xff] %vm2742, %v2719
      %2744 = vst.msk [vmem:[#allocation3 + $0x8] sm:$0xff] %vm2742, %v2721
      %2745 = vst.msk [vmem:[#allocation3 + $0x10] sm:$0xff] %vm2742, %v2723
      %2746 = vst.msk [vmem:[#allocation3 + $0x18] sm:$0xff] %vm2742, %v2725
      %2747 = vst.msk [vmem:[#allocation3 + $0x20] sm:$0xff] %vm2742, %v2727
      %2748 = vst.msk [vmem:[#allocation3 + $0x28] sm:$0xff] %vm2742, %v2729
      %2749 = vst.msk [vmem:[#allocation3 + $0x30] sm:$0xff] %vm2742, %v2731
      %2750 = vst.msk [vmem:[#allocation3 + $0x38] sm:$0xff] %vm2742, %v2733
      %v2751 = vld [vmem:[#allocation3] sm:$0xff]
      %v2752 = vld [vmem:[#allocation3 + $0x8] sm:$0xff]
      %v2753 = vld [vmem:[#allocation3 + $0x10] sm:$0xff]
      %v2754 = vld [vmem:[#allocation3 + $0x18] sm:$0xff]
      %v2755 = vld [vmem:[#allocation3 + $0x20] sm:$0xff]
      %v2756 = vld [vmem:[#allocation3 + $0x28] sm:$0xff]
      %v2757 = vld [vmem:[#allocation3 + $0x30] sm:$0xff]
      %v2758 = vld [vmem:[#allocation3 + $0x38] sm:$0xff]
      %v2759 = vpack.c.bf16 %v2752, %v2751
      %v2760 = vpack.c.bf16 %v2754, %v2753
      %v2761 = vpack.c.bf16 %v2756, %v2755
      %v2762 = vpack.c.bf16 %v2758, %v2757
      %v2763 = vld [vmem:[%s10] sm:$0xf]
      %v2764 = vld [vmem:[%s10 + $0x4] sm:$0xf]
      %v2765 = vld [vmem:[%s10 + $0x8] sm:$0xf]
      %v2766 = vld [vmem:[%s10 + $0xc] sm:$0xf]
      %v2767 = vld [vmem:[%s10 + $0x10] sm:$0xf]
      %v2768 = vld [vmem:[%s10 + $0x14] sm:$0xf]
      %v2769 = vld [vmem:[%s10 + $0x18] sm:$0xf]
      %v2770 = vld [vmem:[%s10 + $0x1c] sm:$0xf]
      %v2771 = vld [vmem:[%s10 + $0x20] sm:$0xf]
      %v2772 = vld [vmem:[%s10 + $0x24] sm:$0xf]
      %v2783 = vunpack.c.l.b16 %v2763
      %v2784 = vunpack.c.l.b16 %v2764
      %v2785 = vunpack.c.l.b16 %v2765
      %v2786 = vunpack.c.l.b16 %v2766
      %v2787 = vunpack.c.l.b16 %v2767
      %v2788 = vunpack.c.l.b16 %v2768
      %v2789 = vunpack.c.l.b16 %v2769
      %v2790 = vunpack.c.l.b16 %v2770
      %v2791 = vunpack.c.l.b16 %v2771
      %v2792 = vunpack.c.l.b16 %v2772
      %v2793 = vpack.c.b16 %v2784, %v2783
      %v2794 = vpack.c.b16 %v2786, %v2785
      %v2795 = vpack.c.b16 %v2788, %v2787
      %v2796 = vpack.c.b16 %v2790, %v2789
      %v2797 = vpack.c.b16 %v2792, %v2791
      %vm2803 = vcmask 654336
      %v2805 = vsel %vm2803, %v2759, 0
      %v2808 = vsel %vm2803, %v2760, 0
      %v2811 = vsel %vm2803, %v2761, 0
      %v2814 = vsel %vm2803, %v2762, 0
      %2816 = vmatpush.bf16.msra.mxu0 0
      %2817 = vmatpush.bf16.msra.mxu0 0
      %2818 = vmatpush.bf16.msra.mxu0 0
      %2819 = vmatpush.bf16.msra.mxu0 %v2797
      %2820 = vmatpush.bf16.msra.mxu0 %v2796
      %2821 = vmatpush.bf16.msra.mxu0 %v2795
      %2822 = vmatpush.bf16.msra.mxu0 %v2794
      %2823 = vmatpush.bf16.msra.mxu0 %v2793
      %2824 = vmatmul.bf16.gmra.mxu0 %v2805
      %v2825 = vpop.f32.mrf.mxu0
      %v2826 = vadd.f32 0.0, %v2825
      %v2827 = vpop.f32.mrf.mxu0
      %v2828 = vadd.f32 0.0, %v2827
      %2829 = vmatmul.bf16.gmra.mxu0 %v2808
      %v2830 = vpop.f32.mrf.mxu0
      %v2831 = vadd.f32 0.0, %v2830
      %v2832 = vpop.f32.mrf.mxu0
      %v2833 = vadd.f32 0.0, %v2832
      %2834 = vmatmul.bf16.gmra.mxu0 %v2811
      %v2835 = vpop.f32.mrf.mxu0
      %v2836 = vadd.f32 0.0, %v2835
      %v2837 = vpop.f32.mrf.mxu0
      %v2838 = vadd.f32 0.0, %v2837
      %2839 = vmatmul.bf16.gmra.mxu0 %v2814
      %v2840 = vpop.f32.mrf.mxu0
      %v2841 = vadd.f32 0.0, %v2840
      %v2842 = vpop.f32.mrf.mxu0
      %v2843 = vadd.f32 0.0, %v2842
      %2844 = vdwg.mxu0
      %v2845 = vld [vmem:[%s11] sm:$0x1]
      %v2847 = vperm.slane %v2845, 0
      %v2849 = vmul.f32 %v2826, %v2847
      %v2850 = vmul.f32 %v2828, %v2847
      %v2851 = vmul.f32 %v2831, %v2847
      %v2852 = vmul.f32 %v2833, %v2847
      %v2853 = vmul.f32 %v2836, %v2847
      %v2854 = vmul.f32 %v2838, %v2847
      %v2855 = vmul.f32 %v2841, %v2847
      %v2856 = vmul.f32 %v2843, %v2847
      %v2857 = vld [vmem:[%s12] sm:$0x1]
      %v2859 = vperm.slane %v2857, 0
      %v2861 = vadd.f32 %v2849, %v2859
      %v2862 = vadd.f32 %v2850, %v2859
      %v2863 = vadd.f32 %v2851, %v2859
      %v2864 = vadd.f32 %v2852, %v2859
      %v2865 = vadd.f32 %v2853, %v2859
      %v2866 = vadd.f32 %v2854, %v2859
      %v2867 = vadd.f32 %v2855, %v2859
      %v2868 = vadd.f32 %v2856, %v2859
      %v2869 = vmax.f32 %v2861, 0.0
      %v2870 = vmax.f32 %v2862, 0.0
      %v2871 = vmax.f32 %v2863, 0.0
      %v2872 = vmax.f32 %v2864, 0.0
      %v2873 = vmax.f32 %v2865, 0.0
      %v2874 = vmax.f32 %v2866, 0.0
      %v2875 = vmax.f32 %v2867, 0.0
      %v2876 = vmax.f32 %v2868, 0.0
      %2877 = vst.msk [vmem:[%s440] sm:$0xff] %vm458, %v2869
      %2878 = vst.msk [vmem:[%s440 + $0x8] sm:$0xff] %vm458, %v2870
      %2879 = vst.msk [vmem:[%s440 + $0x10] sm:$0xff] %vm458, %v2871
      %2880 = vst.msk [vmem:[%s440 + $0x18] sm:$0xff] %vm458, %v2872
      %2881 = vst.msk [vmem:[%s440 + $0x20] sm:$0xff] %vm458, %v2873
      %2882 = vst.msk [vmem:[%s440 + $0x28] sm:$0xff] %vm458, %v2874
      %2883 = vst.msk [vmem:[%s440 + $0x30] sm:$0xff] %vm458, %v2875
      %2884 = vst.msk [vmem:[%s440 + $0x38] sm:$0xff] %vm458, %v2876
      %p2885 = scmp.lt.s32.totalorder %s24, 1
      %s2886 = scalar_select %p2885, %s24, 1
      %s2887 = smul.addr %s2886, 8
      %s2888 = smul.addr %s2887, 8
      %s2889 = scalar_lea.vmem %s13, %s2888
      // Predicated region
      $region73: #{onedconv_encoder_forward.2} parent=71 // pred_check
        %p2890 = pneg %p320
      $region74: #{onedconv_encoder_forward.2} parent=71 // pred_check_branch
        %2892 = sbr.rel (%p2890) target = $region76
      $region75: #{onedconv_encoder_forward.2} parent=71 // pred_region
        _
      $region76: #{onedconv_encoder_forward.2} parent=71 // pred_fallthru
        _
    $region72: #{onedconv_encoder_forward.2} parent=5 // pred_fallthru
      _
    %p2893 = scmp.le.s32.totalorder 2, %s19
    // Predicated region
    $region77: #{onedconv_encoder_forward.2} parent=5 // pred_check
      %p2894 = pneg %p2893
    $region78: #{onedconv_encoder_forward.2} parent=5 // pred_check_branch
      %2896 = sbr.rel (%p2894) target = $region80
    $region79: #{onedconv_encoder_forward.2} parent=5 // pred_region
      %s2897 = ssub.s32 %s19, 2
      // Predicated region
      $region81: #{onedconv_encoder_forward.2} parent=79 // pred_check
        %p2898 = pneg %p326
      $region82: #{onedconv_encoder_forward.2} parent=79 // pred_check_branch
        %2900 = sbr.rel (%p2898) target = $region84
      $region83: #{onedconv_encoder_forward.2} parent=79 // pred_region
        %p2901 = scmp.lt.s32.totalorder %s25, 1
        %s2902 = scalar_select %p2901, %s25, 1
        %s2903 = smul.addr %s2902, 8
        %s2904 = smul.addr %s2903, 8
        %s2905 = scalar_lea.vmem %s13, %s2904
      $region84: #{onedconv_encoder_forward.2} parent=79 // pred_fallthru
        _
    $region80: #{onedconv_encoder_forward.2} parent=5 // pred_fallthru
      _
  $region6: #{onedconv_encoder_forward.2} parent=0 // loop_footer
    %s23 = sadd.s32 1, %s19
  $region7: #{onedconv_encoder_forward.2} parent=0 // loop_footer_branch
    %18 = sbr.rel target = $region3
  $region8: #{onedconv_encoder_forward.2} parent=0 // loop_exit
    _

</llo_original>
